<compile_context>
chip_gen: v6e
topology: v6e:2x2x1
jax: 0.10.0
libtpu: 0.0.40
codegen_flags: <defaults>
</compile_context>

<pallas_src>
import functools

import jax
import jax.numpy as jnp
from jax.experimental import pallas as pl
from jax.experimental.pallas import tpu as pltpu

# MXU native rate is bf16 on v5e/v6e/v7x; accumulation, softmax and LayerNorm statistics
# stay in f32.
_MATMUL_DTYPE = jnp.bfloat16


# ----------------------------- generation-aware config -----------------------------

def _tpu_kind():
    try:
        return jax.devices()[0].device_kind.lower()
    except Exception:
        return ""


_KIND = _tpu_kind()
if "v7" in _KIND:
    _VMEM_LIMIT = 48 * 1024 * 1024      # 64 MiB physical per core; leave headroom
    _MAX_ROW_TILE = 512
    _MAX_F_TILE = 1024
elif ("v5" in _KIND) or ("v6" in _KIND):
    _VMEM_LIMIT = 100 * 1024 * 1024     # 128 MiB physical; bigger tiles amortize step overhead
    _MAX_ROW_TILE = 1024
    _MAX_F_TILE = 2048
else:
    _VMEM_LIMIT = None                  # unknown generation: keep the compiler default
    _MAX_ROW_TILE = 512
    _MAX_F_TILE = 1024


def _compiler_params(dimension_semantics):
    return pltpu.CompilerParams(dimension_semantics=dimension_semantics,
                                vmem_limit_bytes=_VMEM_LIMIT)


def _probe_buffered_one():
    """Check that single-buffering (pl.Buffered(1)) of a grid-invariant input compiles."""
    if not hasattr(pl, "Buffered"):
        return False

    def _copy(x_ref, o_ref):
        o_ref[...] = x_ref[...]

    try:
        fn = pl.pallas_call(
            _copy,
            out_shape=jax.ShapeDtypeStruct((8, 128), jnp.float32),
            grid=(1,),
            in_specs=[pl.BlockSpec((8, 128), lambda i: (0, 0), pipeline_mode=pl.Buffered(1))],
            out_specs=pl.BlockSpec((8, 128), lambda i: (0, 0)),
        )
        jax.jit(fn).lower(jnp.zeros((8, 128), jnp.float32)).compile()
        return True
    except Exception:
        return False


_USE_BUFFERED_ONE = _probe_buffered_one()


def _invariant_spec(shape, index_map):
    """BlockSpec for grid-invariant operands: constant index maps don't need
    double-buffering, so single-buffer them to halve weight VMEM (key on v7x)."""
    if _USE_BUFFERED_ONE:
        return pl.BlockSpec(shape, index_map, pipeline_mode=pl.Buffered(1))
    return pl.BlockSpec(shape, index_map)


# ------------------------------------ helpers ------------------------------------

def _mxu_dot(a, b, dims=None):
    """MXU matmul: bf16 inputs, f32 accumulation."""
    a = a.astype(_MATMUL_DTYPE)
    b = b.astype(_MATMUL_DTYPE)
    if dims is None:
        return jnp.dot(a, b, preferred_element_type=jnp.float32)
    return jax.lax.dot_general(a, b, dims, preferred_element_type=jnp.float32)


def _layernorm(z, gamma, beta, eps=1e-5):
    # PyTorch nn.LayerNorm: biased variance, eps inside the sqrt. All in f32.
    mu = jnp.mean(z, axis=-1, keepdims=True)
    var = jnp.mean((z - mu) ** 2, axis=-1, keepdims=True)
    return (z - mu) * jax.lax.rsqrt(var + eps) * gamma + beta


def _round_up(n, m):
    return -(-n // m) * m


# ----------------------- fused multi-head attention block -----------------------

def _mha_block_kernel(*refs, num_heads, depth, fused_qkv):
    if fused_qkv:
        # self-attention: K/V source is x; no separate kv operand is DMA'd.
        (x_ref, wqkv_ref, bqkv_ref, wo_ref, bo_ref, g_ref, beta_ref, o_ref) = refs
    else:
        (x_ref, kv_ref, wqkv_ref, bqkv_ref, wo_ref, bo_ref, g_ref, beta_ref, o_ref) = refs

    D = num_heads * depth
    x = x_ref[0]                       # (Sq, D) f32 : query source + residual input
    w_qkv = wqkv_ref[...]              # (D, 3D) bf16 : [Wq | Wk | Wv]
    b_qkv = bqkv_ref[...]              # (1, 3D) f32

    if fused_qkv:
        # one (Sq, D) @ (D, 3D) matmul produces Q, K and V.
        qkv = _mxu_dot(x, w_qkv) + b_qkv
        q, k, v = qkv[:, :D], qkv[:, D:2 * D], qkv[:, 2 * D:]
    else:
        # cross-attention: Q from x, K/V from the encoder output as one (D, 2D) matmul.
        kv_in = kv_ref[0]              # (Sk, D)
        q = _mxu_dot(x, w_qkv[:, :D]) + b_qkv[:, :D]
        kv = _mxu_dot(kv_in, w_qkv[:, D:]) + b_qkv[:, D:]
        k, v = kv[:, :D], kv[:, D:]

    # Fold the 1/sqrt(depth) scale into Q once (Sq*D multiplies instead of H*Sq*Sk).
    q = q * (1.0 / jnp.sqrt(jnp.float32(depth)))

    # Per-head attention. Each head's softmax(QK^T)V context lands in a lane slice of a
    # (Sq, D) context slab so the output projection is ONE full-width (Sq,D)@(D,D) MXU
    # matmul with a D-wide contraction (instead of H depth-wide, sub-128 contractions).
    # TODO(synk): head-batched dot_general + flash Sq/Sk tiling for long seq / many heads.
    ctx_parts = []
    for h in range(num_heads):
        lo, hi = h * depth, (h + 1) * depth
        qh, kh, vh = q[:, lo:hi], k[:, lo:hi], v[:, lo:hi]
        # contract the last dims of Q and K directly (no materialized k.T)
        s = _mxu_dot(qh, kh, (((1,), (1,)), ((), ())))          # (Sq, Sk)
        m = jnp.max(s, axis=-1, keepdims=True)
        p = jnp.exp(s - m)
        l = jnp.sum(p, axis=-1, keepdims=True)
        # normalize AFTER the PV matmul: Sq*depth multiplies instead of Sq*Sk
        ctx_parts.append(_mxu_dot(p, vh) * pl.reciprocal(l, approx=False))
    ctx = jnp.concatenate(ctx_parts, axis=-1)                   # (Sq, D) lane-dense
    y = _mxu_dot(ctx, wo_ref[...]) + bo_ref[...]

    # fused residual-add + LayerNorm epilogue (statistics in f32)
    o_ref[0] = _layernorm(x + y, g_ref[...], beta_ref[...])


def mha_block(p, q_src, kv_src, gamma, beta, num_heads, *, fused_qkv):
    B, Sq, D = q_src.shape
    depth = D // num_heads
    kernel = functools.partial(
        _mha_block_kernel, num_heads=num_heads, depth=depth, fused_qkv=fused_qkv)

    in_specs = [pl.BlockSpec((1, Sq, D), lambda b: (b, 0, 0))]   # x (queries + residual)
    operands = [q_src]
    if not fused_qkv:
        Sk = kv_src.shape[1]
        in_specs.append(pl.BlockSpec((1, Sk, D), lambda b: (b, 0, 0)))   # encoder K/V source
        operands.append(kv_src)

    in_specs += [
        _invariant_spec((D, 3 * D), lambda b: (0, 0)),           # Wqkv (concatenated, bf16)
        _invariant_spec((1, 3 * D), lambda b: (0, 0)),           # bqkv
        _invariant_spec((D, D), lambda b: (0, 0)),               # Wo (bf16)
        _invariant_spec((1, D), lambda b: (0, 0)),               # bo
        _invariant_spec((1, D), lambda b: (0, 0)),               # LN gamma
        _invariant_spec((1, D), lambda b: (0, 0)),               # LN beta
    ]
    operands += [p["wqkv"], p["bqkv"].reshape(1, 3 * D),
                 p["wo"], p["bo"].reshape(1, D),
                 gamma.reshape(1, D), beta.reshape(1, D)]

    return pl.pallas_call(
        kernel,
        out_shape=jax.ShapeDtypeStruct((B, Sq, D), jnp.float32),
        grid=(B,),
        in_specs=in_specs,
        out_specs=pl.BlockSpec((1, Sq, D), lambda b: (b, 0, 0)),
        compiler_params=_compiler_params(("parallel",)),
    )(*operands)


# ---------------------------- fused FFN + LayerNorm block ----------------------------

def _ffn_block_kernel(x_ref, w1_ref, b1_ref, w2_ref, b2_ref, g_ref, beta_ref, o_ref, acc_ref):
    f = pl.program_id(1)

    @pl.when(f == 0)
    def _():
        acc_ref[...] = jnp.zeros_like(acc_ref)

    x = x_ref[...]                                              # (tm, D) f32
    h = jnp.maximum(_mxu_dot(x, w1_ref[...]) + b1_ref[...], 0.0)  # ReLU (dropout = identity)
    acc_ref[...] += _mxu_dot(h, w2_ref[...])                    # accumulate over F slices

    @pl.when(f == pl.num_programs(1) - 1)
    def _():
        y = acc_ref[...] + b2_ref[...]
        o_ref[...] = _layernorm(x + y, g_ref[...], beta_ref[...])


def ffn_ln_block(x2d, w1, b1, w2, b2, gamma, beta):
    M, D = x2d.shape
    F = w1.shape[1]

    # Row tile: as large as the generation's VMEM budget allows; pad rows up to a multiple
    # of the tile (padded rows are LayerNorm-safe and sliced off below) so any M pipelines.
    tm = _round_up(min(M, _MAX_ROW_TILE), 8)
    Mp = _round_up(M, tm)
    if Mp != M:
        x2d = jnp.pad(x2d, ((0, Mp - M), (0, 0)))

    # Hidden-dim tile: stream W1/W2 in F-slices so neither whole weight must stay resident.
    if F <= _MAX_F_TILE:
        tf = F
    else:
        tf = next((t for t in (_MAX_F_TILE, 1024, 512, 256, 128) if F % t == 0), F)

    out = pl.pallas_call(
        _ffn_block_kernel,
        out_shape=jax.ShapeDtypeStruct((Mp, D), jnp.float32),
        grid=(Mp // tm, F // tf),
        in_specs=[
            pl.BlockSpec((tm, D), lambda i, f: (i, 0)),          # activation rows (pipelined)
            pl.BlockSpec((D, tf), lambda i, f: (0, f)),          # W1 F-slice (streamed, bf16)
            pl.BlockSpec((1, tf), lambda i, f: (0, f)),          # b1 F-slice
            pl.BlockSpec((tf, D), lambda i, f: (f, 0)),          # W2 F-slice (streamed, bf16)
            _invariant_spec((1, D), lambda i, f: (0, 0)),        # b2
            _invariant_spec((1, D), lambda i, f: (0, 0)),        # LN gamma
            _invariant_spec((1, D), lambda i, f: (0, 0)),        # LN beta
        ],
        out_specs=pl.BlockSpec((tm, D), lambda i, f: (i, 0)),
        scratch_shapes=[pltpu.VMEM((tm, D), jnp.float32)],
        compiler_params=_compiler_params(("parallel", "arbitrary")),
    )(x2d, w1, b1.reshape(1, F), w2, b2.reshape(1, D),
      gamma.reshape(1, D), beta.reshape(1, D))
    return out[:M] if Mp != M else out


# --------------------------------- decoder layer ---------------------------------

def decoder_layer(params, x, enc_output, num_heads):
    B, S, D = x.shape
    # self-attention + residual + LN1 (single fused kernel, QKV from one (D,3D) matmul)
    x = mha_block(params["self_attn"], x, None,
                  params["ln1_g"], params["ln1_b"], num_heads, fused_qkv=True)
    # cross-attention + residual + LN2 (Q from x, K/V from encoder output)
    x = mha_block(params["cross_attn"], x, enc_output,
                  params["ln2_g"], params["ln2_b"], num_heads, fused_qkv=False)
    # FFN + residual + LN3
    y = ffn_ln_block(x.reshape(B * S, D),
                     params["ffn_w1"], params["ffn_b1"],
                     params["ffn_w2"], params["ffn_b2"],
                     params["ln3_g"], params["ln3_b"])
    return y.reshape(B, S, D)


# ----------------------------------- params & ref -----------------------------------

def init_params(key, d_model, d_ff):
    keys = jax.random.split(key, 12)
    it = iter(keys)

    def w(shape, scale=0.05, dtype=_MATMUL_DTYPE):
        # Matmul weights are stored bf16 in HBM (MXU native rate, half the weight traffic);
        # biases / LayerNorm params stay f32.
        return (jax.random.normal(next(it), shape, jnp.float32) * scale).astype(dtype)

    def attn_params():
        return {
            "wqkv": w((d_model, 3 * d_model)),        # [Wq | Wk | Wv], stored (in, out)
            "bqkv": w((3 * d_model,), 0.02, jnp.float32),
            "wo": w((d_model, d_model)),
            "bo": w((d_model,), 0.02, jnp.float32),
        }

    return {
        "self_attn": attn_params(),
        "cross_attn": attn_params(),
        "ffn_w1": w((d_model, d_ff)), "ffn_b1": w((d_ff,), 0.02, jnp.float32),
        "ffn_w2": w((d_ff, d_model)), "ffn_b2": w((d_model,), 0.02, jnp.float32),
        "ln1_g": jnp.ones((d_model,), jnp.float32), "ln1_b": jnp.zeros((d_model,), jnp.float32),
        "ln2_g": jnp.ones((d_model,), jnp.float32), "ln2_b": jnp.zeros((d_model,), jnp.float32),
        "ln3_g": jnp.ones((d_model,), jnp.float32), "ln3_b": jnp.zeros((d_model,), jnp.float32),
    }


def reference_decoder_layer(params, x, enc_output, num_heads):
    """Pure-JAX f32 reference mirroring the PyTorch DecoderLayer (eval mode, mask=None)."""
    params = jax.tree_util.tree_map(lambda t: t.astype(jnp.float32), params)

    def mha(p, q_src, kv_src):
        B, _, D = q_src.shape
        dh = D // num_heads
        w, b = p["wqkv"], p["bqkv"]
        q = q_src @ w[:, :D] + b[:D]
        k = kv_src @ w[:, D:2 * D] + b[D:2 * D]
        v = kv_src @ w[:, 2 * D:] + b[2 * D:]

        def split(t):
            return t.reshape(B, -1, num_heads, dh).transpose(0, 2, 1, 3)

        q, k, v = split(q), split(k), split(v)
        s = jnp.einsum("bhqd,bhkd->bhqk", q, k) / jnp.sqrt(jnp.float32(dh))
        a = jax.nn.softmax(s, axis=-1)
        o = jnp.einsum("bhqk,bhkd->bhqd", a, v)
        o = o.transpose(0, 2, 1, 3).reshape(B, -1, D)
        return o @ p["wo"] + p["bo"]

    def ln(z, g, b):
        mu = z.mean(-1, keepdims=True)
        var = ((z - mu) ** 2).mean(-1, keepdims=True)
        return (z - mu) * jax.lax.rsqrt(var + 1e-5) * g + b

    y = ln(x + mha(params["self_attn"], x, x), params["ln1_g"], params["ln1_b"])
    y = ln(y + mha(params["cross_attn"], y, enc_output), params["ln2_g"], params["ln2_b"])
    f = jnp.maximum(y @ params["ffn_w1"] + params["ffn_b1"], 0.0) @ params["ffn_w2"] + params["ffn_b2"]
    return ln(y + f, params["ln3_g"], params["ln3_b"])


if __name__ == "__main__":
    B, S, D, H, DFF = 2, 8, 32, 4, 64
    key = jax.random.PRNGKey(0)
    kx, ke, kp = jax.random.split(key, 3)

    x = jax.random.normal(kx, (B, S, D), jnp.float32)
    enc_output = jax.random.normal(ke, (B, S, D), jnp.float32)
    params = init_params(kp, D, DFF)

    fwd = jax.jit(functools.partial(decoder_layer, num_heads=H))
    out = jax.block_until_ready(fwd(params, x, enc_output))
    assert out.shape == (B, S, D)

    with jax.default_matmul_precision("highest"):
        ref = reference_decoder_layer(params, x, enc_output, H)
    max_err = float(jnp.max(jnp.abs(out - ref)))
    # bf16 matmul inputs (f32 accumulation) vs. f32 reference -> slightly looser tolerance.
    assert max_err < 3e-2, f"kernel/reference mismatch: max |diff| = {max_err}"

    print("KERNEL_OK")
</pallas_src>

<mosaic_0001>
module attributes {stable_mosaic.version = 11 : i64} {
  func.func @_ffn_block_kernel(%arg0: i32, %arg1: i32, %arg2: memref<16x32xf32, #tpu.memory_space<vmem>>, %arg3: memref<32x64xbf16, #tpu.memory_space<vmem>>, %arg4: memref<1x64xf32, #tpu.memory_space<vmem>>, %arg5: memref<64x32xbf16, #tpu.memory_space<vmem>>, %arg6: memref<1x32xf32, #tpu.memory_space<vmem>>, %arg7: memref<1x32xf32, #tpu.memory_space<vmem>>, %arg8: memref<1x32xf32, #tpu.memory_space<vmem>>, %arg9: memref<16x32xf32, #tpu.memory_space<vmem>>, %arg10: memref<16x32xf32, #tpu.memory_space<vmem>>) attributes {dimension_semantics = [#tpu.dimension_semantics<parallel>, #tpu.dimension_semantics<arbitrary>], iteration_bounds = array<i64: 1, 1>, scalar_prefetch = 0 : i64, scratch_operands = 1 : i64, tpu.core_type = #tpu.core_type<tc>, window_params = [{transform_indices = @transform_0, window_bounds = array<i64: 16, 32>}, {transform_indices = @transform_1, window_bounds = array<i64: 32, 64>}, {transform_indices = @transform_2, window_bounds = array<i64: 1, 64>}, {transform_indices = @transform_3, window_bounds = array<i64: 64, 32>}, {pipeline_mode = #tpu.pipeline_mode<synchronous>, transform_indices = @transform_4, window_bounds = array<i64: 1, 32>}, {pipeline_mode = #tpu.pipeline_mode<synchronous>, transform_indices = @transform_5, window_bounds = array<i64: 1, 32>}, {pipeline_mode = #tpu.pipeline_mode<synchronous>, transform_indices = @transform_6, window_bounds = array<i64: 1, 32>}, {transform_indices = @transform_7, window_bounds = array<i64: 16, 32>}]} {
    %c0_i32 = arith.constant 0 : i32
    %0 = arith.cmpi eq, %arg1, %c0_i32 : i32
    %1 = arith.extui %0 : i1 to i32
    %c0_i32_0 = arith.constant 0 : i32
    %2 = arith.cmpi ne, %1, %c0_i32_0 : i32
    scf.if %2 {
      %cst_16 = arith.constant 0.000000e+00 : f32
      %21 = vector.broadcast %cst_16 : f32 to vector<16x32xf32>
      %c0_17 = arith.constant 0 : index
      %c0_18 = arith.constant 0 : index
      %22 = vector.load %arg10[%c0_17, %c0_18] : memref<16x32xf32, #tpu.memory_space<vmem>>, vector<16x32xf32>
      tpu.vector_store %arg10[%c0_17, %c0_18], %21 {strides = array<i32>} : memref<16x32xf32, #tpu.memory_space<vmem>>, vector<16x32xf32>,
    } else {
    }
    %c0 = arith.constant 0 : index
    %c0_1 = arith.constant 0 : index
    %3 = vector.load %arg2[%c0, %c0_1] : memref<16x32xf32, #tpu.memory_space<vmem>>, vector<16x32xf32>
    %c0_2 = arith.constant 0 : index
    %c0_3 = arith.constant 0 : index
    %4 = vector.load %arg3[%c0_2, %c0_3] : memref<32x64xbf16, #tpu.memory_space<vmem>>, vector<32x64xbf16>
    %5 = arith.truncf %3 : vector<16x32xf32> to vector<16x32xbf16>
    %cst = arith.constant dense<0.000000e+00> : vector<16x64xf32>
    %6 = tpu.matmul %5, %4, %cst {dimension_numbers = #tpu.dot_dimension_numbers<[1], [0], [0], [1], [0, 0, 1, 1], [], []>} : vector<16x32xbf16>, vector<32x64xbf16>, vector<16x64xf32> -> vector<16x64xf32>
    %c0_4 = arith.constant 0 : index
    %c0_5 = arith.constant 0 : index
    %7 = vector.load %arg4[%c0_4, %c0_5] : memref<1x64xf32, #tpu.memory_space<vmem>>, vector<1x64xf32>
    %8 = vector.broadcast %7 : vector<1x64xf32> to vector<16x64xf32>
    %9 = arith.addf %6, %8 : vector<16x64xf32>
    %cst_6 = arith.constant 0.000000e+00 : f32
    %10 = vector.broadcast %cst_6 : f32 to vector<16x64xf32>
    %11 = arith.maximumf %9, %10 : vector<16x64xf32>
    %c0_7 = arith.constant 0 : index
    %c0_8 = arith.constant 0 : index
    %12 = vector.load %arg10[%c0_7, %c0_8] : memref<16x32xf32, #tpu.memory_space<vmem>>, vector<16x32xf32>
    %c0_9 = arith.constant 0 : index
    %c0_10 = arith.constant 0 : index
    %13 = vector.load %arg5[%c0_9, %c0_10] : memref<64x32xbf16, #tpu.memory_space<vmem>>, vector<64x32xbf16>
    %14 = arith.truncf %11 : vector<16x64xf32> to vector<16x64xbf16>
    %cst_11 = arith.constant dense<0.000000e+00> : vector<16x32xf32>
    %15 = tpu.matmul %14, %13, %cst_11 {dimension_numbers = #tpu.dot_dimension_numbers<[1], [0], [0], [1], [0, 0, 1, 1], [], []>} : vector<16x64xbf16>, vector<64x32xbf16>, vector<16x32xf32> -> vector<16x32xf32>
    %16 = arith.addf %12, %15 : vector<16x32xf32>
    %c0_12 = arith.constant 0 : index
    %c0_13 = arith.constant 0 : index
    %17 = vector.load %arg10[%c0_12, %c0_13] : memref<16x32xf32, #tpu.memory_space<vmem>>, vector<16x32xf32>
    tpu.vector_store %arg10[%c0_12, %c0_13], %16 {strides = array<i32>} : memref<16x32xf32, #tpu.memory_space<vmem>>, vector<16x32xf32>,
    %c0_i32_14 = arith.constant 0 : i32
    %18 = arith.cmpi eq, %arg1, %c0_i32_14 : i32
    %19 = arith.extui %18 : i1 to i32
    %c0_i32_15 = arith.constant 0 : i32
    %20 = arith.cmpi ne, %19, %c0_i32_15 : i32
    scf.if %20 {
      %c0_16 = arith.constant 0 : index
      %c0_17 = arith.constant 0 : index
      %21 = vector.load %arg10[%c0_16, %c0_17] : memref<16x32xf32, #tpu.memory_space<vmem>>, vector<16x32xf32>
      %c0_18 = arith.constant 0 : index
      %c0_19 = arith.constant 0 : index
      %22 = vector.load %arg6[%c0_18, %c0_19] : memref<1x32xf32, #tpu.memory_space<vmem>>, vector<1x32xf32>
      %23 = vector.broadcast %22 : vector<1x32xf32> to vector<16x32xf32>
      %24 = arith.addf %21, %23 : vector<16x32xf32>
      %25 = arith.addf %3, %24 : vector<16x32xf32>
      %c0_20 = arith.constant 0 : index
      %c0_21 = arith.constant 0 : index
      %26 = vector.load %arg7[%c0_20, %c0_21] : memref<1x32xf32, #tpu.memory_space<vmem>>, vector<1x32xf32>
      %c0_22 = arith.constant 0 : index
      %c0_23 = arith.constant 0 : index
      %27 = vector.load %arg8[%c0_22, %c0_23] : memref<1x32xf32, #tpu.memory_space<vmem>>, vector<1x32xf32>
      %cst_24 = arith.constant dense<0.000000e+00> : vector<16xf32>
      %28 = vector.multi_reduction <add>, %25, %cst_24 [1] : vector<16x32xf32> to vector<16xf32>
      %29 = vector.shape_cast %28 : vector<16xf32> to vector<16x1xf32>
      %cst_25 = arith.constant 3.200000e+01 : f32
      %30 = vector.broadcast %cst_25 : f32 to vector<16x1xf32>
      %31 = arith.divf %29, %30 : vector<16x1xf32>
      %32 = vector.broadcast %31 : vector<16x1xf32> to vector<16x32xf32>
      %33 = arith.subf %25, %32 : vector<16x32xf32>
      %34 = arith.mulf %33, %33 : vector<16x32xf32>
      %cst_26 = arith.constant dense<0.000000e+00> : vector<16xf32>
      %35 = vector.multi_reduction <add>, %34, %cst_26 [1] : vector<16x32xf32> to vector<16xf32>
      %36 = vector.shape_cast %35 : vector<16xf32> to vector<16x1xf32>
      %cst_27 = arith.constant 3.200000e+01 : f32
      %37 = vector.broadcast %cst_27 : f32 to vector<16x1xf32>
      %38 = arith.divf %36, %37 : vector<16x1xf32>
      %39 = vector.broadcast %31 : vector<16x1xf32> to vector<16x32xf32>
      %40 = arith.subf %25, %39 : vector<16x32xf32>
      %cst_28 = arith.constant 9.99999974E-6 : f32
      %41 = vector.broadcast %cst_28 : f32 to vector<16x1xf32>
      %42 = arith.addf %38, %41 : vector<16x1xf32>
      %43 = math.rsqrt %42 : vector<16x1xf32>
      %44 = vector.broadcast %43 : vector<16x1xf32> to vector<16x32xf32>
      %45 = arith.mulf %40, %44 : vector<16x32xf32>
      %46 = vector.broadcast %26 : vector<1x32xf32> to vector<16x32xf32>
      %47 = arith.mulf %45, %46 : vector<16x32xf32>
      %48 = vector.broadcast %27 : vector<1x32xf32> to vector<16x32xf32>
      %49 = arith.addf %47, %48 : vector<16x32xf32>
      %c0_29 = arith.constant 0 : index
      %c0_30 = arith.constant 0 : index
      %50 = vector.load %arg9[%c0_29, %c0_30] : memref<16x32xf32, #tpu.memory_space<vmem>>, vector<16x32xf32>
      tpu.vector_store %arg9[%c0_29, %c0_30], %49 {strides = array<i32>} : memref<16x32xf32, #tpu.memory_space<vmem>>, vector<16x32xf32>,
    } else {
    }
    return
  }
  func.func @transform_0(%arg0: i32, %arg1: i32) -> (i32, i32) {
    %c0_i32 = arith.constant 0 : i32
    %c0_i32_0 = arith.constant 0 : i32
    return %arg0, %c0_i32 : i32, i32
  }
  func.func @transform_1(%arg0: i32, %arg1: i32) -> (i32, i32) {
    %c0_i32 = arith.constant 0 : i32
    %c0_i32_0 = arith.constant 0 : i32
    return %c0_i32, %arg1 : i32, i32
  }
  func.func @transform_2(%arg0: i32, %arg1: i32) -> (i32, i32) {
    %c0_i32 = arith.constant 0 : i32
    %c0_i32_0 = arith.constant 0 : i32
    return %c0_i32, %arg1 : i32, i32
  }
  func.func @transform_3(%arg0: i32, %arg1: i32) -> (i32, i32) {
    %c0_i32 = arith.constant 0 : i32
    %c0_i32_0 = arith.constant 0 : i32
    return %arg1, %c0_i32 : i32, i32
  }
  func.func @transform_4(%arg0: i32, %arg1: i32) -> (i32, i32) {
    %c0_i32 = arith.constant 0 : i32
    %c0_i32_0 = arith.constant 0 : i32
    %c0_i32_1 = arith.constant 0 : i32
    return %c0_i32, %c0_i32_0 : i32, i32
  }
  func.func @transform_5(%arg0: i32, %arg1: i32) -> (i32, i32) {
    %c0_i32 = arith.constant 0 : i32
    %c0_i32_0 = arith.constant 0 : i32
    %c0_i32_1 = arith.constant 0 : i32
    return %c0_i32, %c0_i32_0 : i32, i32
  }
  func.func @transform_6(%arg0: i32, %arg1: i32) -> (i32, i32) {
    %c0_i32 = arith.constant 0 : i32
    %c0_i32_0 = arith.constant 0 : i32
    %c0_i32_1 = arith.constant 0 : i32
    return %c0_i32, %c0_i32_0 : i32, i32
  }
  func.func @transform_7(%arg0: i32, %arg1: i32) -> (i32, i32) {
    %c0_i32 = arith.constant 0 : i32
    %c0_i32_0 = arith.constant 0 : i32
    return %arg0, %c0_i32 : i32, i32
  }
}

module attributes {stable_mosaic.version = 11 : i64} {
  func.func @_mha_block_kernel(%arg0: i32, %arg1: memref<1x8x32xf32, #tpu.memory_space<vmem>>, %arg2: memref<32x96xbf16, #tpu.memory_space<vmem>>, %arg3: memref<1x96xf32, #tpu.memory_space<vmem>>, %arg4: memref<32x32xbf16, #tpu.memory_space<vmem>>, %arg5: memref<1x32xf32, #tpu.memory_space<vmem>>, %arg6: memref<1x32xf32, #tpu.memory_space<vmem>>, %arg7: memref<1x32xf32, #tpu.memory_space<vmem>>, %arg8: memref<1x8x32xf32, #tpu.memory_space<vmem>>) attributes {dimension_semantics = [#tpu.dimension_semantics<parallel>], iteration_bounds = array<i64: 2>, scalar_prefetch = 0 : i64, scratch_operands = 0 : i64, tpu.core_type = #tpu.core_type<tc>, window_params = [{transform_indices = @transform_0, window_bounds = array<i64: 1, 8, 32>}, {pipeline_mode = #tpu.pipeline_mode<synchronous>, transform_indices = @transform_1, window_bounds = array<i64: 32, 96>}, {pipeline_mode = #tpu.pipeline_mode<synchronous>, transform_indices = @transform_2, window_bounds = array<i64: 1, 96>}, {pipeline_mode = #tpu.pipeline_mode<synchronous>, transform_indices = @transform_3, window_bounds = array<i64: 32, 32>}, {pipeline_mode = #tpu.pipeline_mode<synchronous>, transform_indices = @transform_4, window_bounds = array<i64: 1, 32>}, {pipeline_mode = #tpu.pipeline_mode<synchronous>, transform_indices = @transform_5, window_bounds = array<i64: 1, 32>}, {pipeline_mode = #tpu.pipeline_mode<synchronous>, transform_indices = @transform_6, window_bounds = array<i64: 1, 32>}, {transform_indices = @transform_7, window_bounds = array<i64: 1, 8, 32>}]} {
    %c0 = arith.constant 0 : index
    %c0_0 = arith.constant 0 : index
    %c0_1 = arith.constant 0 : index
    %0 = vector.load %arg1[%c0, %c0_0, %c0_1] : memref<1x8x32xf32, #tpu.memory_space<vmem>>, vector<1x8x32xf32>
    %1 = vector.shape_cast %0 : vector<1x8x32xf32> to vector<8x32xf32>
    %c0_2 = arith.constant 0 : index
    %c0_3 = arith.constant 0 : index
    %2 = vector.load %arg2[%c0_2, %c0_3] : memref<32x96xbf16, #tpu.memory_space<vmem>>, vector<32x96xbf16>
    %c0_4 = arith.constant 0 : index
    %c0_5 = arith.constant 0 : index
    %3 = vector.load %arg3[%c0_4, %c0_5] : memref<1x96xf32, #tpu.memory_space<vmem>>, vector<1x96xf32>
    %4 = arith.truncf %1 : vector<8x32xf32> to vector<8x32xbf16>
    %cst = arith.constant dense<0.000000e+00> : vector<8x96xf32>
    %5 = tpu.matmul %4, %2, %cst {dimension_numbers = #tpu.dot_dimension_numbers<[1], [0], [0], [1], [0, 0, 1, 1], [], []>} : vector<8x32xbf16>, vector<32x96xbf16>, vector<8x96xf32> -> vector<8x96xf32>
    %6 = vector.broadcast %3 : vector<1x96xf32> to vector<8x96xf32>
    %7 = arith.addf %5, %6 : vector<8x96xf32>
    %8 = vector.extract_strided_slice %7 {offsets = [0, 0], sizes = [8, 32], strides = [1, 1]} : vector<8x96xf32> to vector<8x32xf32>
    %9 = vector.extract_strided_slice %7 {offsets = [0, 32], sizes = [8, 32], strides = [1, 1]} : vector<8x96xf32> to vector<8x32xf32>
    %10 = vector.extract_strided_slice %7 {offsets = [0, 64], sizes = [8, 32], strides = [1, 1]} : vector<8x96xf32> to vector<8x32xf32>
    %cst_6 = arith.constant 8.000000e+00 : f32
    %11 = math.sqrt %cst_6 : f32
    %cst_7 = arith.constant 1.000000e+00 : f32
    %12 = arith.divf %cst_7, %11 : f32
    %13 = vector.broadcast %12 : f32 to vector<8x32xf32>
    %14 = arith.mulf %8, %13 : vector<8x32xf32>
    %15 = vector.extract_strided_slice %14 {offsets = [0, 0], sizes = [8, 8], strides = [1, 1]} : vector<8x32xf32> to vector<8x8xf32>
    %16 = vector.extract_strided_slice %9 {offsets = [0, 0], sizes = [8, 8], strides = [1, 1]} : vector<8x32xf32> to vector<8x8xf32>
    %17 = vector.extract_strided_slice %10 {offsets = [0, 0], sizes = [8, 8], strides = [1, 1]} : vector<8x32xf32> to vector<8x8xf32>
    %18 = arith.truncf %15 : vector<8x8xf32> to vector<8x8xbf16>
    %19 = arith.truncf %16 : vector<8x8xf32> to vector<8x8xbf16>
    %cst_8 = arith.constant dense<0.000000e+00> : vector<8x8xf32>
    %20 = tpu.matmul %18, %19, %cst_8 {dimension_numbers = #tpu.dot_dimension_numbers<[1], [1], [0], [0], [0, 0, 1, 0], [], []>} : vector<8x8xbf16>, vector<8x8xbf16>, vector<8x8xf32> -> vector<8x8xf32>
    %cst_9 = arith.constant dense<0xFF800000> : vector<8xf32>
    %21 = vector.multi_reduction <maximumf>, %20, %cst_9 [1] : vector<8x8xf32> to vector<8xf32>
    %22 = vector.shape_cast %21 : vector<8xf32> to vector<8x1xf32>
    %23 = vector.broadcast %22 : vector<8x1xf32> to vector<8x8xf32>
    %24 = arith.subf %20, %23 : vector<8x8xf32>
    %25 = math.exp %24 : vector<8x8xf32>
    %cst_10 = arith.constant dense<0.000000e+00> : vector<8xf32>
    %26 = vector.multi_reduction <add>, %25, %cst_10 [1] : vector<8x8xf32> to vector<8xf32>
    %27 = vector.shape_cast %26 : vector<8xf32> to vector<8x1xf32>
    %28 = arith.truncf %25 : vector<8x8xf32> to vector<8x8xbf16>
    %29 = arith.truncf %17 : vector<8x8xf32> to vector<8x8xbf16>
    %cst_11 = arith.constant dense<0.000000e+00> : vector<8x8xf32>
    %30 = tpu.matmul %28, %29, %cst_11 {dimension_numbers = #tpu.dot_dimension_numbers<[1], [0], [0], [1], [0, 0, 1, 1], [], []>} : vector<8x8xbf16>, vector<8x8xbf16>, vector<8x8xf32> -> vector<8x8xf32>
    %31 = tpu.reciprocal %27 : vector<8x1xf32> -> vector<8x1xf32>
    %32 = vector.broadcast %31 : vector<8x1xf32> to vector<8x8xf32>
    %33 = arith.mulf %30, %32 : vector<8x8xf32>
    %34 = vector.extract_strided_slice %14 {offsets = [0, 8], sizes = [8, 8], strides = [1, 1]} : vector<8x32xf32> to vector<8x8xf32>
    %35 = vector.extract_strided_slice %9 {offsets = [0, 8], sizes = [8, 8], strides = [1, 1]} : vector<8x32xf32> to vector<8x8xf32>
    %36 = vector.extract_strided_slice %10 {offsets = [0, 8], sizes = [8, 8], strides = [1, 1]} : vector<8x32xf32> to vector<8x8xf32>
    %37 = arith.truncf %34 : vector<8x8xf32> to vector<8x8xbf16>
    %38 = arith.truncf %35 : vector<8x8xf32> to vector<8x8xbf16>
    %cst_12 = arith.constant dense<0.000000e+00> : vector<8x8xf32>
    %39 = tpu.matmul %37, %38, %cst_12 {dimension_numbers = #tpu.dot_dimension_numbers<[1], [1], [0], [0], [0, 0, 1, 0], [], []>} : vector<8x8xbf16>, vector<8x8xbf16>, vector<8x8xf32> -> vector<8x8xf32>
    %cst_13 = arith.constant dense<0xFF800000> : vector<8xf32>
    %40 = vector.multi_reduction <maximumf>, %39, %cst_13 [1] : vector<8x8xf32> to vector<8xf32>
    %41 = vector.shape_cast %40 : vector<8xf32> to vector<8x1xf32>
    %42 = vector.broadcast %41 : vector<8x1xf32> to vector<8x8xf32>
    %43 = arith.subf %39, %42 : vector<8x8xf32>
    %44 = math.exp %43 : vector<8x8xf32>
    %cst_14 = arith.constant dense<0.000000e+00> : vector<8xf32>
    %45 = vector.multi_reduction <add>, %44, %cst_14 [1] : vector<8x8xf32> to vector<8xf32>
    %46 = vector.shape_cast %45 : vector<8xf32> to vector<8x1xf32>
    %47 = arith.truncf %44 : vector<8x8xf32> to vector<8x8xbf16>
    %48 = arith.truncf %36 : vector<8x8xf32> to vector<8x8xbf16>
    %cst_15 = arith.constant dense<0.000000e+00> : vector<8x8xf32>
    %49 = tpu.matmul %47, %48, %cst_15 {dimension_numbers = #tpu.dot_dimension_numbers<[1], [0], [0], [1], [0, 0, 1, 1], [], []>} : vector<8x8xbf16>, vector<8x8xbf16>, vector<8x8xf32> -> vector<8x8xf32>
    %50 = tpu.reciprocal %46 : vector<8x1xf32> -> vector<8x1xf32>
    %51 = vector.broadcast %50 : vector<8x1xf32> to vector<8x8xf32>
    %52 = arith.mulf %49, %51 : vector<8x8xf32>
    %53 = vector.extract_strided_slice %14 {offsets = [0, 16], sizes = [8, 8], strides = [1, 1]} : vector<8x32xf32> to vector<8x8xf32>
    %54 = vector.extract_strided_slice %9 {offsets = [0, 16], sizes = [8, 8], strides = [1, 1]} : vector<8x32xf32> to vector<8x8xf32>
    %55 = vector.extract_strided_slice %10 {offsets = [0, 16], sizes = [8, 8], strides = [1, 1]} : vector<8x32xf32> to vector<8x8xf32>
    %56 = arith.truncf %53 : vector<8x8xf32> to vector<8x8xbf16>
    %57 = arith.truncf %54 : vector<8x8xf32> to vector<8x8xbf16>
    %cst_16 = arith.constant dense<0.000000e+00> : vector<8x8xf32>
    %58 = tpu.matmul %56, %57, %cst_16 {dimension_numbers = #tpu.dot_dimension_numbers<[1], [1], [0], [0], [0, 0, 1, 0], [], []>} : vector<8x8xbf16>, vector<8x8xbf16>, vector<8x8xf32> -> vector<8x8xf32>
    %cst_17 = arith.constant dense<0xFF800000> : vector<8xf32>
    %59 = vector.multi_reduction <maximumf>, %58, %cst_17 [1] : vector<8x8xf32> to vector<8xf32>
    %60 = vector.shape_cast %59 : vector<8xf32> to vector<8x1xf32>
    %61 = vector.broadcast %60 : vector<8x1xf32> to vector<8x8xf32>
    %62 = arith.subf %58, %61 : vector<8x8xf32>
    %63 = math.exp %62 : vector<8x8xf32>
    %cst_18 = arith.constant dense<0.000000e+00> : vector<8xf32>
    %64 = vector.multi_reduction <add>, %63, %cst_18 [1] : vector<8x8xf32> to vector<8xf32>
    %65 = vector.shape_cast %64 : vector<8xf32> to vector<8x1xf32>
    %66 = arith.truncf %63 : vector<8x8xf32> to vector<8x8xbf16>
    %67 = arith.truncf %55 : vector<8x8xf32> to vector<8x8xbf16>
    %cst_19 = arith.constant dense<0.000000e+00> : vector<8x8xf32>
    %68 = tpu.matmul %66, %67, %cst_19 {dimension_numbers = #tpu.dot_dimension_numbers<[1], [0], [0], [1], [0, 0, 1, 1], [], []>} : vector<8x8xbf16>, vector<8x8xbf16>, vector<8x8xf32> -> vector<8x8xf32>
    %69 = tpu.reciprocal %65 : vector<8x1xf32> -> vector<8x1xf32>
    %70 = vector.broadcast %69 : vector<8x1xf32> to vector<8x8xf32>
    %71 = arith.mulf %68, %70 : vector<8x8xf32>
    %72 = vector.extract_strided_slice %14 {offsets = [0, 24], sizes = [8, 8], strides = [1, 1]} : vector<8x32xf32> to vector<8x8xf32>
    %73 = vector.extract_strided_slice %9 {offsets = [0, 24], sizes = [8, 8], strides = [1, 1]} : vector<8x32xf32> to vector<8x8xf32>
    %74 = vector.extract_strided_slice %10 {offsets = [0, 24], sizes = [8, 8], strides = [1, 1]} : vector<8x32xf32> to vector<8x8xf32>
    %75 = arith.truncf %72 : vector<8x8xf32> to vector<8x8xbf16>
    %76 = arith.truncf %73 : vector<8x8xf32> to vector<8x8xbf16>
    %cst_20 = arith.constant dense<0.000000e+00> : vector<8x8xf32>
    %77 = tpu.matmul %75, %76, %cst_20 {dimension_numbers = #tpu.dot_dimension_numbers<[1], [1], [0], [0], [0, 0, 1, 0], [], []>} : vector<8x8xbf16>, vector<8x8xbf16>, vector<8x8xf32> -> vector<8x8xf32>
    %cst_21 = arith.constant dense<0xFF800000> : vector<8xf32>
    %78 = vector.multi_reduction <maximumf>, %77, %cst_21 [1] : vector<8x8xf32> to vector<8xf32>
    %79 = vector.shape_cast %78 : vector<8xf32> to vector<8x1xf32>
    %80 = vector.broadcast %79 : vector<8x1xf32> to vector<8x8xf32>
    %81 = arith.subf %77, %80 : vector<8x8xf32>
    %82 = math.exp %81 : vector<8x8xf32>
    %cst_22 = arith.constant dense<0.000000e+00> : vector<8xf32>
    %83 = vector.multi_reduction <add>, %82, %cst_22 [1] : vector<8x8xf32> to vector<8xf32>
    %84 = vector.shape_cast %83 : vector<8xf32> to vector<8x1xf32>
    %85 = arith.truncf %82 : vector<8x8xf32> to vector<8x8xbf16>
    %86 = arith.truncf %74 : vector<8x8xf32> to vector<8x8xbf16>
    %cst_23 = arith.constant dense<0.000000e+00> : vector<8x8xf32>
    %87 = tpu.matmul %85, %86, %cst_23 {dimension_numbers = #tpu.dot_dimension_numbers<[1], [0], [0], [1], [0, 0, 1, 1], [], []>} : vector<8x8xbf16>, vector<8x8xbf16>, vector<8x8xf32> -> vector<8x8xf32>
    %88 = tpu.reciprocal %84 : vector<8x1xf32> -> vector<8x1xf32>
    %89 = vector.broadcast %88 : vector<8x1xf32> to vector<8x8xf32>
    %90 = arith.mulf %87, %89 : vector<8x8xf32>
    %91 = tpu.concatenate %33, %52, %71, %90 in 1 : vector<8x8xf32>, vector<8x8xf32>, vector<8x8xf32>, vector<8x8xf32> -> vector<8x32xf32>
    %c0_24 = arith.constant 0 : index
    %c0_25 = arith.constant 0 : index
    %92 = vector.load %arg4[%c0_24, %c0_25] : memref<32x32xbf16, #tpu.memory_space<vmem>>, vector<32x32xbf16>
    %93 = arith.truncf %91 : vector<8x32xf32> to vector<8x32xbf16>
    %cst_26 = arith.constant dense<0.000000e+00> : vector<8x32xf32>
    %94 = tpu.matmul %93, %92, %cst_26 {dimension_numbers = #tpu.dot_dimension_numbers<[1], [0], [0], [1], [0, 0, 1, 1], [], []>} : vector<8x32xbf16>, vector<32x32xbf16>, vector<8x32xf32> -> vector<8x32xf32>
    %c0_27 = arith.constant 0 : index
    %c0_28 = arith.constant 0 : index
    %95 = vector.load %arg5[%c0_27, %c0_28] : memref<1x32xf32, #tpu.memory_space<vmem>>, vector<1x32xf32>
    %96 = vector.broadcast %95 : vector<1x32xf32> to vector<8x32xf32>
    %97 = arith.addf %94, %96 : vector<8x32xf32>
    %98 = arith.addf %1, %97 : vector<8x32xf32>
    %c0_29 = arith.constant 0 : index
    %c0_30 = arith.constant 0 : index
    %99 = vector.load %arg6[%c0_29, %c0_30] : memref<1x32xf32, #tpu.memory_space<vmem>>, vector<1x32xf32>
    %c0_31 = arith.constant 0 : index
    %c0_32 = arith.constant 0 : index
    %100 = vector.load %arg7[%c0_31, %c0_32] : memref<1x32xf32, #tpu.memory_space<vmem>>, vector<1x32xf32>
    %cst_33 = arith.constant dense<0.000000e+00> : vector<8xf32>
    %101 = vector.multi_reduction <add>, %98, %cst_33 [1] : vector<8x32xf32> to vector<8xf32>
    %102 = vector.shape_cast %101 : vector<8xf32> to vector<8x1xf32>
    %cst_34 = arith.constant 3.200000e+01 : f32
    %103 = vector.broadcast %cst_34 : f32 to vector<8x1xf32>
    %104 = arith.divf %102, %103 : vector<8x1xf32>
    %105 = vector.broadcast %104 : vector<8x1xf32> to vector<8x32xf32>
    %106 = arith.subf %98, %105 : vector<8x32xf32>
    %107 = arith.mulf %106, %106 : vector<8x32xf32>
    %cst_35 = arith.constant dense<0.000000e+00> : vector<8xf32>
    %108 = vector.multi_reduction <add>, %107, %cst_35 [1] : vector<8x32xf32> to vector<8xf32>
    %109 = vector.shape_cast %108 : vector<8xf32> to vector<8x1xf32>
    %cst_36 = arith.constant 3.200000e+01 : f32
    %110 = vector.broadcast %cst_36 : f32 to vector<8x1xf32>
    %111 = arith.divf %109, %110 : vector<8x1xf32>
    %112 = vector.broadcast %104 : vector<8x1xf32> to vector<8x32xf32>
    %113 = arith.subf %98, %112 : vector<8x32xf32>
    %cst_37 = arith.constant 9.99999974E-6 : f32
    %114 = vector.broadcast %cst_37 : f32 to vector<8x1xf32>
    %115 = arith.addf %111, %114 : vector<8x1xf32>
    %116 = math.rsqrt %115 : vector<8x1xf32>
    %117 = vector.broadcast %116 : vector<8x1xf32> to vector<8x32xf32>
    %118 = arith.mulf %113, %117 : vector<8x32xf32>
    %119 = vector.broadcast %99 : vector<1x32xf32> to vector<8x32xf32>
    %120 = arith.mulf %118, %119 : vector<8x32xf32>
    %121 = vector.broadcast %100 : vector<1x32xf32> to vector<8x32xf32>
    %122 = arith.addf %120, %121 : vector<8x32xf32>
    %c0_38 = arith.constant 0 : index
    %c0_39 = arith.constant 0 : index
    %c0_40 = arith.constant 0 : index
    %123 = vector.load %arg8[%c0_38, %c0_39, %c0_40] : memref<1x8x32xf32, #tpu.memory_space<vmem>>, vector<1x8x32xf32>
    %124 = vector.shape_cast %123 : vector<1x8x32xf32> to vector<8x32xf32>
    %125 = vector.shape_cast %122 : vector<8x32xf32> to vector<1x8x32xf32>
    tpu.vector_store %arg8[%c0_38, %c0_39, %c0_40], %125 {strides = array<i32>} : memref<1x8x32xf32, #tpu.memory_space<vmem>>, vector<1x8x32xf32>,
    return
  }
  func.func @transform_0(%arg0: i32) -> (i32, i32, i32) {
    %c0_i32 = arith.constant 0 : i32
    %c0_i32_0 = arith.constant 0 : i32
    %c0_i32_1 = arith.constant 0 : i32
    return %arg0, %c0_i32, %c0_i32_0 : i32, i32, i32
  }
  func.func @transform_1(%arg0: i32) -> (i32, i32) {
    %c0_i32 = arith.constant 0 : i32
    %c0_i32_0 = arith.constant 0 : i32
    %c0_i32_1 = arith.constant 0 : i32
    return %c0_i32, %c0_i32_0 : i32, i32
  }
  func.func @transform_2(%arg0: i32) -> (i32, i32) {
    %c0_i32 = arith.constant 0 : i32
    %c0_i32_0 = arith.constant 0 : i32
    %c0_i32_1 = arith.constant 0 : i32
    return %c0_i32, %c0_i32_0 : i32, i32
  }
  func.func @transform_3(%arg0: i32) -> (i32, i32) {
    %c0_i32 = arith.constant 0 : i32
    %c0_i32_0 = arith.constant 0 : i32
    %c0_i32_1 = arith.constant 0 : i32
    return %c0_i32, %c0_i32_0 : i32, i32
  }
  func.func @transform_4(%arg0: i32) -> (i32, i32) {
    %c0_i32 = arith.constant 0 : i32
    %c0_i32_0 = arith.constant 0 : i32
    %c0_i32_1 = arith.constant 0 : i32
    return %c0_i32, %c0_i32_0 : i32, i32
  }
  func.func @transform_5(%arg0: i32) -> (i32, i32) {
    %c0_i32 = arith.constant 0 : i32
    %c0_i32_0 = arith.constant 0 : i32
    %c0_i32_1 = arith.constant 0 : i32
    return %c0_i32, %c0_i32_0 : i32, i32
  }
  func.func @transform_6(%arg0: i32) -> (i32, i32) {
    %c0_i32 = arith.constant 0 : i32
    %c0_i32_0 = arith.constant 0 : i32
    %c0_i32_1 = arith.constant 0 : i32
    return %c0_i32, %c0_i32_0 : i32, i32
  }
  func.func @transform_7(%arg0: i32) -> (i32, i32, i32) {
    %c0_i32 = arith.constant 0 : i32
    %c0_i32_0 = arith.constant 0 : i32
    %c0_i32_1 = arith.constant 0 : i32
    return %arg0, %c0_i32, %c0_i32_0 : i32, i32, i32
  }
}

module attributes {stable_mosaic.version = 11 : i64} {
  func.func @_mha_block_kernel(%arg0: i32, %arg1: memref<1x8x32xf32, #tpu.memory_space<vmem>>, %arg2: memref<1x8x32xf32, #tpu.memory_space<vmem>>, %arg3: memref<32x96xbf16, #tpu.memory_space<vmem>>, %arg4: memref<1x96xf32, #tpu.memory_space<vmem>>, %arg5: memref<32x32xbf16, #tpu.memory_space<vmem>>, %arg6: memref<1x32xf32, #tpu.memory_space<vmem>>, %arg7: memref<1x32xf32, #tpu.memory_space<vmem>>, %arg8: memref<1x32xf32, #tpu.memory_space<vmem>>, %arg9: memref<1x8x32xf32, #tpu.memory_space<vmem>>) attributes {dimension_semantics = [#tpu.dimension_semantics<parallel>], iteration_bounds = array<i64: 2>, scalar_prefetch = 0 : i64, scratch_operands = 0 : i64, tpu.core_type = #tpu.core_type<tc>, window_params = [{transform_indices = @transform_0, window_bounds = array<i64: 1, 8, 32>}, {transform_indices = @transform_1, window_bounds = array<i64: 1, 8, 32>}, {pipeline_mode = #tpu.pipeline_mode<synchronous>, transform_indices = @transform_2, window_bounds = array<i64: 32, 96>}, {pipeline_mode = #tpu.pipeline_mode<synchronous>, transform_indices = @transform_3, window_bounds = array<i64: 1, 96>}, {pipeline_mode = #tpu.pipeline_mode<synchronous>, transform_indices = @transform_4, window_bounds = array<i64: 32, 32>}, {pipeline_mode = #tpu.pipeline_mode<synchronous>, transform_indices = @transform_5, window_bounds = array<i64: 1, 32>}, {pipeline_mode = #tpu.pipeline_mode<synchronous>, transform_indices = @transform_6, window_bounds = array<i64: 1, 32>}, {pipeline_mode = #tpu.pipeline_mode<synchronous>, transform_indices = @transform_7, window_bounds = array<i64: 1, 32>}, {transform_indices = @transform_8, window_bounds = array<i64: 1, 8, 32>}]} {
    %c0 = arith.constant 0 : index
    %c0_0 = arith.constant 0 : index
    %c0_1 = arith.constant 0 : index
    %0 = vector.load %arg1[%c0, %c0_0, %c0_1] : memref<1x8x32xf32, #tpu.memory_space<vmem>>, vector<1x8x32xf32>
    %1 = vector.shape_cast %0 : vector<1x8x32xf32> to vector<8x32xf32>
    %c0_2 = arith.constant 0 : index
    %c0_3 = arith.constant 0 : index
    %2 = vector.load %arg3[%c0_2, %c0_3] : memref<32x96xbf16, #tpu.memory_space<vmem>>, vector<32x96xbf16>
    %c0_4 = arith.constant 0 : index
    %c0_5 = arith.constant 0 : index
    %3 = vector.load %arg4[%c0_4, %c0_5] : memref<1x96xf32, #tpu.memory_space<vmem>>, vector<1x96xf32>
    %c0_6 = arith.constant 0 : index
    %c0_7 = arith.constant 0 : index
    %c0_8 = arith.constant 0 : index
    %4 = vector.load %arg2[%c0_6, %c0_7, %c0_8] : memref<1x8x32xf32, #tpu.memory_space<vmem>>, vector<1x8x32xf32>
    %5 = vector.shape_cast %4 : vector<1x8x32xf32> to vector<8x32xf32>
    %6 = vector.extract_strided_slice %2 {offsets = [0, 0], sizes = [32, 32], strides = [1, 1]} : vector<32x96xbf16> to vector<32x32xbf16>
    %7 = arith.truncf %1 : vector<8x32xf32> to vector<8x32xbf16>
    %cst = arith.constant dense<0.000000e+00> : vector<8x32xf32>
    %8 = tpu.matmul %7, %6, %cst {dimension_numbers = #tpu.dot_dimension_numbers<[1], [0], [0], [1], [0, 0, 1, 1], [], []>} : vector<8x32xbf16>, vector<32x32xbf16>, vector<8x32xf32> -> vector<8x32xf32>
    %9 = vector.extract_strided_slice %3 {offsets = [0, 0], sizes = [1, 32], strides = [1, 1]} : vector<1x96xf32> to vector<1x32xf32>
    %10 = vector.broadcast %9 : vector<1x32xf32> to vector<8x32xf32>
    %11 = arith.addf %8, %10 : vector<8x32xf32>
    %12 = vector.extract_strided_slice %2 {offsets = [0, 32], sizes = [32, 64], strides = [1, 1]} : vector<32x96xbf16> to vector<32x64xbf16>
    %13 = arith.truncf %5 : vector<8x32xf32> to vector<8x32xbf16>
    %cst_9 = arith.constant dense<0.000000e+00> : vector<8x64xf32>
    %14 = tpu.matmul %13, %12, %cst_9 {dimension_numbers = #tpu.dot_dimension_numbers<[1], [0], [0], [1], [0, 0, 1, 1], [], []>} : vector<8x32xbf16>, vector<32x64xbf16>, vector<8x64xf32> -> vector<8x64xf32>
    %15 = vector.extract_strided_slice %3 {offsets = [0, 32], sizes = [1, 64], strides = [1, 1]} : vector<1x96xf32> to vector<1x64xf32>
    %16 = vector.broadcast %15 : vector<1x64xf32> to vector<8x64xf32>
    %17 = arith.addf %14, %16 : vector<8x64xf32>
    %18 = vector.extract_strided_slice %17 {offsets = [0, 0], sizes = [8, 32], strides = [1, 1]} : vector<8x64xf32> to vector<8x32xf32>
    %19 = vector.extract_strided_slice %17 {offsets = [0, 32], sizes = [8, 32], strides = [1, 1]} : vector<8x64xf32> to vector<8x32xf32>
    %cst_10 = arith.constant 8.000000e+00 : f32
    %20 = math.sqrt %cst_10 : f32
    %cst_11 = arith.constant 1.000000e+00 : f32
    %21 = arith.divf %cst_11, %20 : f32
    %22 = vector.broadcast %21 : f32 to vector<8x32xf32>
    %23 = arith.mulf %11, %22 : vector<8x32xf32>
    %24 = vector.extract_strided_slice %23 {offsets = [0, 0], sizes = [8, 8], strides = [1, 1]} : vector<8x32xf32> to vector<8x8xf32>
    %25 = vector.extract_strided_slice %18 {offsets = [0, 0], sizes = [8, 8], strides = [1, 1]} : vector<8x32xf32> to vector<8x8xf32>
    %26 = vector.extract_strided_slice %19 {offsets = [0, 0], sizes = [8, 8], strides = [1, 1]} : vector<8x32xf32> to vector<8x8xf32>
    %27 = arith.truncf %24 : vector<8x8xf32> to vector<8x8xbf16>
    %28 = arith.truncf %25 : vector<8x8xf32> to vector<8x8xbf16>
    %cst_12 = arith.constant dense<0.000000e+00> : vector<8x8xf32>
    %29 = tpu.matmul %27, %28, %cst_12 {dimension_numbers = #tpu.dot_dimension_numbers<[1], [1], [0], [0], [0, 0, 1, 0], [], []>} : vector<8x8xbf16>, vector<8x8xbf16>, vector<8x8xf32> -> vector<8x8xf32>
    %cst_13 = arith.constant dense<0xFF800000> : vector<8xf32>
    %30 = vector.multi_reduction <maximumf>, %29, %cst_13 [1] : vector<8x8xf32> to vector<8xf32>
    %31 = vector.shape_cast %30 : vector<8xf32> to vector<8x1xf32>
    %32 = vector.broadcast %31 : vector<8x1xf32> to vector<8x8xf32>
    %33 = arith.subf %29, %32 : vector<8x8xf32>
    %34 = math.exp %33 : vector<8x8xf32>
    %cst_14 = arith.constant dense<0.000000e+00> : vector<8xf32>
    %35 = vector.multi_reduction <add>, %34, %cst_14 [1] : vector<8x8xf32> to vector<8xf32>
    %36 = vector.shape_cast %35 : vector<8xf32> to vector<8x1xf32>
    %37 = arith.truncf %34 : vector<8x8xf32> to vector<8x8xbf16>
    %38 = arith.truncf %26 : vector<8x8xf32> to vector<8x8xbf16>
    %cst_15 = arith.constant dense<0.000000e+00> : vector<8x8xf32>
    %39 = tpu.matmul %37, %38, %cst_15 {dimension_numbers = #tpu.dot_dimension_numbers<[1], [0], [0], [1], [0, 0, 1, 1], [], []>} : vector<8x8xbf16>, vector<8x8xbf16>, vector<8x8xf32> -> vector<8x8xf32>
    %40 = tpu.reciprocal %36 : vector<8x1xf32> -> vector<8x1xf32>
    %41 = vector.broadcast %40 : vector<8x1xf32> to vector<8x8xf32>
    %42 = arith.mulf %39, %41 : vector<8x8xf32>
    %43 = vector.extract_strided_slice %23 {offsets = [0, 8], sizes = [8, 8], strides = [1, 1]} : vector<8x32xf32> to vector<8x8xf32>
    %44 = vector.extract_strided_slice %18 {offsets = [0, 8], sizes = [8, 8], strides = [1, 1]} : vector<8x32xf32> to vector<8x8xf32>
    %45 = vector.extract_strided_slice %19 {offsets = [0, 8], sizes = [8, 8], strides = [1, 1]} : vector<8x32xf32> to vector<8x8xf32>
    %46 = arith.truncf %43 : vector<8x8xf32> to vector<8x8xbf16>
    %47 = arith.truncf %44 : vector<8x8xf32> to vector<8x8xbf16>
    %cst_16 = arith.constant dense<0.000000e+00> : vector<8x8xf32>
    %48 = tpu.matmul %46, %47, %cst_16 {dimension_numbers = #tpu.dot_dimension_numbers<[1], [1], [0], [0], [0, 0, 1, 0], [], []>} : vector<8x8xbf16>, vector<8x8xbf16>, vector<8x8xf32> -> vector<8x8xf32>
    %cst_17 = arith.constant dense<0xFF800000> : vector<8xf32>
    %49 = vector.multi_reduction <maximumf>, %48, %cst_17 [1] : vector<8x8xf32> to vector<8xf32>
    %50 = vector.shape_cast %49 : vector<8xf32> to vector<8x1xf32>
    %51 = vector.broadcast %50 : vector<8x1xf32> to vector<8x8xf32>
    %52 = arith.subf %48, %51 : vector<8x8xf32>
    %53 = math.exp %52 : vector<8x8xf32>
    %cst_18 = arith.constant dense<0.000000e+00> : vector<8xf32>
    %54 = vector.multi_reduction <add>, %53, %cst_18 [1] : vector<8x8xf32> to vector<8xf32>
    %55 = vector.shape_cast %54 : vector<8xf32> to vector<8x1xf32>
    %56 = arith.truncf %53 : vector<8x8xf32> to vector<8x8xbf16>
    %57 = arith.truncf %45 : vector<8x8xf32> to vector<8x8xbf16>
    %cst_19 = arith.constant dense<0.000000e+00> : vector<8x8xf32>
    %58 = tpu.matmul %56, %57, %cst_19 {dimension_numbers = #tpu.dot_dimension_numbers<[1], [0], [0], [1], [0, 0, 1, 1], [], []>} : vector<8x8xbf16>, vector<8x8xbf16>, vector<8x8xf32> -> vector<8x8xf32>
    %59 = tpu.reciprocal %55 : vector<8x1xf32> -> vector<8x1xf32>
    %60 = vector.broadcast %59 : vector<8x1xf32> to vector<8x8xf32>
    %61 = arith.mulf %58, %60 : vector<8x8xf32>
    %62 = vector.extract_strided_slice %23 {offsets = [0, 16], sizes = [8, 8], strides = [1, 1]} : vector<8x32xf32> to vector<8x8xf32>
    %63 = vector.extract_strided_slice %18 {offsets = [0, 16], sizes = [8, 8], strides = [1, 1]} : vector<8x32xf32> to vector<8x8xf32>
    %64 = vector.extract_strided_slice %19 {offsets = [0, 16], sizes = [8, 8], strides = [1, 1]} : vector<8x32xf32> to vector<8x8xf32>
    %65 = arith.truncf %62 : vector<8x8xf32> to vector<8x8xbf16>
    %66 = arith.truncf %63 : vector<8x8xf32> to vector<8x8xbf16>
    %cst_20 = arith.constant dense<0.000000e+00> : vector<8x8xf32>
    %67 = tpu.matmul %65, %66, %cst_20 {dimension_numbers = #tpu.dot_dimension_numbers<[1], [1], [0], [0], [0, 0, 1, 0], [], []>} : vector<8x8xbf16>, vector<8x8xbf16>, vector<8x8xf32> -> vector<8x8xf32>
    %cst_21 = arith.constant dense<0xFF800000> : vector<8xf32>
    %68 = vector.multi_reduction <maximumf>, %67, %cst_21 [1] : vector<8x8xf32> to vector<8xf32>
    %69 = vector.shape_cast %68 : vector<8xf32> to vector<8x1xf32>
    %70 = vector.broadcast %69 : vector<8x1xf32> to vector<8x8xf32>
    %71 = arith.subf %67, %70 : vector<8x8xf32>
    %72 = math.exp %71 : vector<8x8xf32>
    %cst_22 = arith.constant dense<0.000000e+00> : vector<8xf32>
    %73 = vector.multi_reduction <add>, %72, %cst_22 [1] : vector<8x8xf32> to vector<8xf32>
    %74 = vector.shape_cast %73 : vector<8xf32> to vector<8x1xf32>
    %75 = arith.truncf %72 : vector<8x8xf32> to vector<8x8xbf16>
    %76 = arith.truncf %64 : vector<8x8xf32> to vector<8x8xbf16>
    %cst_23 = arith.constant dense<0.000000e+00> : vector<8x8xf32>
    %77 = tpu.matmul %75, %76, %cst_23 {dimension_numbers = #tpu.dot_dimension_numbers<[1], [0], [0], [1], [0, 0, 1, 1], [], []>} : vector<8x8xbf16>, vector<8x8xbf16>, vector<8x8xf32> -> vector<8x8xf32>
    %78 = tpu.reciprocal %74 : vector<8x1xf32> -> vector<8x1xf32>
    %79 = vector.broadcast %78 : vector<8x1xf32> to vector<8x8xf32>
    %80 = arith.mulf %77, %79 : vector<8x8xf32>
    %81 = vector.extract_strided_slice %23 {offsets = [0, 24], sizes = [8, 8], strides = [1, 1]} : vector<8x32xf32> to vector<8x8xf32>
    %82 = vector.extract_strided_slice %18 {offsets = [0, 24], sizes = [8, 8], strides = [1, 1]} : vector<8x32xf32> to vector<8x8xf32>
    %83 = vector.extract_strided_slice %19 {offsets = [0, 24], sizes = [8, 8], strides = [1, 1]} : vector<8x32xf32> to vector<8x8xf32>
    %84 = arith.truncf %81 : vector<8x8xf32> to vector<8x8xbf16>
    %85 = arith.truncf %82 : vector<8x8xf32> to vector<8x8xbf16>
    %cst_24 = arith.constant dense<0.000000e+00> : vector<8x8xf32>
    %86 = tpu.matmul %84, %85, %cst_24 {dimension_numbers = #tpu.dot_dimension_numbers<[1], [1], [0], [0], [0, 0, 1, 0], [], []>} : vector<8x8xbf16>, vector<8x8xbf16>, vector<8x8xf32> -> vector<8x8xf32>
    %cst_25 = arith.constant dense<0xFF800000> : vector<8xf32>
    %87 = vector.multi_reduction <maximumf>, %86, %cst_25 [1] : vector<8x8xf32> to vector<8xf32>
    %88 = vector.shape_cast %87 : vector<8xf32> to vector<8x1xf32>
    %89 = vector.broadcast %88 : vector<8x1xf32> to vector<8x8xf32>
    %90 = arith.subf %86, %89 : vector<8x8xf32>
    %91 = math.exp %90 : vector<8x8xf32>
    %cst_26 = arith.constant dense<0.000000e+00> : vector<8xf32>
    %92 = vector.multi_reduction <add>, %91, %cst_26 [1] : vector<8x8xf32> to vector<8xf32>
    %93 = vector.shape_cast %92 : vector<8xf32> to vector<8x1xf32>
    %94 = arith.truncf %91 : vector<8x8xf32> to vector<8x8xbf16>
    %95 = arith.truncf %83 : vector<8x8xf32> to vector<8x8xbf16>
    %cst_27 = arith.constant dense<0.000000e+00> : vector<8x8xf32>
    %96 = tpu.matmul %94, %95, %cst_27 {dimension_numbers = #tpu.dot_dimension_numbers<[1], [0], [0], [1], [0, 0, 1, 1], [], []>} : vector<8x8xbf16>, vector<8x8xbf16>, vector<8x8xf32> -> vector<8x8xf32>
    %97 = tpu.reciprocal %93 : vector<8x1xf32> -> vector<8x1xf32>
    %98 = vector.broadcast %97 : vector<8x1xf32> to vector<8x8xf32>
    %99 = arith.mulf %96, %98 : vector<8x8xf32>
    %100 = tpu.concatenate %42, %61, %80, %99 in 1 : vector<8x8xf32>, vector<8x8xf32>, vector<8x8xf32>, vector<8x8xf32> -> vector<8x32xf32>
    %c0_28 = arith.constant 0 : index
    %c0_29 = arith.constant 0 : index
    %101 = vector.load %arg5[%c0_28, %c0_29] : memref<32x32xbf16, #tpu.memory_space<vmem>>, vector<32x32xbf16>
    %102 = arith.truncf %100 : vector<8x32xf32> to vector<8x32xbf16>
    %cst_30 = arith.constant dense<0.000000e+00> : vector<8x32xf32>
    %103 = tpu.matmul %102, %101, %cst_30 {dimension_numbers = #tpu.dot_dimension_numbers<[1], [0], [0], [1], [0, 0, 1, 1], [], []>} : vector<8x32xbf16>, vector<32x32xbf16>, vector<8x32xf32> -> vector<8x32xf32>
    %c0_31 = arith.constant 0 : index
    %c0_32 = arith.constant 0 : index
    %104 = vector.load %arg6[%c0_31, %c0_32] : memref<1x32xf32, #tpu.memory_space<vmem>>, vector<1x32xf32>
    %105 = vector.broadcast %104 : vector<1x32xf32> to vector<8x32xf32>
    %106 = arith.addf %103, %105 : vector<8x32xf32>
    %107 = arith.addf %1, %106 : vector<8x32xf32>
    %c0_33 = arith.constant 0 : index
    %c0_34 = arith.constant 0 : index
    %108 = vector.load %arg7[%c0_33, %c0_34] : memref<1x32xf32, #tpu.memory_space<vmem>>, vector<1x32xf32>
    %c0_35 = arith.constant 0 : index
    %c0_36 = arith.constant 0 : index
    %109 = vector.load %arg8[%c0_35, %c0_36] : memref<1x32xf32, #tpu.memory_space<vmem>>, vector<1x32xf32>
    %cst_37 = arith.constant dense<0.000000e+00> : vector<8xf32>
    %110 = vector.multi_reduction <add>, %107, %cst_37 [1] : vector<8x32xf32> to vector<8xf32>
    %111 = vector.shape_cast %110 : vector<8xf32> to vector<8x1xf32>
    %cst_38 = arith.constant 3.200000e+01 : f32
    %112 = vector.broadcast %cst_38 : f32 to vector<8x1xf32>
    %113 = arith.divf %111, %112 : vector<8x1xf32>
    %114 = vector.broadcast %113 : vector<8x1xf32> to vector<8x32xf32>
    %115 = arith.subf %107, %114 : vector<8x32xf32>
    %116 = arith.mulf %115, %115 : vector<8x32xf32>
    %cst_39 = arith.constant dense<0.000000e+00> : vector<8xf32>
    %117 = vector.multi_reduction <add>, %116, %cst_39 [1] : vector<8x32xf32> to vector<8xf32>
    %118 = vector.shape_cast %117 : vector<8xf32> to vector<8x1xf32>
    %cst_40 = arith.constant 3.200000e+01 : f32
    %119 = vector.broadcast %cst_40 : f32 to vector<8x1xf32>
    %120 = arith.divf %118, %119 : vector<8x1xf32>
    %121 = vector.broadcast %113 : vector<8x1xf32> to vector<8x32xf32>
    %122 = arith.subf %107, %121 : vector<8x32xf32>
    %cst_41 = arith.constant 9.99999974E-6 : f32
    %123 = vector.broadcast %cst_41 : f32 to vector<8x1xf32>
    %124 = arith.addf %120, %123 : vector<8x1xf32>
    %125 = math.rsqrt %124 : vector<8x1xf32>
    %126 = vector.broadcast %125 : vector<8x1xf32> to vector<8x32xf32>
    %127 = arith.mulf %122, %126 : vector<8x32xf32>
    %128 = vector.broadcast %108 : vector<1x32xf32> to vector<8x32xf32>
    %129 = arith.mulf %127, %128 : vector<8x32xf32>
    %130 = vector.broadcast %109 : vector<1x32xf32> to vector<8x32xf32>
    %131 = arith.addf %129, %130 : vector<8x32xf32>
    %c0_42 = arith.constant 0 : index
    %c0_43 = arith.constant 0 : index
    %c0_44 = arith.constant 0 : index
    %132 = vector.load %arg9[%c0_42, %c0_43, %c0_44] : memref<1x8x32xf32, #tpu.memory_space<vmem>>, vector<1x8x32xf32>
    %133 = vector.shape_cast %132 : vector<1x8x32xf32> to vector<8x32xf32>
    %134 = vector.shape_cast %131 : vector<8x32xf32> to vector<1x8x32xf32>
    tpu.vector_store %arg9[%c0_42, %c0_43, %c0_44], %134 {strides = array<i32>} : memref<1x8x32xf32, #tpu.memory_space<vmem>>, vector<1x8x32xf32>,
    return
  }
  func.func @transform_0(%arg0: i32) -> (i32, i32, i32) {
    %c0_i32 = arith.constant 0 : i32
    %c0_i32_0 = arith.constant 0 : i32
    %c0_i32_1 = arith.constant 0 : i32
    return %arg0, %c0_i32, %c0_i32_0 : i32, i32, i32
  }
  func.func @transform_1(%arg0: i32) -> (i32, i32, i32) {
    %c0_i32 = arith.constant 0 : i32
    %c0_i32_0 = arith.constant 0 : i32
    %c0_i32_1 = arith.constant 0 : i32
    return %arg0, %c0_i32, %c0_i32_0 : i32, i32, i32
  }
  func.func @transform_2(%arg0: i32) -> (i32, i32) {
    %c0_i32 = arith.constant 0 : i32
    %c0_i32_0 = arith.constant 0 : i32
    %c0_i32_1 = arith.constant 0 : i32
    return %c0_i32, %c0_i32_0 : i32, i32
  }
  func.func @transform_3(%arg0: i32) -> (i32, i32) {
    %c0_i32 = arith.constant 0 : i32
    %c0_i32_0 = arith.constant 0 : i32
    %c0_i32_1 = arith.constant 0 : i32
    return %c0_i32, %c0_i32_0 : i32, i32
  }
  func.func @transform_4(%arg0: i32) -> (i32, i32) {
    %c0_i32 = arith.constant 0 : i32
    %c0_i32_0 = arith.constant 0 : i32
    %c0_i32_1 = arith.constant 0 : i32
    return %c0_i32, %c0_i32_0 : i32, i32
  }
  func.func @transform_5(%arg0: i32) -> (i32, i32) {
    %c0_i32 = arith.constant 0 : i32
    %c0_i32_0 = arith.constant 0 : i32
    %c0_i32_1 = arith.constant 0 : i32
    return %c0_i32, %c0_i32_0 : i32, i32
  }
  func.func @transform_6(%arg0: i32) -> (i32, i32) {
    %c0_i32 = arith.constant 0 : i32
    %c0_i32_0 = arith.constant 0 : i32
    %c0_i32_1 = arith.constant 0 : i32
    return %c0_i32, %c0_i32_0 : i32, i32
  }
  func.func @transform_7(%arg0: i32) -> (i32, i32) {
    %c0_i32 = arith.constant 0 : i32
    %c0_i32_0 = arith.constant 0 : i32
    %c0_i32_1 = arith.constant 0 : i32
    return %c0_i32, %c0_i32_0 : i32, i32
  }
  func.func @transform_8(%arg0: i32) -> (i32, i32, i32) {
    %c0_i32 = arith.constant 0 : i32
    %c0_i32_0 = arith.constant 0 : i32
    %c0_i32_1 = arith.constant 0 : i32
    return %arg0, %c0_i32, %c0_i32_0 : i32, i32, i32
  }
}

</mosaic_0001>

<llo_original>
// kernel: decoder_layer.3
$region0: #{decoder_layer.3}
  #allocation0 [shape = 'u32[]', space=smem, size = 0x4, offset = 0x4, fixed_abs, tag = 'smem constant byte address 0x4 - core index']
  #allocation1 [shape = 'u32[144,128]{1,0:T(1,128)}', space=vmem, size = 0x12000, scoped, tag = 'internal scratch']
  %s0 = inlined_call_operand.vmem [shape: f32[2,8,32], index: 0, kind: input, shape index: {}]
  %s1 = inlined_call_operand.vmem [shape: bf16[32,96], index: 1, kind: input, shape index: {}]
  %s2 = inlined_call_operand.vmem [shape: f32[1,96], index: 2, kind: input, shape index: {}]
  %s3 = inlined_call_operand.vmem [shape: bf16[32,32], index: 3, kind: input, shape index: {}]
  %s4 = inlined_call_operand.hbm [shape: f32[1,32], index: 4, kind: input, shape index: {}]
  %s5 = inlined_call_operand.hbm [shape: f32[1,32], index: 5, kind: input, shape index: {}]
  %s6 = inlined_call_operand.hbm [shape: f32[1,32], index: 6, kind: input, shape index: {}]
  %s7 = inlined_call_operand.vmem [shape: f32[2,8,32], index: 7, kind: output, shape index: {}]
  %s8 = sld [smem:[#allocation0]]
  $region73: #{decoder_layer.3} parent=0
    _
  %s10 = ssub.s32 1, %s8
  %s11 = scalar_select 0, %s10, %s8
  $region1: #{decoder_layer.3} parent=0
    #allocation2 [shape = 'u8[512]{0}', space=vmem, size = 0x400, scoped, tag = 'input window, operand 4, single buffered']
    #allocation3 [shape = 's32[2]{0}', space=sflag, size = 0x8, scoped, tag = 'scoped memory for decoder_layer.3']
    #allocation4 [shape = 'u8[512]{0}', space=vmem, size = 0x400, scoped, tag = 'input window, operand 5, single buffered']
    #allocation5 [shape = 's32[1]{0}', space=sflag, size = 0x4, scoped, tag = 'scoped memory for decoder_layer.3']
    #allocation6 [shape = 'u8[512]{0}', space=vmem, size = 0x400, scoped, tag = 'input window, operand 6, single buffered']
    %12 = vsyncpa [#allocation3], 0
    %13 = vsyncpa [#allocation5], 0
    loop: start=0, step=1, limit=4
    $region2: #{decoder_layer.3} parent=1 // loop_pre_header
      _
    $region3: #{decoder_layer.3} parent=1 // loop_header
      %s15 = sphi 0, %s19
      %p16 = scmp.ge.s32.totalorder %s15, 4
      %s25 = sphi 0, %s27
      %s28 = sphi 0, %s25
      %s29 = sphi 0, %s28
      %s45 = sphi 0, %s29
      %s49 = sphi 0, %s49
      %s51 = sphi 0, %s49
      %s52 = sphi 0, %s51
      %s66 = sphi 0, %s52
      %s70 = sphi 0, %s70
      %s72 = sphi 0, %s70
      %s73 = sphi 0, %s72
      %s87 = sphi 0, %s73
      %s91 = sphi 0, %s91
      %s93 = sphi 0, %s91
      %s94 = sphi 0, %s93
      %s108 = sphi 0, %s94
      %s112 = sphi 0, %s112
      %s114 = sphi 0, %s112
      %s115 = sphi 0, %s114
      %s129 = sphi 0, %s115
      %s133 = sphi 0, %s133
      %s135 = sphi 0, %s133
      %s136 = sphi 0, %s135
      %s150 = sphi 0, %s136
      %s154 = sphi 0, %s154
      %s156 = sphi 0, %s154
      %s157 = sphi 0, %s156
      %s171 = sphi 0, %s157
      %s177 = sphi 0, %s179
      %s180 = sphi 0, %s177
      %s181 = sphi 0, %s180
      %s197 = sphi 0, %s181
    $region4: #{decoder_layer.3} parent=1 // loop_header_branch
      %18 = sbr.rel (%p16) target = $region8
    $region5: #{decoder_layer.3} parent=1 // loop_body
      %s20 = ssub.s32 %s15, 1
      %s21 = ssub.s32 %s15, 2
      %s22 = sadd.s32 %s15, 1
      %s23 = ssub.s32 %s15, %s22
      %p24 = scmp.eq.s32.totalorder %s23, 0
      %s26 = sadd.s32 %s25, 1
      %s27 = scalar_select %p24, %s25, %s26
      %p30 = pneg %p24
      %p31 = scmp.eq.s32.totalorder %s15, 1
      %p32 = por %p30, %p31
      %p33 = scmp.ne.s32.totalorder %s25, %s28
      %p34 = scmp.eq.s32.totalorder %s15, 0
      %p35 = por %p33, %p34
      %p36 = scmp.ne.s32.totalorder %s25, %s28
      %p37 = scmp.eq.s32.totalorder %s20, 1
      %p38 = por %p36, %p37
      %p39 = scmp.ne.s32.totalorder %s28, %s29
      %p40 = scmp.eq.s32.totalorder %s20, 0
      %p41 = por %p39, %p40
      %p42 = scmp.ne.s32.totalorder %s28, %s29
      %p43 = scmp.eq.s32.totalorder %s21, 1
      %p44 = por %p42, %p43
      %p46 = scmp.ne.s32.totalorder %s29, %s45
      %p47 = scmp.eq.s32.totalorder %s21, 0
      %p48 = por %p46, %p47
      %s50 = sadd.s32 %s49, 1
      %p53 = scmp.eq.s32.totalorder %s15, 1
      %p54 = scmp.ne.s32.totalorder %s49, %s51
      %p55 = scmp.eq.s32.totalorder %s15, 0
      %p56 = por %p54, %p55
      %p57 = scmp.ne.s32.totalorder %s49, %s51
      %p58 = scmp.eq.s32.totalorder %s20, 1
      %p59 = por %p57, %p58
      %p60 = scmp.ne.s32.totalorder %s51, %s52
      %p61 = scmp.eq.s32.totalorder %s20, 0
      %p62 = por %p60, %p61
      %p63 = scmp.ne.s32.totalorder %s51, %s52
      %p64 = scmp.eq.s32.totalorder %s21, 1
      %p65 = por %p63, %p64
      %p67 = scmp.ne.s32.totalorder %s52, %s66
      %p68 = scmp.eq.s32.totalorder %s21, 0
      %p69 = por %p67, %p68
      %s71 = sadd.s32 %s70, 1
      %p74 = scmp.eq.s32.totalorder %s15, 1
      %p75 = scmp.ne.s32.totalorder %s70, %s72
      %p76 = scmp.eq.s32.totalorder %s15, 0
      %p77 = por %p75, %p76
      %p78 = scmp.ne.s32.totalorder %s70, %s72
      %p79 = scmp.eq.s32.totalorder %s20, 1
      %p80 = por %p78, %p79
      %p81 = scmp.ne.s32.totalorder %s72, %s73
      %p82 = scmp.eq.s32.totalorder %s20, 0
      %p83 = por %p81, %p82
      %p84 = scmp.ne.s32.totalorder %s72, %s73
      %p85 = scmp.eq.s32.totalorder %s21, 1
      %p86 = por %p84, %p85
      %p88 = scmp.ne.s32.totalorder %s73, %s87
      %p89 = scmp.eq.s32.totalorder %s21, 0
      %p90 = por %p88, %p89
      %s92 = sadd.s32 %s91, 1
      %p95 = scmp.eq.s32.totalorder %s15, 1
      %p96 = scmp.ne.s32.totalorder %s91, %s93
      %p97 = scmp.eq.s32.totalorder %s15, 0
      %p98 = por %p96, %p97
      %p99 = scmp.ne.s32.totalorder %s91, %s93
      %p100 = scmp.eq.s32.totalorder %s20, 1
      %p101 = por %p99, %p100
      %p102 = scmp.ne.s32.totalorder %s93, %s94
      %p103 = scmp.eq.s32.totalorder %s20, 0
      %p104 = por %p102, %p103
      %p105 = scmp.ne.s32.totalorder %s93, %s94
      %p106 = scmp.eq.s32.totalorder %s21, 1
      %p107 = por %p105, %p106
      %p109 = scmp.ne.s32.totalorder %s94, %s108
      %p110 = scmp.eq.s32.totalorder %s21, 0
      %p111 = por %p109, %p110
      %s113 = sadd.s32 %s112, 1
      %p116 = scmp.eq.s32.totalorder %s15, 1
      %p117 = scmp.ne.s32.totalorder %s112, %s114
      %p118 = scmp.eq.s32.totalorder %s15, 0
      %p119 = por %p117, %p118
      %p120 = scmp.ne.s32.totalorder %s112, %s114
      %p121 = scmp.eq.s32.totalorder %s20, 1
      %p122 = por %p120, %p121
      %p123 = scmp.ne.s32.totalorder %s114, %s115
      %p124 = scmp.eq.s32.totalorder %s20, 0
      %p125 = por %p123, %p124
      %p126 = scmp.ne.s32.totalorder %s114, %s115
      %p127 = scmp.eq.s32.totalorder %s21, 1
      %p128 = por %p126, %p127
      %p130 = scmp.ne.s32.totalorder %s115, %s129
      %p131 = scmp.eq.s32.totalorder %s21, 0
      %p132 = por %p130, %p131
      %s134 = sadd.s32 %s133, 1
      %p137 = scmp.eq.s32.totalorder %s15, 1
      %p138 = scmp.ne.s32.totalorder %s133, %s135
      %p139 = scmp.eq.s32.totalorder %s15, 0
      %p140 = por %p138, %p139
      %p141 = scmp.ne.s32.totalorder %s133, %s135
      %p142 = scmp.eq.s32.totalorder %s20, 1
      %p143 = por %p141, %p142
      %p144 = scmp.ne.s32.totalorder %s135, %s136
      %p145 = scmp.eq.s32.totalorder %s20, 0
      %p146 = por %p144, %p145
      %p147 = scmp.ne.s32.totalorder %s135, %s136
      %p148 = scmp.eq.s32.totalorder %s21, 1
      %p149 = por %p147, %p148
      %p151 = scmp.ne.s32.totalorder %s136, %s150
      %p152 = scmp.eq.s32.totalorder %s21, 0
      %p153 = por %p151, %p152
      %s155 = sadd.s32 %s154, 1
      %p158 = scmp.eq.s32.totalorder %s15, 1
      %p159 = scmp.ne.s32.totalorder %s154, %s156
      %p160 = scmp.eq.s32.totalorder %s15, 0
      %p161 = por %p159, %p160
      %p162 = scmp.ne.s32.totalorder %s154, %s156
      %p163 = scmp.eq.s32.totalorder %s20, 1
      %p164 = por %p162, %p163
      %p165 = scmp.ne.s32.totalorder %s156, %s157
      %p166 = scmp.eq.s32.totalorder %s20, 0
      %p167 = por %p165, %p166
      %p168 = scmp.ne.s32.totalorder %s156, %s157
      %p169 = scmp.eq.s32.totalorder %s21, 1
      %p170 = por %p168, %p169
      %p172 = scmp.ne.s32.totalorder %s157, %s171
      %p173 = scmp.eq.s32.totalorder %s21, 0
      %p174 = por %p172, %p173
      %s175 = ssub.s32 %s15, %s22
      %p176 = scmp.eq.s32.totalorder %s175, 0
      %s178 = sadd.s32 %s177, 1
      %s179 = scalar_select %p176, %s177, %s178
      %p182 = pneg %p176
      %p183 = scmp.eq.s32.totalorder %s15, 1
      %p184 = por %p182, %p183
      %p185 = scmp.ne.s32.totalorder %s177, %s180
      %p186 = scmp.eq.s32.totalorder %s15, 0
      %p187 = por %p185, %p186
      %p188 = scmp.ne.s32.totalorder %s177, %s180
      %p189 = scmp.eq.s32.totalorder %s20, 1
      %p190 = por %p188, %p189
      %p191 = scmp.ne.s32.totalorder %s180, %s181
      %p192 = scmp.eq.s32.totalorder %s20, 0
      %p193 = por %p191, %p192
      %p194 = scmp.ne.s32.totalorder %s180, %s181
      %p195 = scmp.eq.s32.totalorder %s21, 1
      %p196 = por %p194, %p195
      %p198 = scmp.ne.s32.totalorder %s181, %s197
      %p199 = scmp.eq.s32.totalorder %s21, 0
      %p200 = por %p198, %p199
      %p201 = scmp.le.s32.totalorder 1, %s15
      %p202 = scmp.lt.s32.totalorder %s15, 3
      %p203 = pnand %p201, %p202
      %p204 = pneg %p203
      // Predicated region
      $region9: #{decoder_layer.3} parent=5 // pred_check
        _
      $region10: #{decoder_layer.3} parent=5 // pred_check_branch
        %206 = sbr.rel (%p203) target = $region12
      $region11: #{decoder_layer.3} parent=5 // pred_region
        %s207 = ssub.s32 %s15, 1
        // Predicated region
        $region13: #{decoder_layer.3} parent=11 // pred_check
          %p208 = pneg %p62
        $region14: #{decoder_layer.3} parent=11 // pred_check_branch
          %210 = sbr.rel (%p208) target = $region16
        $region15: #{decoder_layer.3} parent=11 // pred_region
          _
        $region16: #{decoder_layer.3} parent=11 // pred_fallthru
          _
        // Predicated region
        $region17: #{decoder_layer.3} parent=11 // pred_check
          %p211 = pneg %p83
        $region18: #{decoder_layer.3} parent=11 // pred_check_branch
          %213 = sbr.rel (%p211) target = $region20
        $region19: #{decoder_layer.3} parent=11 // pred_region
          _
        $region20: #{decoder_layer.3} parent=11 // pred_fallthru
          _
        // Predicated region
        $region21: #{decoder_layer.3} parent=11 // pred_check
          %p214 = pneg %p104
        $region22: #{decoder_layer.3} parent=11 // pred_check_branch
          %216 = sbr.rel (%p214) target = $region24
        $region23: #{decoder_layer.3} parent=11 // pred_region
          _
        $region24: #{decoder_layer.3} parent=11 // pred_fallthru
          _
        // Predicated region
        $region25: #{decoder_layer.3} parent=11 // pred_check
          %p217 = pneg %p125
        $region26: #{decoder_layer.3} parent=11 // pred_check_branch
          %219 = sbr.rel (%p217) target = $region28
        $region27: #{decoder_layer.3} parent=11 // pred_region
          %s221 = ssub.s32 16, 16
          %222 = vsyncadd [#allocation3], %s221
          %s224 = sshll.u32 [#allocation2], 4
          %s225 = int_to_ptr.vmem [resolvable:$true] %s224
          %227 = dma.hbm_to_vmem [thread:$0]  %s4, 16, %s225, [#allocation3]
        $region28: #{decoder_layer.3} parent=11 // pred_fallthru
          _
        // Predicated region
        $region29: #{decoder_layer.3} parent=11 // pred_check
          %p228 = pneg %p146
        $region30: #{decoder_layer.3} parent=11 // pred_check_branch
          %230 = sbr.rel (%p228) target = $region32
        $region31: #{decoder_layer.3} parent=11 // pred_region
          %s232 = ssub.s32 16, 16
          %233 = vsyncadd [#allocation5], %s232
          %s235 = sshll.u32 [#allocation4], 4
          %s236 = int_to_ptr.vmem [resolvable:$true] %s235
          %238 = dma.hbm_to_vmem [thread:$0]  %s5, 16, %s236, [#allocation5]
        $region32: #{decoder_layer.3} parent=11 // pred_fallthru
          _
        // Predicated region
        $region33: #{decoder_layer.3} parent=11 // pred_check
          %p239 = pneg %p167
        $region34: #{decoder_layer.3} parent=11 // pred_check_branch
          %241 = sbr.rel (%p239) target = $region36
        $region35: #{decoder_layer.3} parent=11 // pred_region
          %s243 = ssub.s32 16, 16
          %244 = vsyncadd [#allocation5], %s243
          %s246 = sshll.u32 [#allocation6], 4
          %s247 = int_to_ptr.vmem [resolvable:$true] %s246
          %249 = dma.hbm_to_vmem [thread:$0]  %s6, 16, %s247, [#allocation5]
        $region36: #{decoder_layer.3} parent=11 // pred_fallthru
          _
      $region12: #{decoder_layer.3} parent=5 // pred_fallthru
        _
      %p250 = scmp.lt.s32.totalorder %s15, 2
      // Predicated region
      $region37: #{decoder_layer.3} parent=5 // pred_check
        %p251 = pneg %p250
      $region38: #{decoder_layer.3} parent=5 // pred_check_branch
        %253 = sbr.rel (%p251) target = $region40
      $region39: #{decoder_layer.3} parent=5 // pred_region
        // Predicated region
        $region41: #{decoder_layer.3} parent=39 // pred_check
          %p254 = pneg %p35
        $region42: #{decoder_layer.3} parent=39 // pred_check_branch
          %256 = sbr.rel (%p254) target = $region44
        $region43: #{decoder_layer.3} parent=39 // pred_region
          %p257 = scmp.lt.s32.totalorder %s15, 1
          %s258 = scalar_select %p257, %s15, 1
          %s259 = smul.addr %s258, 8
          %s260 = scalar_lea.vmem %s0, %s259
        $region44: #{decoder_layer.3} parent=39 // pred_fallthru
          _
      $region40: #{decoder_layer.3} parent=5 // pred_fallthru
        _
      %p261 = scmp.le.s32.totalorder 1, %s15
      %p262 = scmp.lt.s32.totalorder %s15, 3
      %p263 = pnand %p261, %p262
      %p264 = pneg %p263
      // Predicated region
      $region45: #{decoder_layer.3} parent=5 // pred_check
        _
      $region46: #{decoder_layer.3} parent=5 // pred_check_branch
        %266 = sbr.rel (%p263) target = $region48
      $region47: #{decoder_layer.3} parent=5 // pred_region
        %s267 = ssub.s32 %s15, 1
        // Predicated region
        $region49: #{decoder_layer.3} parent=47 // pred_check
          %p268 = pneg %p125
        $region50: #{decoder_layer.3} parent=47 // pred_check_branch
          %270 = sbr.rel (%p268) target = $region52
        $region51: #{decoder_layer.3} parent=47 // pred_region
          %271 = dma.done [#allocation3], 16
        $region52: #{decoder_layer.3} parent=47 // pred_fallthru
          _
        // Predicated region
        $region53: #{decoder_layer.3} parent=47 // pred_check
          %p272 = pneg %p146
        $region54: #{decoder_layer.3} parent=47 // pred_check_branch
          %274 = sbr.rel (%p272) target = $region56
        $region55: #{decoder_layer.3} parent=47 // pred_region
          %275 = dma.done [#allocation5], 16
        $region56: #{decoder_layer.3} parent=47 // pred_fallthru
          _
        // Predicated region
        $region57: #{decoder_layer.3} parent=47 // pred_check
          %p276 = pneg %p167
        $region58: #{decoder_layer.3} parent=47 // pred_check_branch
          %278 = sbr.rel (%p276) target = $region60
        $region59: #{decoder_layer.3} parent=47 // pred_region
          %279 = dma.done [#allocation5], 16
        $region60: #{decoder_layer.3} parent=47 // pred_fallthru
          _
        %p280 = scmp.lt.s32.totalorder %s20, 1
        %s281 = scalar_select %p280, %s20, 1
        %s282 = smul.addr %s281, 8
        %s283 = scalar_lea.vmem %s0, %s282
        %p284 = pneg %p41
        %p285 = pneg %p38
        %p286 = pneg %p62
        %p287 = pneg %p59
        %p288 = pneg %p83
        %p289 = pneg %p80
        %p290 = pneg %p104
        %p291 = pneg %p101
        %p292 = pneg %p125
        %p293 = pneg %p122
        %p294 = pneg %p146
        %p295 = pneg %p143
        %p296 = pneg %p167
        %p297 = pneg %p164
        %p298 = pneg %p193
        %p299 = pneg %p190
        %p300 = scmp.lt.s32.totalorder %s20, 1
        %s301 = scalar_select %p300, %s20, 1
        %s302 = smul.addr %s301, 8
        %s303 = scalar_lea.vmem %s7, %s302
        %p304 = scmp.lt.s32.totalorder %s20, 1
        %s305 = scalar_select %p304, %s20, 1
        %s306 = smul.addr %s305, 8
        %s307 = scalar_lea.vmem %s0, %s306
        %p308 = scmp.lt.s32.totalorder %s20, 1
        %s309 = scalar_select %p308, %s20, 1
        %s310 = smul.addr %s309, 8
        %s311 = scalar_lea.vmem %s7, %s310
        %v313 = vld [vmem:[%s307] sm:$0xff]
        %v314 = vld [vmem:[%s1] sm:$0xf]
        %v315 = vld [vmem:[%s1 + $0x4] sm:$0xf]
        %v316 = vld [vmem:[%s1 + $0x8] sm:$0xf]
        %v317 = vld [vmem:[%s1 + $0xc] sm:$0xf]
        %v318 = vld [vmem:[%s2] sm:$0x1]
        %v319 = vpack.c.bf16 %v313, %v313
        %v321 = vlaneseq
        %v322 = vshrl.u32 %v321, 7
        %v323 = vsub.s32 0, %v322
        %v324 = vrot.slane %v318, %v323
        %v330 = vunpack.c.l.b16 %v314
        %v331 = vunpack.c.l.b16 %v315
        %v332 = vunpack.c.l.b16 %v316
        %v333 = vunpack.c.l.b16 %v317
        %v334 = vpack.c.b16 %v331, %v330
        %v335 = vpack.c.b16 %v333, %v332
        %vm338 = vcmask 261120
        %v340 = vsel %vm338, %v319, 0
        %342 = vmatprep.subr.bf16.mxu0 0
        %343 = vmatpush1.bf16.msra.mxu0 0
        %344 = vmatprep.subr.bf16.mxu0 0
        %345 = vmatpush1.bf16.msra.mxu0 0
        %346 = vmatprep.subr.bf16.mxu0 0
        %347 = vmatpush1.bf16.msra.mxu0 0
        %348 = vmatprep.subr.bf16.mxu0 0
        %349 = vmatpush1.bf16.msra.mxu0 0
        %350 = vmatprep.subr.bf16.mxu0 0
        %351 = vmatpush1.bf16.msra.mxu0 0
        %352 = vmatprep.subr.bf16.mxu0 0
        %353 = vmatpush1.bf16.msra.mxu0 0
        %354 = vmatprep.subr.bf16.mxu0 0
        %355 = vmatpush1.bf16.msra.mxu0 %v335
        %356 = vmatprep.subr.bf16.mxu0 0
        %357 = vmatpush1.bf16.msra.mxu0 %v334
        %358 = vmatprep.subr.bf16.mxu0 0
        %359 = vmatpush2.bf16.msra.mxu0 0
        %360 = vmatprep.subr.bf16.mxu0 0
        %361 = vmatpush2.bf16.msra.mxu0 0
        %362 = vmatprep.subr.bf16.mxu0 0
        %363 = vmatpush2.bf16.msra.mxu0 0
        %364 = vmatprep.subr.bf16.mxu0 0
        %365 = vmatpush2.bf16.msra.mxu0 0
        %366 = vmatprep.subr.bf16.mxu0 0
        %367 = vmatpush2.bf16.msra.mxu0 0
        %368 = vmatprep.subr.bf16.mxu0 0
        %369 = vmatpush2.bf16.msra.mxu0 0
        %370 = vmatprep.subr.bf16.mxu0 0
        %371 = vmatpush2.bf16.msra.mxu0 0
        %372 = vmatprep.subr.bf16.mxu0 0
        %373 = vmatpush2.bf16.msra.mxu0 0
        %374 = vmatprep.mubr.bf16.mxu0 0
        %375 = vmatmul.mubr.bf16.gmra.mxu0 %v340
        %v376 = vpop.f32.mrf.mxu0
        %v377 = vadd.f32 %v324, %v376
        %v378 = vpop.f32.mrf.mxu0
        %v379 = vpop.f32.mrf.mxu0
        %v380 = vpop.f32.mrf.mxu0
        %381 = vdwg.mxu0
        %v382 = vmul.f32 %v377, 0.35355338
        %v383 = vpack.c.bf16 %v382, %v382
        %v384 = vpack.c.bf16 %v377, %v377
        %386 = vrot.lane.b32.xlu0 %v384, 96
        %v387 = vpop.permute.xlu0 %386
        %vm388 = vcmask 64512
        %v390 = vsel %vm388, %v383, 0
        %v393 = vsel %vm388, %v387, 0
        %395 = vmatprep.subr.bf16.mxu0 0
        %396 = vmatpush1.bf16.xpose.msra.mxu0 0
        %397 = vmatprep.subr.bf16.mxu0 0
        %398 = vmatpush1.bf16.xpose.msra.mxu0 0
        %399 = vmatprep.subr.bf16.mxu0 0
        %400 = vmatpush1.bf16.xpose.msra.mxu0 0
        %401 = vmatprep.subr.bf16.mxu0 0
        %402 = vmatpush1.bf16.xpose.msra.mxu0 0
        %403 = vmatprep.subr.bf16.mxu0 0
        %404 = vmatpush1.bf16.xpose.msra.mxu0 0
        %405 = vmatprep.subr.bf16.mxu0 0
        %406 = vmatpush1.bf16.xpose.msra.mxu0 0
        %407 = vmatprep.subr.bf16.mxu0 0
        %408 = vmatpush1.bf16.xpose.msra.mxu0 0
        %409 = vmatprep.subr.bf16.mxu0 0
        %410 = vmatpush1.bf16.xpose.msra.mxu0 %v393
        %411 = vmatprep.subr.bf16.mxu0 0
        %412 = vmatpush2.bf16.xpose.msra.mxu0 0
        %413 = vmatprep.subr.bf16.mxu0 0
        %414 = vmatpush2.bf16.xpose.msra.mxu0 0
        %415 = vmatprep.subr.bf16.mxu0 0
        %416 = vmatpush2.bf16.xpose.msra.mxu0 0
        %417 = vmatprep.subr.bf16.mxu0 0
        %418 = vmatpush2.bf16.xpose.msra.mxu0 0
        %419 = vmatprep.subr.bf16.mxu0 0
        %420 = vmatpush2.bf16.xpose.msra.mxu0 0
        %421 = vmatprep.subr.bf16.mxu0 0
        %422 = vmatpush2.bf16.xpose.msra.mxu0 0
        %423 = vmatprep.subr.bf16.mxu0 0
        %424 = vmatpush2.bf16.xpose.msra.mxu0 0
        %425 = vmatprep.subr.bf16.mxu0 0
        %426 = vmatpush2.bf16.xpose.msra.mxu0 0
        %427 = vmatprep.mubr.bf16.mxu0 0
        %428 = vmatmul.mubr.bf16.gmra.mxu0 %v390
        %v429 = vpop.f32.mrf.mxu0
        %v430 = vadd.f32 0.0, %v429
        %v431 = vpop.f32.mrf.mxu0
        %v432 = vpop.f32.mrf.mxu0
        %v433 = vpop.f32.mrf.mxu0
        %434 = vdwg.mxu0
        %v435 = vsel %vm388, %v430, -inf
        %436 = vmax.xlane.f32.xlu0 %v435
        %v437 = vpop.xlane.xlu0 %436
        %v438 = vsub.f32 %v430, %v437
        %v439 = vmul.f32 %v438, 1.442695
        %v440 = vpow.pop %v439
        %v441 = vsel %vm388, %v440, 0.0
        %442 = vadd.xlane.f32.xlu0 %v441
        %v443 = vpop.xlane.xlu0 %442
        %v444 = vpack.c.bf16 %v440, %v440
        %445 = vrot.lane.b32.xlu0 %v384, 64
        %v446 = vpop.permute.xlu0 %445
        %v448 = vsel %vm388, %v444, 0
        %vm450 = vcmask 1043456
        %v452 = vsel %vm450, %v446, 0
        %454 = vmatprep.subr.bf16.mxu0 0
        %455 = vmatpush1.bf16.msra.mxu0 0
        %456 = vmatprep.subr.bf16.mxu0 0
        %457 = vmatpush1.bf16.msra.mxu0 0
        %458 = vmatprep.subr.bf16.mxu0 0
        %459 = vmatpush1.bf16.msra.mxu0 0
        %460 = vmatprep.subr.bf16.mxu0 0
        %461 = vmatpush1.bf16.msra.mxu0 0
        %462 = vmatprep.subr.bf16.mxu0 0
        %463 = vmatpush1.bf16.msra.mxu0 0
        %464 = vmatprep.subr.bf16.mxu0 0
        %465 = vmatpush1.bf16.msra.mxu0 0
        %466 = vmatprep.subr.bf16.mxu0 0
        %467 = vmatpush1.bf16.msra.mxu0 0
        %468 = vmatprep.subr.bf16.mxu0 0
        %469 = vmatpush1.bf16.msra.mxu0 %v452
        %470 = vmatprep.subr.bf16.mxu0 0
        %471 = vmatpush2.bf16.msra.mxu0 0
        %472 = vmatprep.subr.bf16.mxu0 0
        %473 = vmatpush2.bf16.msra.mxu0 0
        %474 = vmatprep.subr.bf16.mxu0 0
        %475 = vmatpush2.bf16.msra.mxu0 0
        %476 = vmatprep.subr.bf16.mxu0 0
        %477 = vmatpush2.bf16.msra.mxu0 0
        %478 = vmatprep.subr.bf16.mxu0 0
        %479 = vmatpush2.bf16.msra.mxu0 0
        %480 = vmatprep.subr.bf16.mxu0 0
        %481 = vmatpush2.bf16.msra.mxu0 0
        %482 = vmatprep.subr.bf16.mxu0 0
        %483 = vmatpush2.bf16.msra.mxu0 0
        %484 = vmatprep.subr.bf16.mxu0 0
        %485 = vmatpush2.bf16.msra.mxu0 0
        %486 = vmatprep.mubr.bf16.mxu0 0
        %487 = vmatmul.mubr.bf16.gmra.mxu0 %v448
        %v488 = vpop.f32.mrf.mxu0
        %v489 = vadd.f32 0.0, %v488
        %v490 = vpop.f32.mrf.mxu0
        %v491 = vpop.f32.mrf.mxu0
        %v492 = vpop.f32.mrf.mxu0
        %493 = vdwg.mxu0
        %v494 = vrcp.pop %v443
        %v495 = vmul.f32 %v489, %v494
        %497 = vrot.lane.b32.xlu0 %v383, 120
        %v498 = vpop.permute.xlu0 %497
        %499 = vrot.lane.b32.xlu0 %v384, 88
        %v500 = vpop.permute.xlu0 %499
        %v502 = vsel %vm388, %v498, 0
        %v505 = vsel %vm388, %v500, 0
        %507 = vmatprep.subr.bf16.mxu0 0
        %508 = vmatpush1.bf16.xpose.msra.mxu0 0
        %509 = vmatprep.subr.bf16.mxu0 0
        %510 = vmatpush1.bf16.xpose.msra.mxu0 0
        %511 = vmatprep.subr.bf16.mxu0 0
        %512 = vmatpush1.bf16.xpose.msra.mxu0 0
        %513 = vmatprep.subr.bf16.mxu0 0
        %514 = vmatpush1.bf16.xpose.msra.mxu0 0
        %515 = vmatprep.subr.bf16.mxu0 0
        %516 = vmatpush1.bf16.xpose.msra.mxu0 0
        %517 = vmatprep.subr.bf16.mxu0 0
        %518 = vmatpush1.bf16.xpose.msra.mxu0 0
        %519 = vmatprep.subr.bf16.mxu0 0
        %520 = vmatpush1.bf16.xpose.msra.mxu0 0
        %521 = vmatprep.subr.bf16.mxu0 0
        %522 = vmatpush1.bf16.xpose.msra.mxu0 %v505
        %523 = vmatprep.subr.bf16.mxu0 0
        %524 = vmatpush2.bf16.xpose.msra.mxu0 0
        %525 = vmatprep.subr.bf16.mxu0 0
        %526 = vmatpush2.bf16.xpose.msra.mxu0 0
        %527 = vmatprep.subr.bf16.mxu0 0
        %528 = vmatpush2.bf16.xpose.msra.mxu0 0
        %529 = vmatprep.subr.bf16.mxu0 0
        %530 = vmatpush2.bf16.xpose.msra.mxu0 0
        %531 = vmatprep.subr.bf16.mxu0 0
        %532 = vmatpush2.bf16.xpose.msra.mxu0 0
        %533 = vmatprep.subr.bf16.mxu0 0
        %534 = vmatpush2.bf16.xpose.msra.mxu0 0
        %535 = vmatprep.subr.bf16.mxu0 0
        %536 = vmatpush2.bf16.xpose.msra.mxu0 0
        %537 = vmatprep.subr.bf16.mxu0 0
        %538 = vmatpush2.bf16.xpose.msra.mxu0 0
        %539 = vmatprep.mubr.bf16.mxu0 0
        %540 = vmatmul.mubr.bf16.gmra.mxu0 %v502
        %v541 = vpop.f32.mrf.mxu0
        %v542 = vadd.f32 0.0, %v541
        %v543 = vpop.f32.mrf.mxu0
        %v544 = vpop.f32.mrf.mxu0
        %v545 = vpop.f32.mrf.mxu0
        %546 = vdwg.mxu0
        %v547 = vsel %vm388, %v542, -inf
        %548 = vmax.xlane.f32.xlu0 %v547
        %v549 = vpop.xlane.xlu0 %548
        %v550 = vsub.f32 %v542, %v549
        %v551 = vmul.f32 %v550, 1.442695
        %v552 = vpow.pop %v551
        %v553 = vsel %vm388, %v552, 0.0
        %554 = vadd.xlane.f32.xlu0 %v553
        %v555 = vpop.xlane.xlu0 %554
        %v556 = vpack.c.bf16 %v552, %v552
        %557 = vrot.lane.b32.xlu0 %v384, 56
        %v558 = vpop.permute.xlu0 %557
        %v560 = vsel %vm388, %v556, 0
        %v563 = vsel %vm450, %v558, 0
        %565 = vmatprep.subr.bf16.mxu0 0
        %566 = vmatpush1.bf16.msra.mxu0 0
        %567 = vmatprep.subr.bf16.mxu0 0
        %568 = vmatpush1.bf16.msra.mxu0 0
        %569 = vmatprep.subr.bf16.mxu0 0
        %570 = vmatpush1.bf16.msra.mxu0 0
        %571 = vmatprep.subr.bf16.mxu0 0
        %572 = vmatpush1.bf16.msra.mxu0 0
        %573 = vmatprep.subr.bf16.mxu0 0
        %574 = vmatpush1.bf16.msra.mxu0 0
        %575 = vmatprep.subr.bf16.mxu0 0
        %576 = vmatpush1.bf16.msra.mxu0 0
        %577 = vmatprep.subr.bf16.mxu0 0
        %578 = vmatpush1.bf16.msra.mxu0 0
        %579 = vmatprep.subr.bf16.mxu0 0
        %580 = vmatpush1.bf16.msra.mxu0 %v563
        %581 = vmatprep.subr.bf16.mxu0 0
        %582 = vmatpush2.bf16.msra.mxu0 0
        %583 = vmatprep.subr.bf16.mxu0 0
        %584 = vmatpush2.bf16.msra.mxu0 0
        %585 = vmatprep.subr.bf16.mxu0 0
        %586 = vmatpush2.bf16.msra.mxu0 0
        %587 = vmatprep.subr.bf16.mxu0 0
        %588 = vmatpush2.bf16.msra.mxu0 0
        %589 = vmatprep.subr.bf16.mxu0 0
        %590 = vmatpush2.bf16.msra.mxu0 0
        %591 = vmatprep.subr.bf16.mxu0 0
        %592 = vmatpush2.bf16.msra.mxu0 0
        %593 = vmatprep.subr.bf16.mxu0 0
        %594 = vmatpush2.bf16.msra.mxu0 0
        %595 = vmatprep.subr.bf16.mxu0 0
        %596 = vmatpush2.bf16.msra.mxu0 0
        %597 = vmatprep.mubr.bf16.mxu0 0
        %598 = vmatmul.mubr.bf16.gmra.mxu0 %v560
        %v599 = vpop.f32.mrf.mxu0
        %v600 = vadd.f32 0.0, %v599
        %v601 = vpop.f32.mrf.mxu0
        %v602 = vpop.f32.mrf.mxu0
        %v603 = vpop.f32.mrf.mxu0
        %604 = vdwg.mxu0
        %v605 = vrcp.pop %v555
        %v606 = vmul.f32 %v600, %v605
        %607 = vrot.lane.b32.xlu0 %v383, 112
        %v608 = vpop.permute.xlu0 %607
        %609 = vrot.lane.b32.xlu0 %v384, 80
        %v610 = vpop.permute.xlu0 %609
        %v612 = vsel %vm388, %v608, 0
        %v615 = vsel %vm388, %v610, 0
        %617 = vmatprep.subr.bf16.mxu0 0
        %618 = vmatpush1.bf16.xpose.msra.mxu0 0
        %619 = vmatprep.subr.bf16.mxu0 0
        %620 = vmatpush1.bf16.xpose.msra.mxu0 0
        %621 = vmatprep.subr.bf16.mxu0 0
        %622 = vmatpush1.bf16.xpose.msra.mxu0 0
        %623 = vmatprep.subr.bf16.mxu0 0
        %624 = vmatpush1.bf16.xpose.msra.mxu0 0
        %625 = vmatprep.subr.bf16.mxu0 0
        %626 = vmatpush1.bf16.xpose.msra.mxu0 0
        %627 = vmatprep.subr.bf16.mxu0 0
        %628 = vmatpush1.bf16.xpose.msra.mxu0 0
        %629 = vmatprep.subr.bf16.mxu0 0
        %630 = vmatpush1.bf16.xpose.msra.mxu0 0
        %631 = vmatprep.subr.bf16.mxu0 0
        %632 = vmatpush1.bf16.xpose.msra.mxu0 %v615
        %633 = vmatprep.subr.bf16.mxu0 0
        %634 = vmatpush2.bf16.xpose.msra.mxu0 0
        %635 = vmatprep.subr.bf16.mxu0 0
        %636 = vmatpush2.bf16.xpose.msra.mxu0 0
        %637 = vmatprep.subr.bf16.mxu0 0
        %638 = vmatpush2.bf16.xpose.msra.mxu0 0
        %639 = vmatprep.subr.bf16.mxu0 0
        %640 = vmatpush2.bf16.xpose.msra.mxu0 0
        %641 = vmatprep.subr.bf16.mxu0 0
        %642 = vmatpush2.bf16.xpose.msra.mxu0 0
        %643 = vmatprep.subr.bf16.mxu0 0
        %644 = vmatpush2.bf16.xpose.msra.mxu0 0
        %645 = vmatprep.subr.bf16.mxu0 0
        %646 = vmatpush2.bf16.xpose.msra.mxu0 0
        %647 = vmatprep.subr.bf16.mxu0 0
        %648 = vmatpush2.bf16.xpose.msra.mxu0 0
        %649 = vmatprep.mubr.bf16.mxu0 0
        %650 = vmatmul.mubr.bf16.gmra.mxu0 %v612
        %v651 = vpop.f32.mrf.mxu0
        %v652 = vadd.f32 0.0, %v651
        %v653 = vpop.f32.mrf.mxu0
        %v654 = vpop.f32.mrf.mxu0
        %v655 = vpop.f32.mrf.mxu0
        %656 = vdwg.mxu0
        %v657 = vsel %vm388, %v652, -inf
        %658 = vmax.xlane.f32.xlu0 %v657
        %v659 = vpop.xlane.xlu0 %658
        %v660 = vsub.f32 %v652, %v659
        %v661 = vmul.f32 %v660, 1.442695
        %v662 = vpow.pop %v661
        %v663 = vsel %vm388, %v662, 0.0
        %664 = vadd.xlane.f32.xlu0 %v663
        %v665 = vpop.xlane.xlu0 %664
        %v666 = vpack.c.bf16 %v662, %v662
        %667 = vrot.lane.b32.xlu0 %v384, 48
        %v668 = vpop.permute.xlu0 %667
        %v670 = vsel %vm388, %v666, 0
        %v673 = vsel %vm450, %v668, 0
        %675 = vmatprep.subr.bf16.mxu0 0
        %676 = vmatpush1.bf16.msra.mxu0 0
        %677 = vmatprep.subr.bf16.mxu0 0
        %678 = vmatpush1.bf16.msra.mxu0 0
        %679 = vmatprep.subr.bf16.mxu0 0
        %680 = vmatpush1.bf16.msra.mxu0 0
        %681 = vmatprep.subr.bf16.mxu0 0
        %682 = vmatpush1.bf16.msra.mxu0 0
        %683 = vmatprep.subr.bf16.mxu0 0
        %684 = vmatpush1.bf16.msra.mxu0 0
        %685 = vmatprep.subr.bf16.mxu0 0
        %686 = vmatpush1.bf16.msra.mxu0 0
        %687 = vmatprep.subr.bf16.mxu0 0
        %688 = vmatpush1.bf16.msra.mxu0 0
        %689 = vmatprep.subr.bf16.mxu0 0
        %690 = vmatpush1.bf16.msra.mxu0 %v673
        %691 = vmatprep.subr.bf16.mxu0 0
        %692 = vmatpush2.bf16.msra.mxu0 0
        %693 = vmatprep.subr.bf16.mxu0 0
        %694 = vmatpush2.bf16.msra.mxu0 0
        %695 = vmatprep.subr.bf16.mxu0 0
        %696 = vmatpush2.bf16.msra.mxu0 0
        %697 = vmatprep.subr.bf16.mxu0 0
        %698 = vmatpush2.bf16.msra.mxu0 0
        %699 = vmatprep.subr.bf16.mxu0 0
        %700 = vmatpush2.bf16.msra.mxu0 0
        %701 = vmatprep.subr.bf16.mxu0 0
        %702 = vmatpush2.bf16.msra.mxu0 0
        %703 = vmatprep.subr.bf16.mxu0 0
        %704 = vmatpush2.bf16.msra.mxu0 0
        %705 = vmatprep.subr.bf16.mxu0 0
        %706 = vmatpush2.bf16.msra.mxu0 0
        %707 = vmatprep.mubr.bf16.mxu0 0
        %708 = vmatmul.mubr.bf16.gmra.mxu0 %v670
        %v709 = vpop.f32.mrf.mxu0
        %v710 = vadd.f32 0.0, %v709
        %v711 = vpop.f32.mrf.mxu0
        %v712 = vpop.f32.mrf.mxu0
        %v713 = vpop.f32.mrf.mxu0
        %714 = vdwg.mxu0
        %v715 = vrcp.pop %v665
        %v716 = vmul.f32 %v710, %v715
        %717 = vrot.lane.b32.xlu0 %v383, 104
        %v718 = vpop.permute.xlu0 %717
        %719 = vrot.lane.b32.xlu0 %v384, 72
        %v720 = vpop.permute.xlu0 %719
        %v722 = vsel %vm388, %v718, 0
        %v725 = vsel %vm388, %v720, 0
        %727 = vmatprep.subr.bf16.mxu0 0
        %728 = vmatpush1.bf16.xpose.msra.mxu0 0
        %729 = vmatprep.subr.bf16.mxu0 0
        %730 = vmatpush1.bf16.xpose.msra.mxu0 0
        %731 = vmatprep.subr.bf16.mxu0 0
        %732 = vmatpush1.bf16.xpose.msra.mxu0 0
        %733 = vmatprep.subr.bf16.mxu0 0
        %734 = vmatpush1.bf16.xpose.msra.mxu0 0
        %735 = vmatprep.subr.bf16.mxu0 0
        %736 = vmatpush1.bf16.xpose.msra.mxu0 0
        %737 = vmatprep.subr.bf16.mxu0 0
        %738 = vmatpush1.bf16.xpose.msra.mxu0 0
        %739 = vmatprep.subr.bf16.mxu0 0
        %740 = vmatpush1.bf16.xpose.msra.mxu0 0
        %741 = vmatprep.subr.bf16.mxu0 0
        %742 = vmatpush1.bf16.xpose.msra.mxu0 %v725
        %743 = vmatprep.subr.bf16.mxu0 0
        %744 = vmatpush2.bf16.xpose.msra.mxu0 0
        %745 = vmatprep.subr.bf16.mxu0 0
        %746 = vmatpush2.bf16.xpose.msra.mxu0 0
        %747 = vmatprep.subr.bf16.mxu0 0
        %748 = vmatpush2.bf16.xpose.msra.mxu0 0
        %749 = vmatprep.subr.bf16.mxu0 0
        %750 = vmatpush2.bf16.xpose.msra.mxu0 0
        %751 = vmatprep.subr.bf16.mxu0 0
        %752 = vmatpush2.bf16.xpose.msra.mxu0 0
        %753 = vmatprep.subr.bf16.mxu0 0
        %754 = vmatpush2.bf16.xpose.msra.mxu0 0
        %755 = vmatprep.subr.bf16.mxu0 0
        %756 = vmatpush2.bf16.xpose.msra.mxu0 0
        %757 = vmatprep.subr.bf16.mxu0 0
        %758 = vmatpush2.bf16.xpose.msra.mxu0 0
        %759 = vmatprep.mubr.bf16.mxu0 0
        %760 = vmatmul.mubr.bf16.gmra.mxu0 %v722
        %v761 = vpop.f32.mrf.mxu0
        %v762 = vadd.f32 0.0, %v761
        %v763 = vpop.f32.mrf.mxu0
        %v764 = vpop.f32.mrf.mxu0
        %v765 = vpop.f32.mrf.mxu0
        %766 = vdwg.mxu0
        %v767 = vsel %vm388, %v762, -inf
        %768 = vmax.xlane.f32.xlu0 %v767
        %v769 = vpop.xlane.xlu0 %768
        %v770 = vsub.f32 %v762, %v769
        %v771 = vmul.f32 %v770, 1.442695
        %v772 = vpow.pop %v771
        %v773 = vsel %vm388, %v772, 0.0
        %774 = vadd.xlane.f32.xlu0 %v773
        %v775 = vpop.xlane.xlu0 %774
        %v776 = vpack.c.bf16 %v772, %v772
        %777 = vrot.lane.b32.xlu0 %v384, 40
        %v778 = vpop.permute.xlu0 %777
        %v780 = vsel %vm388, %v776, 0
        %v783 = vsel %vm450, %v778, 0
        %785 = vmatprep.subr.bf16.mxu0 0
        %786 = vmatpush1.bf16.msra.mxu0 0
        %787 = vmatprep.subr.bf16.mxu0 0
        %788 = vmatpush1.bf16.msra.mxu0 0
        %789 = vmatprep.subr.bf16.mxu0 0
        %790 = vmatpush1.bf16.msra.mxu0 0
        %791 = vmatprep.subr.bf16.mxu0 0
        %792 = vmatpush1.bf16.msra.mxu0 0
        %793 = vmatprep.subr.bf16.mxu0 0
        %794 = vmatpush1.bf16.msra.mxu0 0
        %795 = vmatprep.subr.bf16.mxu0 0
        %796 = vmatpush1.bf16.msra.mxu0 0
        %797 = vmatprep.subr.bf16.mxu0 0
        %798 = vmatpush1.bf16.msra.mxu0 0
        %799 = vmatprep.subr.bf16.mxu0 0
        %800 = vmatpush1.bf16.msra.mxu0 %v783
        %801 = vmatprep.subr.bf16.mxu0 0
        %802 = vmatpush2.bf16.msra.mxu0 0
        %803 = vmatprep.subr.bf16.mxu0 0
        %804 = vmatpush2.bf16.msra.mxu0 0
        %805 = vmatprep.subr.bf16.mxu0 0
        %806 = vmatpush2.bf16.msra.mxu0 0
        %807 = vmatprep.subr.bf16.mxu0 0
        %808 = vmatpush2.bf16.msra.mxu0 0
        %809 = vmatprep.subr.bf16.mxu0 0
        %810 = vmatpush2.bf16.msra.mxu0 0
        %811 = vmatprep.subr.bf16.mxu0 0
        %812 = vmatpush2.bf16.msra.mxu0 0
        %813 = vmatprep.subr.bf16.mxu0 0
        %814 = vmatpush2.bf16.msra.mxu0 0
        %815 = vmatprep.subr.bf16.mxu0 0
        %816 = vmatpush2.bf16.msra.mxu0 0
        %817 = vmatprep.mubr.bf16.mxu0 0
        %818 = vmatmul.mubr.bf16.gmra.mxu0 %v780
        %v819 = vpop.f32.mrf.mxu0
        %v820 = vadd.f32 0.0, %v819
        %v821 = vpop.f32.mrf.mxu0
        %v822 = vpop.f32.mrf.mxu0
        %v823 = vpop.f32.mrf.mxu0
        %824 = vdwg.mxu0
        %v825 = vrcp.pop %v775
        %v826 = vmul.f32 %v820, %v825
        %828 = vrot.lane.b32.xlu0 %v606, 8
        %v829 = vpop.permute.xlu0 %828
        %832 = vrot.lane.b32.xlu0 %v716, 16
        %v833 = vpop.permute.xlu0 %832
        %836 = vrot.lane.b32.xlu0 %v826, 24
        %v837 = vpop.permute.xlu0 %836
        %v839 = vsel %vm388, %v495, %v829
        %vm840 = vcmask 130048
        %v841 = vsel %vm840, %v839, %v833
        %vm842 = vcmask 195584
        %v843 = vsel %vm842, %v841, %v837
        %v844 = vld [vmem:[%s3] sm:$0xf]
        %v845 = vld [vmem:[%s3 + $0x4] sm:$0xf]
        %v846 = vld [vmem:[%s3 + $0x8] sm:$0xf]
        %v847 = vld [vmem:[%s3 + $0xc] sm:$0xf]
        %v848 = vpack.c.bf16 %v843, %v843
        %v849 = vld [vmem:[#allocation2] sm:$0x1]
        %v851 = vlaneseq
        %v852 = vshrl.u32 %v851, 7
        %v853 = vsub.s32 0, %v852
        %v854 = vrot.slane %v849, %v853
        %v860 = vunpack.c.l.b16 %v844
        %v861 = vunpack.c.l.b16 %v845
        %v862 = vunpack.c.l.b16 %v846
        %v863 = vunpack.c.l.b16 %v847
        %v864 = vpack.c.b16 %v861, %v860
        %v865 = vpack.c.b16 %v863, %v862
        %v869 = vsel %vm338, %v848, 0
        %871 = vmatprep.subr.bf16.mxu0 0
        %872 = vmatpush1.bf16.msra.mxu0 0
        %873 = vmatprep.subr.bf16.mxu0 0
        %874 = vmatpush1.bf16.msra.mxu0 0
        %875 = vmatprep.subr.bf16.mxu0 0
        %876 = vmatpush1.bf16.msra.mxu0 0
        %877 = vmatprep.subr.bf16.mxu0 0
        %878 = vmatpush1.bf16.msra.mxu0 0
        %879 = vmatprep.subr.bf16.mxu0 0
        %880 = vmatpush1.bf16.msra.mxu0 0
        %881 = vmatprep.subr.bf16.mxu0 0
        %882 = vmatpush1.bf16.msra.mxu0 0
        %883 = vmatprep.subr.bf16.mxu0 0
        %884 = vmatpush1.bf16.msra.mxu0 %v865
        %885 = vmatprep.subr.bf16.mxu0 0
        %886 = vmatpush1.bf16.msra.mxu0 %v864
        %887 = vmatprep.subr.bf16.mxu0 0
        %888 = vmatpush2.bf16.msra.mxu0 0
        %889 = vmatprep.subr.bf16.mxu0 0
        %890 = vmatpush2.bf16.msra.mxu0 0
        %891 = vmatprep.subr.bf16.mxu0 0
        %892 = vmatpush2.bf16.msra.mxu0 0
        %893 = vmatprep.subr.bf16.mxu0 0
        %894 = vmatpush2.bf16.msra.mxu0 0
        %895 = vmatprep.subr.bf16.mxu0 0
        %896 = vmatpush2.bf16.msra.mxu0 0
        %897 = vmatprep.subr.bf16.mxu0 0
        %898 = vmatpush2.bf16.msra.mxu0 0
        %899 = vmatprep.subr.bf16.mxu0 0
        %900 = vmatpush2.bf16.msra.mxu0 0
        %901 = vmatprep.subr.bf16.mxu0 0
        %902 = vmatpush2.bf16.msra.mxu0 0
        %903 = vmatprep.mubr.bf16.mxu0 0
        %904 = vmatmul.mubr.bf16.gmra.mxu0 %v869
        %v905 = vpop.f32.mrf.mxu0
        %v906 = vadd.f32 %v854, %v905
        %v907 = vpop.f32.mrf.mxu0
        %v908 = vpop.f32.mrf.mxu0
        %v909 = vpop.f32.mrf.mxu0
        %910 = vdwg.mxu0
        %v911 = vadd.f32 %v313, %v906
        %v912 = vld [vmem:[#allocation4] sm:$0x1]
        %v913 = vld [vmem:[#allocation6] sm:$0x1]
        %v914 = vsel %vm338, %v911, 0.0
        %915 = vadd.xlane.f32.xlu0 %v914
        %v916 = vpop.xlane.xlu0 %915
        %v917 = vrcp.pop 32.0
        %v918 = vmul.f32 %v916, %v917
        %v919 = vsub.f32 %v911, %v918
        %v920 = vmul.f32 %v919, %v919
        %v921 = vsel %vm338, %v920, 0.0
        %922 = vadd.xlane.f32.xlu0 %v921
        %v923 = vpop.xlane.xlu0 %922
        %v924 = vmul.f32 %v923, %v917
        %v925 = vadd.f32 %v924, 1e-05
        %v926 = vrsqrt.pop %v925
        %v927 = vmul.f32 %v919, %v926
        %v929 = vlaneseq
        %v930 = vshrl.u32 %v929, 7
        %v931 = vsub.s32 0, %v930
        %v932 = vrot.slane %v912, %v931
        %v934 = vmul.f32 %v927, %v932
        %v936 = vlaneseq
        %v937 = vshrl.u32 %v936, 7
        %v938 = vsub.s32 0, %v937
        %v939 = vrot.slane %v913, %v938
        %v941 = vadd.f32 %v934, %v939
        %942 = vst.msk [vmem:[%s311] sm:$0xff] %vm338, %v941
        %p943 = scmp.lt.s32.totalorder %s20, 1
        %s944 = scalar_select %p943, %s20, 1
        %s945 = smul.addr %s944, 8
        %s946 = scalar_lea.vmem %s7, %s945
        // Predicated region
        $region61: #{decoder_layer.3} parent=47 // pred_check
          %p947 = pneg %p190
        $region62: #{decoder_layer.3} parent=47 // pred_check_branch
          %949 = sbr.rel (%p947) target = $region64
        $region63: #{decoder_layer.3} parent=47 // pred_region
          _
        $region64: #{decoder_layer.3} parent=47 // pred_fallthru
          _
      $region48: #{decoder_layer.3} parent=5 // pred_fallthru
        _
      %p950 = scmp.le.s32.totalorder 2, %s15
      // Predicated region
      $region65: #{decoder_layer.3} parent=5 // pred_check
        %p951 = pneg %p950
      $region66: #{decoder_layer.3} parent=5 // pred_check_branch
        %953 = sbr.rel (%p951) target = $region68
      $region67: #{decoder_layer.3} parent=5 // pred_region
        %s954 = ssub.s32 %s15, 2
        // Predicated region
        $region69: #{decoder_layer.3} parent=67 // pred_check
          %p955 = pneg %p196
        $region70: #{decoder_layer.3} parent=67 // pred_check_branch
          %957 = sbr.rel (%p955) target = $region72
        $region71: #{decoder_layer.3} parent=67 // pred_region
          %p958 = scmp.lt.s32.totalorder %s21, 1
          %s959 = scalar_select %p958, %s21, 1
          %s960 = smul.addr %s959, 8
          %s961 = scalar_lea.vmem %s7, %s960
        $region72: #{decoder_layer.3} parent=67 // pred_fallthru
          _
      $region68: #{decoder_layer.3} parent=5 // pred_fallthru
        _
    $region6: #{decoder_layer.3} parent=1 // loop_footer
      %s19 = sadd.s32 1, %s15
    $region7: #{decoder_layer.3} parent=1 // loop_footer_branch
      %14 = sbr.rel target = $region3
    $region8: #{decoder_layer.3} parent=1 // loop_exit
      _
    %962 = vsyncpa [#allocation3], 1
    %s963 = scalar_lea.sflag [#allocation3], 1
    %964 = vsyncpa %s963, 1
    %965 = vsyncpa [#allocation5], 1

// kernel: decoder_layer.5
$region0: #{decoder_layer.5}
  #allocation0 [shape = 'u32[]', space=smem, size = 0x4, offset = 0x4, fixed_abs, tag = 'smem constant byte address 0x4 - core index']
  #allocation1 [shape = 'u32[144,128]{1,0:T(1,128)}', space=vmem, size = 0x12000, scoped, tag = 'internal scratch']
  #allocation2 [shape = 'f32[16,32]{1,0:T(8,128)}', space=vmem, size = 0x2000, scoped, tag = 'scratch operand']
  %s0 = inlined_call_operand.vmem [shape: f32[16,32], index: 0, kind: input, shape index: {}]
  %s1 = inlined_call_operand.vmem [shape: bf16[32,64], index: 1, kind: input, shape index: {}]
  %s2 = inlined_call_operand.vmem [shape: f32[1,64], index: 2, kind: input, shape index: {}]
  %s3 = inlined_call_operand.vmem [shape: bf16[64,32], index: 3, kind: input, shape index: {}]
  %s4 = inlined_call_operand.vmem [shape: f32[1,32], index: 4, kind: input, shape index: {}]
  %s5 = inlined_call_operand.vmem [shape: f32[1,32], index: 5, kind: input, shape index: {}]
  %s6 = inlined_call_operand.vmem [shape: f32[1,32], index: 6, kind: input, shape index: {}]
  %s7 = inlined_call_operand.hbm [shape: f32[16,32], index: 7, kind: output, shape index: {}]
  %s8 = sld [smem:[#allocation0]]
  $region46: #{decoder_layer.5} parent=0
    _
  %s10 = ssub.s32 1, %s8
  %s11 = scalar_select 0, %s10, %s8
  $region1: #{decoder_layer.5} parent=0
    #allocation3 [shape = 'u8[8192]{0}', space=vmem, size = 0x2000, scoped, tag = 'output window, operand 0, single buffered']
    #allocation4 [shape = 's32[1]{0}', space=sflag, size = 0x4, scoped, tag = 'scoped memory for decoder_layer.5']
    %12 = vsyncpa [#allocation4], 0
    // Predicated region
    $region2: #{decoder_layer.5} parent=1 // pred_check
      _
    $region3: #{decoder_layer.5} parent=1 // pred_check_branch
      %14 = sbr.rel (0) target = $region5
    $region4: #{decoder_layer.5} parent=1 // pred_region
      _
    $region5: #{decoder_layer.5} parent=1 // pred_fallthru
      _
    // Predicated region
    $region6: #{decoder_layer.5} parent=1 // pred_check
      _
    $region7: #{decoder_layer.5} parent=1 // pred_check_branch
      %16 = sbr.rel (0) target = $region9
    $region8: #{decoder_layer.5} parent=1 // pred_region
      _
    $region9: #{decoder_layer.5} parent=1 // pred_fallthru
      _
    // Predicated region
    $region10: #{decoder_layer.5} parent=1 // pred_check
      _
    $region11: #{decoder_layer.5} parent=1 // pred_check_branch
      %18 = sbr.rel (0) target = $region13
    $region12: #{decoder_layer.5} parent=1 // pred_region
      _
    $region13: #{decoder_layer.5} parent=1 // pred_fallthru
      _
    // Predicated region
    $region14: #{decoder_layer.5} parent=1 // pred_check
      _
    $region15: #{decoder_layer.5} parent=1 // pred_check_branch
      %20 = sbr.rel (0) target = $region17
    $region16: #{decoder_layer.5} parent=1 // pred_region
      _
    $region17: #{decoder_layer.5} parent=1 // pred_fallthru
      _
    // Predicated region
    $region18: #{decoder_layer.5} parent=1 // pred_check
      _
    $region19: #{decoder_layer.5} parent=1 // pred_check_branch
      %22 = sbr.rel (0) target = $region21
    $region20: #{decoder_layer.5} parent=1 // pred_region
      _
    $region21: #{decoder_layer.5} parent=1 // pred_fallthru
      _
    // Predicated region
    $region22: #{decoder_layer.5} parent=1 // pred_check
      _
    $region23: #{decoder_layer.5} parent=1 // pred_check_branch
      %24 = sbr.rel (0) target = $region25
    $region24: #{decoder_layer.5} parent=1 // pred_region
      _
    $region25: #{decoder_layer.5} parent=1 // pred_fallthru
      _
    // Predicated region
    $region26: #{decoder_layer.5} parent=1 // pred_check
      _
    $region27: #{decoder_layer.5} parent=1 // pred_check_branch
      %26 = sbr.rel (0) target = $region29
    $region28: #{decoder_layer.5} parent=1 // pred_region
      _
    $region29: #{decoder_layer.5} parent=1 // pred_fallthru
      _
    %p28 = scmp.eq.s32.totalorder 0, 0
    // Predicated region
    $region30: #{decoder_layer.5} parent=1 // pred_check
      %p29 = pneg %p28
    $region31: #{decoder_layer.5} parent=1 // pred_check_branch
      %31 = sbr.rel (%p29) target = $region33
    $region32: #{decoder_layer.5} parent=1 // pred_region
      %vm32 = vcmask 261120
      %33 = vst.msk [vmem:[#allocation2] sm:$0xff] %vm32, 0.0
      %34 = vst.msk [vmem:[#allocation2 + $0x8] sm:$0xff] %vm32, 0.0
    $region33: #{decoder_layer.5} parent=1 // pred_fallthru
      _
    %v35 = vld [vmem:[%s0] sm:$0xff]
    %v36 = vld [vmem:[%s0 + $0x8] sm:$0xff]
    %v37 = vld [vmem:[%s1] sm:$0xf]
    %v38 = vld [vmem:[%s1 + $0x4] sm:$0xf]
    %v39 = vld [vmem:[%s1 + $0x8] sm:$0xf]
    %v40 = vld [vmem:[%s1 + $0xc] sm:$0xf]
    %v41 = vpack.c.bf16 %v36, %v35
    %v42 = vld [vmem:[%s2] sm:$0x1]
    %v44 = vlaneseq
    %v45 = vshrl.u32 %v44, 7
    %v46 = vsub.s32 0, %v45
    %v47 = vrot.slane %v42, %v46
    %v53 = vunpack.c.l.b16 %v37
    %v54 = vunpack.c.l.b16 %v38
    %v55 = vunpack.c.l.b16 %v39
    %v56 = vunpack.c.l.b16 %v40
    %v57 = vpack.c.b16 %v54, %v53
    %v58 = vpack.c.b16 %v56, %v55
    %vm61 = vcmask 261120
    %v63 = vsel %vm61, %v41, 0
    %65 = vmatprep.subr.bf16.mxu0 0
    %66 = vmatpush1.bf16.msra.mxu0 0
    %67 = vmatprep.subr.bf16.mxu0 0
    %68 = vmatpush1.bf16.msra.mxu0 0
    %69 = vmatprep.subr.bf16.mxu0 0
    %70 = vmatpush1.bf16.msra.mxu0 0
    %71 = vmatprep.subr.bf16.mxu0 0
    %72 = vmatpush1.bf16.msra.mxu0 0
    %73 = vmatprep.subr.bf16.mxu0 0
    %74 = vmatpush1.bf16.msra.mxu0 0
    %75 = vmatprep.subr.bf16.mxu0 0
    %76 = vmatpush1.bf16.msra.mxu0 0
    %77 = vmatprep.subr.bf16.mxu0 0
    %78 = vmatpush1.bf16.msra.mxu0 %v58
    %79 = vmatprep.subr.bf16.mxu0 0
    %80 = vmatpush1.bf16.msra.mxu0 %v57
    %81 = vmatprep.subr.bf16.mxu0 0
    %82 = vmatpush2.bf16.msra.mxu0 0
    %83 = vmatprep.subr.bf16.mxu0 0
    %84 = vmatpush2.bf16.msra.mxu0 0
    %85 = vmatprep.subr.bf16.mxu0 0
    %86 = vmatpush2.bf16.msra.mxu0 0
    %87 = vmatprep.subr.bf16.mxu0 0
    %88 = vmatpush2.bf16.msra.mxu0 0
    %89 = vmatprep.subr.bf16.mxu0 0
    %90 = vmatpush2.bf16.msra.mxu0 0
    %91 = vmatprep.subr.bf16.mxu0 0
    %92 = vmatpush2.bf16.msra.mxu0 0
    %93 = vmatprep.subr.bf16.mxu0 0
    %94 = vmatpush2.bf16.msra.mxu0 0
    %95 = vmatprep.subr.bf16.mxu0 0
    %96 = vmatpush2.bf16.msra.mxu0 0
    %97 = vmatprep.mubr.bf16.mxu0 0
    %98 = vmatmul.mubr.bf16.gmra.mxu0 %v63
    %v99 = vpop.f32.mrf.mxu0
    %v100 = vadd.f32 %v47, %v99
    %v101 = vpop.f32.mrf.mxu0
    %v102 = vpop.f32.mrf.mxu0
    %v103 = vadd.f32 %v47, %v102
    %v104 = vpop.f32.mrf.mxu0
    %105 = vdwg.mxu0
    %v106 = vmax.f32 %v100, 0.0
    %v107 = vmax.f32 %v103, 0.0
    %v108 = vld [vmem:[#allocation2] sm:$0xff]
    %v109 = vld [vmem:[#allocation2 + $0x8] sm:$0xff]
    %v110 = vld [vmem:[%s3] sm:$0xf]
    %v111 = vld [vmem:[%s3 + $0x4] sm:$0xf]
    %v112 = vld [vmem:[%s3 + $0x8] sm:$0xf]
    %v113 = vld [vmem:[%s3 + $0xc] sm:$0xf]
    %v114 = vld [vmem:[%s3 + $0x10] sm:$0xf]
    %v115 = vld [vmem:[%s3 + $0x14] sm:$0xf]
    %v116 = vld [vmem:[%s3 + $0x18] sm:$0xf]
    %v117 = vld [vmem:[%s3 + $0x1c] sm:$0xf]
    %v118 = vpack.c.bf16 %v107, %v106
    %v127 = vunpack.c.l.b16 %v110
    %v128 = vunpack.c.l.b16 %v111
    %v129 = vunpack.c.l.b16 %v112
    %v130 = vunpack.c.l.b16 %v113
    %v131 = vunpack.c.l.b16 %v114
    %v132 = vunpack.c.l.b16 %v115
    %v133 = vunpack.c.l.b16 %v116
    %v134 = vunpack.c.l.b16 %v117
    %v135 = vpack.c.b16 %v128, %v127
    %v136 = vpack.c.b16 %v130, %v129
    %v137 = vpack.c.b16 %v132, %v131
    %v138 = vpack.c.b16 %v134, %v133
    %vm143 = vcmask 523264
    %v145 = vsel %vm143, %v118, 0
    %147 = vmatprep.subr.bf16.mxu0 0
    %148 = vmatpush1.bf16.msra.mxu0 0
    %149 = vmatprep.subr.bf16.mxu0 0
    %150 = vmatpush1.bf16.msra.mxu0 0
    %151 = vmatprep.subr.bf16.mxu0 0
    %152 = vmatpush1.bf16.msra.mxu0 0
    %153 = vmatprep.subr.bf16.mxu0 0
    %154 = vmatpush1.bf16.msra.mxu0 0
    %155 = vmatprep.subr.bf16.mxu0 0
    %156 = vmatpush1.bf16.msra.mxu0 %v138
    %157 = vmatprep.subr.bf16.mxu0 0
    %158 = vmatpush1.bf16.msra.mxu0 %v137
    %159 = vmatprep.subr.bf16.mxu0 0
    %160 = vmatpush1.bf16.msra.mxu0 %v136
    %161 = vmatprep.subr.bf16.mxu0 0
    %162 = vmatpush1.bf16.msra.mxu0 %v135
    %163 = vmatprep.subr.bf16.mxu0 0
    %164 = vmatpush2.bf16.msra.mxu0 0
    %165 = vmatprep.subr.bf16.mxu0 0
    %166 = vmatpush2.bf16.msra.mxu0 0
    %167 = vmatprep.subr.bf16.mxu0 0
    %168 = vmatpush2.bf16.msra.mxu0 0
    %169 = vmatprep.subr.bf16.mxu0 0
    %170 = vmatpush2.bf16.msra.mxu0 0
    %171 = vmatprep.subr.bf16.mxu0 0
    %172 = vmatpush2.bf16.msra.mxu0 0
    %173 = vmatprep.subr.bf16.mxu0 0
    %174 = vmatpush2.bf16.msra.mxu0 0
    %175 = vmatprep.subr.bf16.mxu0 0
    %176 = vmatpush2.bf16.msra.mxu0 0
    %177 = vmatprep.subr.bf16.mxu0 0
    %178 = vmatpush2.bf16.msra.mxu0 0
    %179 = vmatprep.mubr.bf16.mxu0 0
    %180 = vmatmul.mubr.bf16.gmra.mxu0 %v145
    %v181 = vpop.f32.mrf.mxu0
    %v182 = vadd.f32 0.0, %v181
    %v183 = vpop.f32.mrf.mxu0
    %v184 = vpop.f32.mrf.mxu0
    %v185 = vadd.f32 0.0, %v184
    %v186 = vpop.f32.mrf.mxu0
    %187 = vdwg.mxu0
    %v188 = vadd.f32 %v108, %v182
    %v189 = vadd.f32 %v109, %v185
    %190 = vst.msk [vmem:[#allocation2] sm:$0xff] %vm61, %v188
    %191 = vst.msk [vmem:[#allocation2 + $0x8] sm:$0xff] %vm61, %v189
    // Predicated region
    $region34: #{decoder_layer.5} parent=1 // pred_check
      %p192 = pneg %p28
    $region35: #{decoder_layer.5} parent=1 // pred_check_branch
      %194 = sbr.rel (%p192) target = $region37
    $region36: #{decoder_layer.5} parent=1 // pred_region
      %v195 = vld [vmem:[#allocation2] sm:$0xff]
      %v196 = vld [vmem:[#allocation2 + $0x8] sm:$0xff]
      %v197 = vld [vmem:[%s4] sm:$0x1]
      %v199 = vlaneseq
      %v200 = vshrl.u32 %v199, 7
      %v201 = vsub.s32 0, %v200
      %v202 = vrot.slane %v197, %v201
      %v204 = vadd.f32 %v195, %v202
      %v205 = vadd.f32 %v196, %v202
      %v206 = vadd.f32 %v35, %v204
      %v207 = vadd.f32 %v36, %v205
      %v208 = vld [vmem:[%s5] sm:$0x1]
      %v209 = vld [vmem:[%s6] sm:$0x1]
      %v210 = vsel %vm61, %v206, 0.0
      %211 = vadd.xlane.f32.xlu0 %v210
      %v212 = vpop.xlane.xlu0 %211
      %v213 = vsel %vm61, %v207, 0.0
      %214 = vadd.xlane.f32.xlu0 %v213
      %v215 = vpop.xlane.xlu0 %214
      %v216 = vrcp.pop 32.0
      %v217 = vmul.f32 %v212, %v216
      %v218 = vmul.f32 %v215, %v216
      %v219 = vsub.f32 %v206, %v217
      %v220 = vsub.f32 %v207, %v218
      %v221 = vmul.f32 %v219, %v219
      %v222 = vmul.f32 %v220, %v220
      %v223 = vsel %vm61, %v221, 0.0
      %224 = vadd.xlane.f32.xlu0 %v223
      %v225 = vpop.xlane.xlu0 %224
      %v226 = vsel %vm61, %v222, 0.0
      %227 = vadd.xlane.f32.xlu0 %v226
      %v228 = vpop.xlane.xlu0 %227
      %v229 = vmul.f32 %v225, %v216
      %v230 = vmul.f32 %v228, %v216
      %v231 = vadd.f32 %v229, 1e-05
      %v232 = vadd.f32 %v230, 1e-05
      %v233 = vrsqrt.pop %v231
      %v234 = vrsqrt.pop %v232
      %v235 = vmul.f32 %v219, %v233
      %v236 = vmul.f32 %v220, %v234
      %v238 = vlaneseq
      %v239 = vshrl.u32 %v238, 7
      %v240 = vsub.s32 0, %v239
      %v241 = vrot.slane %v208, %v240
      %v243 = vmul.f32 %v235, %v241
      %v244 = vmul.f32 %v236, %v241
      %v246 = vlaneseq
      %v247 = vshrl.u32 %v246, 7
      %v248 = vsub.s32 0, %v247
      %v249 = vrot.slane %v209, %v248
      %v251 = vadd.f32 %v243, %v249
      %v252 = vadd.f32 %v244, %v249
      %253 = vst.msk [vmem:[#allocation3] sm:$0xff] %vm61, %v251
      %254 = vst.msk [vmem:[#allocation3 + $0x8] sm:$0xff] %vm61, %v252
    $region37: #{decoder_layer.5} parent=1 // pred_fallthru
      _
    // Predicated region
    $region38: #{decoder_layer.5} parent=1 // pred_check
      _
    $region39: #{decoder_layer.5} parent=1 // pred_check_branch
      %256 = sbr.rel (0) target = $region41
    $region40: #{decoder_layer.5} parent=1 // pred_region
      %s258 = ssub.s32 256, 256
      %259 = vsyncadd [#allocation4], %s258
      %s260 = sshll.u32 [#allocation3], 4
      %s261 = int_to_ptr.vmem [resolvable:$true] %s260
      %266 = dma.vmem_to_hbm [thread:$0]  %s261, 256, %s7, [#allocation4], 128, 128, 8
    $region41: #{decoder_layer.5} parent=1 // pred_fallthru
      _
    // Predicated region
    $region42: #{decoder_layer.5} parent=1 // pred_check
      _
    $region43: #{decoder_layer.5} parent=1 // pred_check_branch
      %268 = sbr.rel (0) target = $region45
    $region44: #{decoder_layer.5} parent=1 // pred_region
      %269 = dma.done [#allocation4], 256
    $region45: #{decoder_layer.5} parent=1 // pred_fallthru
      _
    %270 = vsyncpa [#allocation4], 1

// kernel: decoder_layer.4
$region0: #{decoder_layer.4}
  #allocation0 [shape = 'u32[]', space=smem, size = 0x4, offset = 0x4, fixed_abs, tag = 'smem constant byte address 0x4 - core index']
  #allocation1 [shape = 'u32[144,128]{1,0:T(1,128)}', space=vmem, size = 0x12000, scoped, tag = 'internal scratch']
  %s0 = inlined_call_operand.vmem [shape: f32[2,8,32], index: 0, kind: input, shape index: {}]
  %s1 = inlined_call_operand.vmem [shape: f32[2,8,32], index: 1, kind: input, shape index: {}]
  %s2 = inlined_call_operand.vmem [shape: bf16[32,96], index: 2, kind: input, shape index: {}]
  %s3 = inlined_call_operand.vmem [shape: f32[1,96], index: 3, kind: input, shape index: {}]
  %s4 = inlined_call_operand.vmem [shape: bf16[32,32], index: 4, kind: input, shape index: {}]
  %s5 = inlined_call_operand.vmem [shape: f32[1,32], index: 5, kind: input, shape index: {}]
  %s6 = inlined_call_operand.vmem [shape: f32[1,32], index: 6, kind: input, shape index: {}]
  %s7 = inlined_call_operand.vmem [shape: f32[1,32], index: 7, kind: input, shape index: {}]
  %s8 = inlined_call_operand.vmem [shape: f32[2,8,32], index: 8, kind: output, shape index: {}]
  %s9 = sld [smem:[#allocation0]]
  $region65: #{decoder_layer.4} parent=0
    _
  %s11 = ssub.s32 1, %s9
  %s12 = scalar_select 0, %s11, %s9
  loop: start=0, step=1, limit=4
  $region2: #{decoder_layer.4} parent=0 // loop_pre_header
    _
  $region3: #{decoder_layer.4} parent=0 // loop_header
    %s14 = sphi 0, %s18
    %p15 = scmp.ge.s32.totalorder %s14, 4
    %s24 = sphi 0, %s26
    %s27 = sphi 0, %s24
    %s28 = sphi 0, %s27
    %s44 = sphi 0, %s28
    %s50 = sphi 0, %s52
    %s53 = sphi 0, %s50
    %s54 = sphi 0, %s53
    %s70 = sphi 0, %s54
    %s74 = sphi 0, %s74
    %s76 = sphi 0, %s74
    %s77 = sphi 0, %s76
    %s91 = sphi 0, %s77
    %s95 = sphi 0, %s95
    %s97 = sphi 0, %s95
    %s98 = sphi 0, %s97
    %s112 = sphi 0, %s98
    %s116 = sphi 0, %s116
    %s118 = sphi 0, %s116
    %s119 = sphi 0, %s118
    %s133 = sphi 0, %s119
    %s137 = sphi 0, %s137
    %s139 = sphi 0, %s137
    %s140 = sphi 0, %s139
    %s154 = sphi 0, %s140
    %s158 = sphi 0, %s158
    %s160 = sphi 0, %s158
    %s161 = sphi 0, %s160
    %s175 = sphi 0, %s161
    %s179 = sphi 0, %s179
    %s181 = sphi 0, %s179
    %s182 = sphi 0, %s181
    %s196 = sphi 0, %s182
    %s202 = sphi 0, %s204
    %s205 = sphi 0, %s202
    %s206 = sphi 0, %s205
    %s222 = sphi 0, %s206
  $region4: #{decoder_layer.4} parent=0 // loop_header_branch
    %17 = sbr.rel (%p15) target = $region8
  $region5: #{decoder_layer.4} parent=0 // loop_body
    %s19 = ssub.s32 %s14, 1
    %s20 = ssub.s32 %s14, 2
    %s21 = sadd.s32 %s14, 1
    %s22 = ssub.s32 %s14, %s21
    %p23 = scmp.eq.s32.totalorder %s22, 0
    %s25 = sadd.s32 %s24, 1
    %s26 = scalar_select %p23, %s24, %s25
    %p29 = pneg %p23
    %p30 = scmp.eq.s32.totalorder %s14, 1
    %p31 = por %p29, %p30
    %p32 = scmp.ne.s32.totalorder %s24, %s27
    %p33 = scmp.eq.s32.totalorder %s14, 0
    %p34 = por %p32, %p33
    %p35 = scmp.ne.s32.totalorder %s24, %s27
    %p36 = scmp.eq.s32.totalorder %s19, 1
    %p37 = por %p35, %p36
    %p38 = scmp.ne.s32.totalorder %s27, %s28
    %p39 = scmp.eq.s32.totalorder %s19, 0
    %p40 = por %p38, %p39
    %p41 = scmp.ne.s32.totalorder %s27, %s28
    %p42 = scmp.eq.s32.totalorder %s20, 1
    %p43 = por %p41, %p42
    %p45 = scmp.ne.s32.totalorder %s28, %s44
    %p46 = scmp.eq.s32.totalorder %s20, 0
    %p47 = por %p45, %p46
    %s48 = ssub.s32 %s14, %s21
    %p49 = scmp.eq.s32.totalorder %s48, 0
    %s51 = sadd.s32 %s50, 1
    %s52 = scalar_select %p49, %s50, %s51
    %p55 = pneg %p49
    %p56 = scmp.eq.s32.totalorder %s14, 1
    %p57 = por %p55, %p56
    %p58 = scmp.ne.s32.totalorder %s50, %s53
    %p59 = scmp.eq.s32.totalorder %s14, 0
    %p60 = por %p58, %p59
    %p61 = scmp.ne.s32.totalorder %s50, %s53
    %p62 = scmp.eq.s32.totalorder %s19, 1
    %p63 = por %p61, %p62
    %p64 = scmp.ne.s32.totalorder %s53, %s54
    %p65 = scmp.eq.s32.totalorder %s19, 0
    %p66 = por %p64, %p65
    %p67 = scmp.ne.s32.totalorder %s53, %s54
    %p68 = scmp.eq.s32.totalorder %s20, 1
    %p69 = por %p67, %p68
    %p71 = scmp.ne.s32.totalorder %s54, %s70
    %p72 = scmp.eq.s32.totalorder %s20, 0
    %p73 = por %p71, %p72
    %s75 = sadd.s32 %s74, 1
    %p78 = scmp.eq.s32.totalorder %s14, 1
    %p79 = scmp.ne.s32.totalorder %s74, %s76
    %p80 = scmp.eq.s32.totalorder %s14, 0
    %p81 = por %p79, %p80
    %p82 = scmp.ne.s32.totalorder %s74, %s76
    %p83 = scmp.eq.s32.totalorder %s19, 1
    %p84 = por %p82, %p83
    %p85 = scmp.ne.s32.totalorder %s76, %s77
    %p86 = scmp.eq.s32.totalorder %s19, 0
    %p87 = por %p85, %p86
    %p88 = scmp.ne.s32.totalorder %s76, %s77
    %p89 = scmp.eq.s32.totalorder %s20, 1
    %p90 = por %p88, %p89
    %p92 = scmp.ne.s32.totalorder %s77, %s91
    %p93 = scmp.eq.s32.totalorder %s20, 0
    %p94 = por %p92, %p93
    %s96 = sadd.s32 %s95, 1
    %p99 = scmp.eq.s32.totalorder %s14, 1
    %p100 = scmp.ne.s32.totalorder %s95, %s97
    %p101 = scmp.eq.s32.totalorder %s14, 0
    %p102 = por %p100, %p101
    %p103 = scmp.ne.s32.totalorder %s95, %s97
    %p104 = scmp.eq.s32.totalorder %s19, 1
    %p105 = por %p103, %p104
    %p106 = scmp.ne.s32.totalorder %s97, %s98
    %p107 = scmp.eq.s32.totalorder %s19, 0
    %p108 = por %p106, %p107
    %p109 = scmp.ne.s32.totalorder %s97, %s98
    %p110 = scmp.eq.s32.totalorder %s20, 1
    %p111 = por %p109, %p110
    %p113 = scmp.ne.s32.totalorder %s98, %s112
    %p114 = scmp.eq.s32.totalorder %s20, 0
    %p115 = por %p113, %p114
    %s117 = sadd.s32 %s116, 1
    %p120 = scmp.eq.s32.totalorder %s14, 1
    %p121 = scmp.ne.s32.totalorder %s116, %s118
    %p122 = scmp.eq.s32.totalorder %s14, 0
    %p123 = por %p121, %p122
    %p124 = scmp.ne.s32.totalorder %s116, %s118
    %p125 = scmp.eq.s32.totalorder %s19, 1
    %p126 = por %p124, %p125
    %p127 = scmp.ne.s32.totalorder %s118, %s119
    %p128 = scmp.eq.s32.totalorder %s19, 0
    %p129 = por %p127, %p128
    %p130 = scmp.ne.s32.totalorder %s118, %s119
    %p131 = scmp.eq.s32.totalorder %s20, 1
    %p132 = por %p130, %p131
    %p134 = scmp.ne.s32.totalorder %s119, %s133
    %p135 = scmp.eq.s32.totalorder %s20, 0
    %p136 = por %p134, %p135
    %s138 = sadd.s32 %s137, 1
    %p141 = scmp.eq.s32.totalorder %s14, 1
    %p142 = scmp.ne.s32.totalorder %s137, %s139
    %p143 = scmp.eq.s32.totalorder %s14, 0
    %p144 = por %p142, %p143
    %p145 = scmp.ne.s32.totalorder %s137, %s139
    %p146 = scmp.eq.s32.totalorder %s19, 1
    %p147 = por %p145, %p146
    %p148 = scmp.ne.s32.totalorder %s139, %s140
    %p149 = scmp.eq.s32.totalorder %s19, 0
    %p150 = por %p148, %p149
    %p151 = scmp.ne.s32.totalorder %s139, %s140
    %p152 = scmp.eq.s32.totalorder %s20, 1
    %p153 = por %p151, %p152
    %p155 = scmp.ne.s32.totalorder %s140, %s154
    %p156 = scmp.eq.s32.totalorder %s20, 0
    %p157 = por %p155, %p156
    %s159 = sadd.s32 %s158, 1
    %p162 = scmp.eq.s32.totalorder %s14, 1
    %p163 = scmp.ne.s32.totalorder %s158, %s160
    %p164 = scmp.eq.s32.totalorder %s14, 0
    %p165 = por %p163, %p164
    %p166 = scmp.ne.s32.totalorder %s158, %s160
    %p167 = scmp.eq.s32.totalorder %s19, 1
    %p168 = por %p166, %p167
    %p169 = scmp.ne.s32.totalorder %s160, %s161
    %p170 = scmp.eq.s32.totalorder %s19, 0
    %p171 = por %p169, %p170
    %p172 = scmp.ne.s32.totalorder %s160, %s161
    %p173 = scmp.eq.s32.totalorder %s20, 1
    %p174 = por %p172, %p173
    %p176 = scmp.ne.s32.totalorder %s161, %s175
    %p177 = scmp.eq.s32.totalorder %s20, 0
    %p178 = por %p176, %p177
    %s180 = sadd.s32 %s179, 1
    %p183 = scmp.eq.s32.totalorder %s14, 1
    %p184 = scmp.ne.s32.totalorder %s179, %s181
    %p185 = scmp.eq.s32.totalorder %s14, 0
    %p186 = por %p184, %p185
    %p187 = scmp.ne.s32.totalorder %s179, %s181
    %p188 = scmp.eq.s32.totalorder %s19, 1
    %p189 = por %p187, %p188
    %p190 = scmp.ne.s32.totalorder %s181, %s182
    %p191 = scmp.eq.s32.totalorder %s19, 0
    %p192 = por %p190, %p191
    %p193 = scmp.ne.s32.totalorder %s181, %s182
    %p194 = scmp.eq.s32.totalorder %s20, 1
    %p195 = por %p193, %p194
    %p197 = scmp.ne.s32.totalorder %s182, %s196
    %p198 = scmp.eq.s32.totalorder %s20, 0
    %p199 = por %p197, %p198
    %s200 = ssub.s32 %s14, %s21
    %p201 = scmp.eq.s32.totalorder %s200, 0
    %s203 = sadd.s32 %s202, 1
    %s204 = scalar_select %p201, %s202, %s203
    %p207 = pneg %p201
    %p208 = scmp.eq.s32.totalorder %s14, 1
    %p209 = por %p207, %p208
    %p210 = scmp.ne.s32.totalorder %s202, %s205
    %p211 = scmp.eq.s32.totalorder %s14, 0
    %p212 = por %p210, %p211
    %p213 = scmp.ne.s32.totalorder %s202, %s205
    %p214 = scmp.eq.s32.totalorder %s19, 1
    %p215 = por %p213, %p214
    %p216 = scmp.ne.s32.totalorder %s205, %s206
    %p217 = scmp.eq.s32.totalorder %s19, 0
    %p218 = por %p216, %p217
    %p219 = scmp.ne.s32.totalorder %s205, %s206
    %p220 = scmp.eq.s32.totalorder %s20, 1
    %p221 = por %p219, %p220
    %p223 = scmp.ne.s32.totalorder %s206, %s222
    %p224 = scmp.eq.s32.totalorder %s20, 0
    %p225 = por %p223, %p224
    %p226 = scmp.le.s32.totalorder 1, %s14
    %p227 = scmp.lt.s32.totalorder %s14, 3
    %p228 = pnand %p226, %p227
    %p229 = pneg %p228
    // Predicated region
    $region9: #{decoder_layer.4} parent=5 // pred_check
      _
    $region10: #{decoder_layer.4} parent=5 // pred_check_branch
      %231 = sbr.rel (%p228) target = $region12
    $region11: #{decoder_layer.4} parent=5 // pred_region
      %s232 = ssub.s32 %s14, 1
      // Predicated region
      $region13: #{decoder_layer.4} parent=11 // pred_check
        %p233 = pneg %p87
      $region14: #{decoder_layer.4} parent=11 // pred_check_branch
        %235 = sbr.rel (%p233) target = $region16
      $region15: #{decoder_layer.4} parent=11 // pred_region
        _
      $region16: #{decoder_layer.4} parent=11 // pred_fallthru
        _
      // Predicated region
      $region17: #{decoder_layer.4} parent=11 // pred_check
        %p236 = pneg %p108
      $region18: #{decoder_layer.4} parent=11 // pred_check_branch
        %238 = sbr.rel (%p236) target = $region20
      $region19: #{decoder_layer.4} parent=11 // pred_region
        _
      $region20: #{decoder_layer.4} parent=11 // pred_fallthru
        _
      // Predicated region
      $region21: #{decoder_layer.4} parent=11 // pred_check
        %p239 = pneg %p129
      $region22: #{decoder_layer.4} parent=11 // pred_check_branch
        %241 = sbr.rel (%p239) target = $region24
      $region23: #{decoder_layer.4} parent=11 // pred_region
        _
      $region24: #{decoder_layer.4} parent=11 // pred_fallthru
        _
      // Predicated region
      $region25: #{decoder_layer.4} parent=11 // pred_check
        %p242 = pneg %p150
      $region26: #{decoder_layer.4} parent=11 // pred_check_branch
        %244 = sbr.rel (%p242) target = $region28
      $region27: #{decoder_layer.4} parent=11 // pred_region
        _
      $region28: #{decoder_layer.4} parent=11 // pred_fallthru
        _
      // Predicated region
      $region29: #{decoder_layer.4} parent=11 // pred_check
        %p245 = pneg %p171
      $region30: #{decoder_layer.4} parent=11 // pred_check_branch
        %247 = sbr.rel (%p245) target = $region32
      $region31: #{decoder_layer.4} parent=11 // pred_region
        _
      $region32: #{decoder_layer.4} parent=11 // pred_fallthru
        _
      // Predicated region
      $region33: #{decoder_layer.4} parent=11 // pred_check
        %p248 = pneg %p192
      $region34: #{decoder_layer.4} parent=11 // pred_check_branch
        %250 = sbr.rel (%p248) target = $region36
      $region35: #{decoder_layer.4} parent=11 // pred_region
        _
      $region36: #{decoder_layer.4} parent=11 // pred_fallthru
        _
    $region12: #{decoder_layer.4} parent=5 // pred_fallthru
      _
    %p251 = scmp.lt.s32.totalorder %s14, 2
    // Predicated region
    $region37: #{decoder_layer.4} parent=5 // pred_check
      %p252 = pneg %p251
    $region38: #{decoder_layer.4} parent=5 // pred_check_branch
      %254 = sbr.rel (%p252) target = $region40
    $region39: #{decoder_layer.4} parent=5 // pred_region
      // Predicated region
      $region41: #{decoder_layer.4} parent=39 // pred_check
        %p255 = pneg %p34
      $region42: #{decoder_layer.4} parent=39 // pred_check_branch
        %257 = sbr.rel (%p255) target = $region44
      $region43: #{decoder_layer.4} parent=39 // pred_region
        %p258 = scmp.lt.s32.totalorder %s14, 1
        %s259 = scalar_select %p258, %s14, 1
        %s260 = smul.addr %s259, 8
        %s261 = scalar_lea.vmem %s0, %s260
      $region44: #{decoder_layer.4} parent=39 // pred_fallthru
        _
      // Predicated region
      $region45: #{decoder_layer.4} parent=39 // pred_check
        %p262 = pneg %p60
      $region46: #{decoder_layer.4} parent=39 // pred_check_branch
        %264 = sbr.rel (%p262) target = $region48
      $region47: #{decoder_layer.4} parent=39 // pred_region
        %p265 = scmp.lt.s32.totalorder %s14, 1
        %s266 = scalar_select %p265, %s14, 1
        %s267 = smul.addr %s266, 8
        %s268 = scalar_lea.vmem %s1, %s267
      $region48: #{decoder_layer.4} parent=39 // pred_fallthru
        _
    $region40: #{decoder_layer.4} parent=5 // pred_fallthru
      _
    %p269 = scmp.le.s32.totalorder 1, %s14
    %p270 = scmp.lt.s32.totalorder %s14, 3
    %p271 = pnand %p269, %p270
    %p272 = pneg %p271
    // Predicated region
    $region49: #{decoder_layer.4} parent=5 // pred_check
      _
    $region50: #{decoder_layer.4} parent=5 // pred_check_branch
      %274 = sbr.rel (%p271) target = $region52
    $region51: #{decoder_layer.4} parent=5 // pred_region
      %s275 = ssub.s32 %s14, 1
      %p276 = scmp.lt.s32.totalorder %s19, 1
      %s277 = scalar_select %p276, %s19, 1
      %s278 = smul.addr %s277, 8
      %s279 = scalar_lea.vmem %s0, %s278
      %p280 = pneg %p40
      %p281 = pneg %p37
      %p282 = scmp.lt.s32.totalorder %s19, 1
      %s283 = scalar_select %p282, %s19, 1
      %s284 = smul.addr %s283, 8
      %s285 = scalar_lea.vmem %s1, %s284
      %p286 = pneg %p66
      %p287 = pneg %p63
      %p288 = pneg %p87
      %p289 = pneg %p84
      %p290 = pneg %p108
      %p291 = pneg %p105
      %p292 = pneg %p129
      %p293 = pneg %p126
      %p294 = pneg %p150
      %p295 = pneg %p147
      %p296 = pneg %p171
      %p297 = pneg %p168
      %p298 = pneg %p192
      %p299 = pneg %p189
      %p300 = pneg %p218
      %p301 = pneg %p215
      %p302 = scmp.lt.s32.totalorder %s19, 1
      %s303 = scalar_select %p302, %s19, 1
      %s304 = smul.addr %s303, 8
      %s305 = scalar_lea.vmem %s8, %s304
      %p306 = scmp.lt.s32.totalorder %s19, 1
      %s307 = scalar_select %p306, %s19, 1
      %s308 = smul.addr %s307, 8
      %s309 = scalar_lea.vmem %s0, %s308
      %p310 = scmp.lt.s32.totalorder %s19, 1
      %s311 = scalar_select %p310, %s19, 1
      %s312 = smul.addr %s311, 8
      %s313 = scalar_lea.vmem %s1, %s312
      %p314 = scmp.lt.s32.totalorder %s19, 1
      %s315 = scalar_select %p314, %s19, 1
      %s316 = smul.addr %s315, 8
      %s317 = scalar_lea.vmem %s8, %s316
      %v319 = vld [vmem:[%s309] sm:$0xff]
      %v320 = vld [vmem:[%s2] sm:$0xf]
      %v321 = vld [vmem:[%s2 + $0x4] sm:$0xf]
      %v322 = vld [vmem:[%s2 + $0x8] sm:$0xf]
      %v323 = vld [vmem:[%s2 + $0xc] sm:$0xf]
      %v324 = vld [vmem:[%s3] sm:$0x1]
      %v325 = vld [vmem:[%s313] sm:$0xff]
      %v326 = vpack.c.bf16 %v319, %v319
      %v328 = vlaneseq
      %v329 = vshrl.u32 %v328, 7
      %v330 = vsub.s32 0, %v329
      %v331 = vrot.slane %v324, %v330
      %v337 = vunpack.c.l.b16 %v320
      %v338 = vunpack.c.l.b16 %v321
      %v339 = vunpack.c.l.b16 %v322
      %v340 = vunpack.c.l.b16 %v323
      %v341 = vpack.c.b16 %v338, %v337
      %v342 = vpack.c.b16 %v340, %v339
      %vm345 = vcmask 261120
      %v347 = vsel %vm345, %v326, 0
      %349 = vmatprep.subr.bf16.mxu0 0
      %350 = vmatpush1.bf16.msra.mxu0 0
      %351 = vmatprep.subr.bf16.mxu0 0
      %352 = vmatpush1.bf16.msra.mxu0 0
      %353 = vmatprep.subr.bf16.mxu0 0
      %354 = vmatpush1.bf16.msra.mxu0 0
      %355 = vmatprep.subr.bf16.mxu0 0
      %356 = vmatpush1.bf16.msra.mxu0 0
      %357 = vmatprep.subr.bf16.mxu0 0
      %358 = vmatpush1.bf16.msra.mxu0 0
      %359 = vmatprep.subr.bf16.mxu0 0
      %360 = vmatpush1.bf16.msra.mxu0 0
      %361 = vmatprep.subr.bf16.mxu0 0
      %362 = vmatpush1.bf16.msra.mxu0 %v342
      %363 = vmatprep.subr.bf16.mxu0 0
      %364 = vmatpush1.bf16.msra.mxu0 %v341
      %365 = vmatprep.subr.bf16.mxu0 0
      %366 = vmatpush2.bf16.msra.mxu0 0
      %367 = vmatprep.subr.bf16.mxu0 0
      %368 = vmatpush2.bf16.msra.mxu0 0
      %369 = vmatprep.subr.bf16.mxu0 0
      %370 = vmatpush2.bf16.msra.mxu0 0
      %371 = vmatprep.subr.bf16.mxu0 0
      %372 = vmatpush2.bf16.msra.mxu0 0
      %373 = vmatprep.subr.bf16.mxu0 0
      %374 = vmatpush2.bf16.msra.mxu0 0
      %375 = vmatprep.subr.bf16.mxu0 0
      %376 = vmatpush2.bf16.msra.mxu0 0
      %377 = vmatprep.subr.bf16.mxu0 0
      %378 = vmatpush2.bf16.msra.mxu0 0
      %379 = vmatprep.subr.bf16.mxu0 0
      %380 = vmatpush2.bf16.msra.mxu0 0
      %381 = vmatprep.mubr.bf16.mxu0 0
      %382 = vmatmul.mubr.bf16.gmra.mxu0 %v347
      %v383 = vpop.f32.mrf.mxu0
      %v384 = vadd.f32 %v331, %v383
      %v385 = vpop.f32.mrf.mxu0
      %v386 = vpop.f32.mrf.mxu0
      %v387 = vpop.f32.mrf.mxu0
      %388 = vdwg.mxu0
      %v389 = vpack.c.bf16 %v325, %v325
      %390 = vrot.lane.b32.xlu0 %v341, 96
      %v391 = vpop.permute.xlu0 %390
      %392 = vrot.lane.b32.xlu0 %v342, 96
      %v393 = vpop.permute.xlu0 %392
      %396 = vrot.lane.b32.xlu0 %v331, 96
      %v397 = vpop.permute.xlu0 %396
      %v400 = vsel %vm345, %v389, 0
      %402 = vmatprep.subr.bf16.mxu0 0
      %403 = vmatpush1.bf16.msra.mxu0 0
      %404 = vmatprep.subr.bf16.mxu0 0
      %405 = vmatpush1.bf16.msra.mxu0 0
      %406 = vmatprep.subr.bf16.mxu0 0
      %407 = vmatpush1.bf16.msra.mxu0 0
      %408 = vmatprep.subr.bf16.mxu0 0
      %409 = vmatpush1.bf16.msra.mxu0 0
      %410 = vmatprep.subr.bf16.mxu0 0
      %411 = vmatpush1.bf16.msra.mxu0 0
      %412 = vmatprep.subr.bf16.mxu0 0
      %413 = vmatpush1.bf16.msra.mxu0 0
      %414 = vmatprep.subr.bf16.mxu0 0
      %415 = vmatpush1.bf16.msra.mxu0 %v393
      %416 = vmatprep.subr.bf16.mxu0 0
      %417 = vmatpush1.bf16.msra.mxu0 %v391
      %418 = vmatprep.subr.bf16.mxu0 0
      %419 = vmatpush2.bf16.msra.mxu0 0
      %420 = vmatprep.subr.bf16.mxu0 0
      %421 = vmatpush2.bf16.msra.mxu0 0
      %422 = vmatprep.subr.bf16.mxu0 0
      %423 = vmatpush2.bf16.msra.mxu0 0
      %424 = vmatprep.subr.bf16.mxu0 0
      %425 = vmatpush2.bf16.msra.mxu0 0
      %426 = vmatprep.subr.bf16.mxu0 0
      %427 = vmatpush2.bf16.msra.mxu0 0
      %428 = vmatprep.subr.bf16.mxu0 0
      %429 = vmatpush2.bf16.msra.mxu0 0
      %430 = vmatprep.subr.bf16.mxu0 0
      %431 = vmatpush2.bf16.msra.mxu0 0
      %432 = vmatprep.subr.bf16.mxu0 0
      %433 = vmatpush2.bf16.msra.mxu0 0
      %434 = vmatprep.mubr.bf16.mxu0 0
      %435 = vmatmul.mubr.bf16.gmra.mxu0 %v400
      %v436 = vpop.f32.mrf.mxu0
      %v437 = vadd.f32 %v397, %v436
      %v438 = vpop.f32.mrf.mxu0
      %v439 = vpop.f32.mrf.mxu0
      %v440 = vpop.f32.mrf.mxu0
      %441 = vdwg.mxu0
      %v442 = vmul.f32 %v384, 0.35355338
      %v443 = vpack.c.bf16 %v442, %v442
      %v444 = vpack.c.bf16 %v437, %v437
      %vm445 = vcmask 64512
      %v447 = vsel %vm445, %v443, 0
      %v450 = vsel %vm445, %v444, 0
      %452 = vmatprep.subr.bf16.mxu0 0
      %453 = vmatpush1.bf16.xpose.msra.mxu0 0
      %454 = vmatprep.subr.bf16.mxu0 0
      %455 = vmatpush1.bf16.xpose.msra.mxu0 0
      %456 = vmatprep.subr.bf16.mxu0 0
      %457 = vmatpush1.bf16.xpose.msra.mxu0 0
      %458 = vmatprep.subr.bf16.mxu0 0
      %459 = vmatpush1.bf16.xpose.msra.mxu0 0
      %460 = vmatprep.subr.bf16.mxu0 0
      %461 = vmatpush1.bf16.xpose.msra.mxu0 0
      %462 = vmatprep.subr.bf16.mxu0 0
      %463 = vmatpush1.bf16.xpose.msra.mxu0 0
      %464 = vmatprep.subr.bf16.mxu0 0
      %465 = vmatpush1.bf16.xpose.msra.mxu0 0
      %466 = vmatprep.subr.bf16.mxu0 0
      %467 = vmatpush1.bf16.xpose.msra.mxu0 %v450
      %468 = vmatprep.subr.bf16.mxu0 0
      %469 = vmatpush2.bf16.xpose.msra.mxu0 0
      %470 = vmatprep.subr.bf16.mxu0 0
      %471 = vmatpush2.bf16.xpose.msra.mxu0 0
      %472 = vmatprep.subr.bf16.mxu0 0
      %473 = vmatpush2.bf16.xpose.msra.mxu0 0
      %474 = vmatprep.subr.bf16.mxu0 0
      %475 = vmatpush2.bf16.xpose.msra.mxu0 0
      %476 = vmatprep.subr.bf16.mxu0 0
      %477 = vmatpush2.bf16.xpose.msra.mxu0 0
      %478 = vmatprep.subr.bf16.mxu0 0
      %479 = vmatpush2.bf16.xpose.msra.mxu0 0
      %480 = vmatprep.subr.bf16.mxu0 0
      %481 = vmatpush2.bf16.xpose.msra.mxu0 0
      %482 = vmatprep.subr.bf16.mxu0 0
      %483 = vmatpush2.bf16.xpose.msra.mxu0 0
      %484 = vmatprep.mubr.bf16.mxu0 0
      %485 = vmatmul.mubr.bf16.gmra.mxu0 %v447
      %v486 = vpop.f32.mrf.mxu0
      %v487 = vadd.f32 0.0, %v486
      %v488 = vpop.f32.mrf.mxu0
      %v489 = vpop.f32.mrf.mxu0
      %v490 = vpop.f32.mrf.mxu0
      %491 = vdwg.mxu0
      %v492 = vsel %vm445, %v487, -inf
      %493 = vmax.xlane.f32.xlu0 %v492
      %v494 = vpop.xlane.xlu0 %493
      %v495 = vsub.f32 %v487, %v494
      %v496 = vmul.f32 %v495, 1.442695
      %v497 = vpow.pop %v496
      %v498 = vsel %vm445, %v497, 0.0
      %499 = vadd.xlane.f32.xlu0 %v498
      %v500 = vpop.xlane.xlu0 %499
      %v501 = vpack.c.bf16 %v497, %v497
      %503 = vrot.lane.b32.xlu0 %v444, 96
      %v504 = vpop.permute.xlu0 %503
      %v506 = vsel %vm445, %v501, 0
      %vm508 = vcmask 1043456
      %v510 = vsel %vm508, %v504, 0
      %512 = vmatprep.subr.bf16.mxu0 0
      %513 = vmatpush1.bf16.msra.mxu0 0
      %514 = vmatprep.subr.bf16.mxu0 0
      %515 = vmatpush1.bf16.msra.mxu0 0
      %516 = vmatprep.subr.bf16.mxu0 0
      %517 = vmatpush1.bf16.msra.mxu0 0
      %518 = vmatprep.subr.bf16.mxu0 0
      %519 = vmatpush1.bf16.msra.mxu0 0
      %520 = vmatprep.subr.bf16.mxu0 0
      %521 = vmatpush1.bf16.msra.mxu0 0
      %522 = vmatprep.subr.bf16.mxu0 0
      %523 = vmatpush1.bf16.msra.mxu0 0
      %524 = vmatprep.subr.bf16.mxu0 0
      %525 = vmatpush1.bf16.msra.mxu0 0
      %526 = vmatprep.subr.bf16.mxu0 0
      %527 = vmatpush1.bf16.msra.mxu0 %v510
      %528 = vmatprep.subr.bf16.mxu0 0
      %529 = vmatpush2.bf16.msra.mxu0 0
      %530 = vmatprep.subr.bf16.mxu0 0
      %531 = vmatpush2.bf16.msra.mxu0 0
      %532 = vmatprep.subr.bf16.mxu0 0
      %533 = vmatpush2.bf16.msra.mxu0 0
      %534 = vmatprep.subr.bf16.mxu0 0
      %535 = vmatpush2.bf16.msra.mxu0 0
      %536 = vmatprep.subr.bf16.mxu0 0
      %537 = vmatpush2.bf16.msra.mxu0 0
      %538 = vmatprep.subr.bf16.mxu0 0
      %539 = vmatpush2.bf16.msra.mxu0 0
      %540 = vmatprep.subr.bf16.mxu0 0
      %541 = vmatpush2.bf16.msra.mxu0 0
      %542 = vmatprep.subr.bf16.mxu0 0
      %543 = vmatpush2.bf16.msra.mxu0 0
      %544 = vmatprep.mubr.bf16.mxu0 0
      %545 = vmatmul.mubr.bf16.gmra.mxu0 %v506
      %v546 = vpop.f32.mrf.mxu0
      %v547 = vadd.f32 0.0, %v546
      %v548 = vpop.f32.mrf.mxu0
      %v549 = vpop.f32.mrf.mxu0
      %v550 = vpop.f32.mrf.mxu0
      %551 = vdwg.mxu0
      %v552 = vrcp.pop %v500
      %v553 = vmul.f32 %v547, %v552
      %555 = vrot.lane.b32.xlu0 %v443, 120
      %v556 = vpop.permute.xlu0 %555
      %557 = vrot.lane.b32.xlu0 %v444, 120
      %v558 = vpop.permute.xlu0 %557
      %v560 = vsel %vm445, %v556, 0
      %v563 = vsel %vm445, %v558, 0
      %565 = vmatprep.subr.bf16.mxu0 0
      %566 = vmatpush1.bf16.xpose.msra.mxu0 0
      %567 = vmatprep.subr.bf16.mxu0 0
      %568 = vmatpush1.bf16.xpose.msra.mxu0 0
      %569 = vmatprep.subr.bf16.mxu0 0
      %570 = vmatpush1.bf16.xpose.msra.mxu0 0
      %571 = vmatprep.subr.bf16.mxu0 0
      %572 = vmatpush1.bf16.xpose.msra.mxu0 0
      %573 = vmatprep.subr.bf16.mxu0 0
      %574 = vmatpush1.bf16.xpose.msra.mxu0 0
      %575 = vmatprep.subr.bf16.mxu0 0
      %576 = vmatpush1.bf16.xpose.msra.mxu0 0
      %577 = vmatprep.subr.bf16.mxu0 0
      %578 = vmatpush1.bf16.xpose.msra.mxu0 0
      %579 = vmatprep.subr.bf16.mxu0 0
      %580 = vmatpush1.bf16.xpose.msra.mxu0 %v563
      %581 = vmatprep.subr.bf16.mxu0 0
      %582 = vmatpush2.bf16.xpose.msra.mxu0 0
      %583 = vmatprep.subr.bf16.mxu0 0
      %584 = vmatpush2.bf16.xpose.msra.mxu0 0
      %585 = vmatprep.subr.bf16.mxu0 0
      %586 = vmatpush2.bf16.xpose.msra.mxu0 0
      %587 = vmatprep.subr.bf16.mxu0 0
      %588 = vmatpush2.bf16.xpose.msra.mxu0 0
      %589 = vmatprep.subr.bf16.mxu0 0
      %590 = vmatpush2.bf16.xpose.msra.mxu0 0
      %591 = vmatprep.subr.bf16.mxu0 0
      %592 = vmatpush2.bf16.xpose.msra.mxu0 0
      %593 = vmatprep.subr.bf16.mxu0 0
      %594 = vmatpush2.bf16.xpose.msra.mxu0 0
      %595 = vmatprep.subr.bf16.mxu0 0
      %596 = vmatpush2.bf16.xpose.msra.mxu0 0
      %597 = vmatprep.mubr.bf16.mxu0 0
      %598 = vmatmul.mubr.bf16.gmra.mxu0 %v560
      %v599 = vpop.f32.mrf.mxu0
      %v600 = vadd.f32 0.0, %v599
      %v601 = vpop.f32.mrf.mxu0
      %v602 = vpop.f32.mrf.mxu0
      %v603 = vpop.f32.mrf.mxu0
      %604 = vdwg.mxu0
      %v605 = vsel %vm445, %v600, -inf
      %606 = vmax.xlane.f32.xlu0 %v605
      %v607 = vpop.xlane.xlu0 %606
      %v608 = vsub.f32 %v600, %v607
      %v609 = vmul.f32 %v608, 1.442695
      %v610 = vpow.pop %v609
      %v611 = vsel %vm445, %v610, 0.0
      %612 = vadd.xlane.f32.xlu0 %v611
      %v613 = vpop.xlane.xlu0 %612
      %v614 = vpack.c.bf16 %v610, %v610
      %615 = vrot.lane.b32.xlu0 %v444, 88
      %v616 = vpop.permute.xlu0 %615
      %v618 = vsel %vm445, %v614, 0
      %v621 = vsel %vm508, %v616, 0
      %623 = vmatprep.subr.bf16.mxu0 0
      %624 = vmatpush1.bf16.msra.mxu0 0
      %625 = vmatprep.subr.bf16.mxu0 0
      %626 = vmatpush1.bf16.msra.mxu0 0
      %627 = vmatprep.subr.bf16.mxu0 0
      %628 = vmatpush1.bf16.msra.mxu0 0
      %629 = vmatprep.subr.bf16.mxu0 0
      %630 = vmatpush1.bf16.msra.mxu0 0
      %631 = vmatprep.subr.bf16.mxu0 0
      %632 = vmatpush1.bf16.msra.mxu0 0
      %633 = vmatprep.subr.bf16.mxu0 0
      %634 = vmatpush1.bf16.msra.mxu0 0
      %635 = vmatprep.subr.bf16.mxu0 0
      %636 = vmatpush1.bf16.msra.mxu0 0
      %637 = vmatprep.subr.bf16.mxu0 0
      %638 = vmatpush1.bf16.msra.mxu0 %v621
      %639 = vmatprep.subr.bf16.mxu0 0
      %640 = vmatpush2.bf16.msra.mxu0 0
      %641 = vmatprep.subr.bf16.mxu0 0
      %642 = vmatpush2.bf16.msra.mxu0 0
      %643 = vmatprep.subr.bf16.mxu0 0
      %644 = vmatpush2.bf16.msra.mxu0 0
      %645 = vmatprep.subr.bf16.mxu0 0
      %646 = vmatpush2.bf16.msra.mxu0 0
      %647 = vmatprep.subr.bf16.mxu0 0
      %648 = vmatpush2.bf16.msra.mxu0 0
      %649 = vmatprep.subr.bf16.mxu0 0
      %650 = vmatpush2.bf16.msra.mxu0 0
      %651 = vmatprep.subr.bf16.mxu0 0
      %652 = vmatpush2.bf16.msra.mxu0 0
      %653 = vmatprep.subr.bf16.mxu0 0
      %654 = vmatpush2.bf16.msra.mxu0 0
      %655 = vmatprep.mubr.bf16.mxu0 0
      %656 = vmatmul.mubr.bf16.gmra.mxu0 %v618
      %v657 = vpop.f32.mrf.mxu0
      %v658 = vadd.f32 0.0, %v657
      %v659 = vpop.f32.mrf.mxu0
      %v660 = vpop.f32.mrf.mxu0
      %v661 = vpop.f32.mrf.mxu0
      %662 = vdwg.mxu0
      %v663 = vrcp.pop %v613
      %v664 = vmul.f32 %v658, %v663
      %665 = vrot.lane.b32.xlu0 %v443, 112
      %v666 = vpop.permute.xlu0 %665
      %667 = vrot.lane.b32.xlu0 %v444, 112
      %v668 = vpop.permute.xlu0 %667
      %v670 = vsel %vm445, %v666, 0
      %v673 = vsel %vm445, %v668, 0
      %675 = vmatprep.subr.bf16.mxu0 0
      %676 = vmatpush1.bf16.xpose.msra.mxu0 0
      %677 = vmatprep.subr.bf16.mxu0 0
      %678 = vmatpush1.bf16.xpose.msra.mxu0 0
      %679 = vmatprep.subr.bf16.mxu0 0
      %680 = vmatpush1.bf16.xpose.msra.mxu0 0
      %681 = vmatprep.subr.bf16.mxu0 0
      %682 = vmatpush1.bf16.xpose.msra.mxu0 0
      %683 = vmatprep.subr.bf16.mxu0 0
      %684 = vmatpush1.bf16.xpose.msra.mxu0 0
      %685 = vmatprep.subr.bf16.mxu0 0
      %686 = vmatpush1.bf16.xpose.msra.mxu0 0
      %687 = vmatprep.subr.bf16.mxu0 0
      %688 = vmatpush1.bf16.xpose.msra.mxu0 0
      %689 = vmatprep.subr.bf16.mxu0 0
      %690 = vmatpush1.bf16.xpose.msra.mxu0 %v673
      %691 = vmatprep.subr.bf16.mxu0 0
      %692 = vmatpush2.bf16.xpose.msra.mxu0 0
      %693 = vmatprep.subr.bf16.mxu0 0
      %694 = vmatpush2.bf16.xpose.msra.mxu0 0
      %695 = vmatprep.subr.bf16.mxu0 0
      %696 = vmatpush2.bf16.xpose.msra.mxu0 0
      %697 = vmatprep.subr.bf16.mxu0 0
      %698 = vmatpush2.bf16.xpose.msra.mxu0 0
      %699 = vmatprep.subr.bf16.mxu0 0
      %700 = vmatpush2.bf16.xpose.msra.mxu0 0
      %701 = vmatprep.subr.bf16.mxu0 0
      %702 = vmatpush2.bf16.xpose.msra.mxu0 0
      %703 = vmatprep.subr.bf16.mxu0 0
      %704 = vmatpush2.bf16.xpose.msra.mxu0 0
      %705 = vmatprep.subr.bf16.mxu0 0
      %706 = vmatpush2.bf16.xpose.msra.mxu0 0
      %707 = vmatprep.mubr.bf16.mxu0 0
      %708 = vmatmul.mubr.bf16.gmra.mxu0 %v670
      %v709 = vpop.f32.mrf.mxu0
      %v710 = vadd.f32 0.0, %v709
      %v711 = vpop.f32.mrf.mxu0
      %v712 = vpop.f32.mrf.mxu0
      %v713 = vpop.f32.mrf.mxu0
      %714 = vdwg.mxu0
      %v715 = vsel %vm445, %v710, -inf
      %716 = vmax.xlane.f32.xlu0 %v715
      %v717 = vpop.xlane.xlu0 %716
      %v718 = vsub.f32 %v710, %v717
      %v719 = vmul.f32 %v718, 1.442695
      %v720 = vpow.pop %v719
      %v721 = vsel %vm445, %v720, 0.0
      %722 = vadd.xlane.f32.xlu0 %v721
      %v723 = vpop.xlane.xlu0 %722
      %v724 = vpack.c.bf16 %v720, %v720
      %725 = vrot.lane.b32.xlu0 %v444, 80
      %v726 = vpop.permute.xlu0 %725
      %v728 = vsel %vm445, %v724, 0
      %v731 = vsel %vm508, %v726, 0
      %733 = vmatprep.subr.bf16.mxu0 0
      %734 = vmatpush1.bf16.msra.mxu0 0
      %735 = vmatprep.subr.bf16.mxu0 0
      %736 = vmatpush1.bf16.msra.mxu0 0
      %737 = vmatprep.subr.bf16.mxu0 0
      %738 = vmatpush1.bf16.msra.mxu0 0
      %739 = vmatprep.subr.bf16.mxu0 0
      %740 = vmatpush1.bf16.msra.mxu0 0
      %741 = vmatprep.subr.bf16.mxu0 0
      %742 = vmatpush1.bf16.msra.mxu0 0
      %743 = vmatprep.subr.bf16.mxu0 0
      %744 = vmatpush1.bf16.msra.mxu0 0
      %745 = vmatprep.subr.bf16.mxu0 0
      %746 = vmatpush1.bf16.msra.mxu0 0
      %747 = vmatprep.subr.bf16.mxu0 0
      %748 = vmatpush1.bf16.msra.mxu0 %v731
      %749 = vmatprep.subr.bf16.mxu0 0
      %750 = vmatpush2.bf16.msra.mxu0 0
      %751 = vmatprep.subr.bf16.mxu0 0
      %752 = vmatpush2.bf16.msra.mxu0 0
      %753 = vmatprep.subr.bf16.mxu0 0
      %754 = vmatpush2.bf16.msra.mxu0 0
      %755 = vmatprep.subr.bf16.mxu0 0
      %756 = vmatpush2.bf16.msra.mxu0 0
      %757 = vmatprep.subr.bf16.mxu0 0
      %758 = vmatpush2.bf16.msra.mxu0 0
      %759 = vmatprep.subr.bf16.mxu0 0
      %760 = vmatpush2.bf16.msra.mxu0 0
      %761 = vmatprep.subr.bf16.mxu0 0
      %762 = vmatpush2.bf16.msra.mxu0 0
      %763 = vmatprep.subr.bf16.mxu0 0
      %764 = vmatpush2.bf16.msra.mxu0 0
      %765 = vmatprep.mubr.bf16.mxu0 0
      %766 = vmatmul.mubr.bf16.gmra.mxu0 %v728
      %v767 = vpop.f32.mrf.mxu0
      %v768 = vadd.f32 0.0, %v767
      %v769 = vpop.f32.mrf.mxu0
      %v770 = vpop.f32.mrf.mxu0
      %v771 = vpop.f32.mrf.mxu0
      %772 = vdwg.mxu0
      %v773 = vrcp.pop %v723
      %v774 = vmul.f32 %v768, %v773
      %775 = vrot.lane.b32.xlu0 %v443, 104
      %v776 = vpop.permute.xlu0 %775
      %777 = vrot.lane.b32.xlu0 %v444, 104
      %v778 = vpop.permute.xlu0 %777
      %v780 = vsel %vm445, %v776, 0
      %v783 = vsel %vm445, %v778, 0
      %785 = vmatprep.subr.bf16.mxu0 0
      %786 = vmatpush1.bf16.xpose.msra.mxu0 0
      %787 = vmatprep.subr.bf16.mxu0 0
      %788 = vmatpush1.bf16.xpose.msra.mxu0 0
      %789 = vmatprep.subr.bf16.mxu0 0
      %790 = vmatpush1.bf16.xpose.msra.mxu0 0
      %791 = vmatprep.subr.bf16.mxu0 0
      %792 = vmatpush1.bf16.xpose.msra.mxu0 0
      %793 = vmatprep.subr.bf16.mxu0 0
      %794 = vmatpush1.bf16.xpose.msra.mxu0 0
      %795 = vmatprep.subr.bf16.mxu0 0
      %796 = vmatpush1.bf16.xpose.msra.mxu0 0
      %797 = vmatprep.subr.bf16.mxu0 0
      %798 = vmatpush1.bf16.xpose.msra.mxu0 0
      %799 = vmatprep.subr.bf16.mxu0 0
      %800 = vmatpush1.bf16.xpose.msra.mxu0 %v783
      %801 = vmatprep.subr.bf16.mxu0 0
      %802 = vmatpush2.bf16.xpose.msra.mxu0 0
      %803 = vmatprep.subr.bf16.mxu0 0
      %804 = vmatpush2.bf16.xpose.msra.mxu0 0
      %805 = vmatprep.subr.bf16.mxu0 0
      %806 = vmatpush2.bf16.xpose.msra.mxu0 0
      %807 = vmatprep.subr.bf16.mxu0 0
      %808 = vmatpush2.bf16.xpose.msra.mxu0 0
      %809 = vmatprep.subr.bf16.mxu0 0
      %810 = vmatpush2.bf16.xpose.msra.mxu0 0
      %811 = vmatprep.subr.bf16.mxu0 0
      %812 = vmatpush2.bf16.xpose.msra.mxu0 0
      %813 = vmatprep.subr.bf16.mxu0 0
      %814 = vmatpush2.bf16.xpose.msra.mxu0 0
      %815 = vmatprep.subr.bf16.mxu0 0
      %816 = vmatpush2.bf16.xpose.msra.mxu0 0
      %817 = vmatprep.mubr.bf16.mxu0 0
      %818 = vmatmul.mubr.bf16.gmra.mxu0 %v780
      %v819 = vpop.f32.mrf.mxu0
      %v820 = vadd.f32 0.0, %v819
      %v821 = vpop.f32.mrf.mxu0
      %v822 = vpop.f32.mrf.mxu0
      %v823 = vpop.f32.mrf.mxu0
      %824 = vdwg.mxu0
      %v825 = vsel %vm445, %v820, -inf
      %826 = vmax.xlane.f32.xlu0 %v825
      %v827 = vpop.xlane.xlu0 %826
      %v828 = vsub.f32 %v820, %v827
      %v829 = vmul.f32 %v828, 1.442695
      %v830 = vpow.pop %v829
      %v831 = vsel %vm445, %v830, 0.0
      %832 = vadd.xlane.f32.xlu0 %v831
      %v833 = vpop.xlane.xlu0 %832
      %v834 = vpack.c.bf16 %v830, %v830
      %835 = vrot.lane.b32.xlu0 %v444, 72
      %v836 = vpop.permute.xlu0 %835
      %v838 = vsel %vm445, %v834, 0
      %v841 = vsel %vm508, %v836, 0
      %843 = vmatprep.subr.bf16.mxu0 0
      %844 = vmatpush1.bf16.msra.mxu0 0
      %845 = vmatprep.subr.bf16.mxu0 0
      %846 = vmatpush1.bf16.msra.mxu0 0
      %847 = vmatprep.subr.bf16.mxu0 0
      %848 = vmatpush1.bf16.msra.mxu0 0
      %849 = vmatprep.subr.bf16.mxu0 0
      %850 = vmatpush1.bf16.msra.mxu0 0
      %851 = vmatprep.subr.bf16.mxu0 0
      %852 = vmatpush1.bf16.msra.mxu0 0
      %853 = vmatprep.subr.bf16.mxu0 0
      %854 = vmatpush1.bf16.msra.mxu0 0
      %855 = vmatprep.subr.bf16.mxu0 0
      %856 = vmatpush1.bf16.msra.mxu0 0
      %857 = vmatprep.subr.bf16.mxu0 0
      %858 = vmatpush1.bf16.msra.mxu0 %v841
      %859 = vmatprep.subr.bf16.mxu0 0
      %860 = vmatpush2.bf16.msra.mxu0 0
      %861 = vmatprep.subr.bf16.mxu0 0
      %862 = vmatpush2.bf16.msra.mxu0 0
      %863 = vmatprep.subr.bf16.mxu0 0
      %864 = vmatpush2.bf16.msra.mxu0 0
      %865 = vmatprep.subr.bf16.mxu0 0
      %866 = vmatpush2.bf16.msra.mxu0 0
      %867 = vmatprep.subr.bf16.mxu0 0
      %868 = vmatpush2.bf16.msra.mxu0 0
      %869 = vmatprep.subr.bf16.mxu0 0
      %870 = vmatpush2.bf16.msra.mxu0 0
      %871 = vmatprep.subr.bf16.mxu0 0
      %872 = vmatpush2.bf16.msra.mxu0 0
      %873 = vmatprep.subr.bf16.mxu0 0
      %874 = vmatpush2.bf16.msra.mxu0 0
      %875 = vmatprep.mubr.bf16.mxu0 0
      %876 = vmatmul.mubr.bf16.gmra.mxu0 %v838
      %v877 = vpop.f32.mrf.mxu0
      %v878 = vadd.f32 0.0, %v877
      %v879 = vpop.f32.mrf.mxu0
      %v880 = vpop.f32.mrf.mxu0
      %v881 = vpop.f32.mrf.mxu0
      %882 = vdwg.mxu0
      %v883 = vrcp.pop %v833
      %v884 = vmul.f32 %v878, %v883
      %886 = vrot.lane.b32.xlu0 %v664, 8
      %v887 = vpop.permute.xlu0 %886
      %890 = vrot.lane.b32.xlu0 %v774, 16
      %v891 = vpop.permute.xlu0 %890
      %894 = vrot.lane.b32.xlu0 %v884, 24
      %v895 = vpop.permute.xlu0 %894
      %v897 = vsel %vm445, %v553, %v887
      %vm898 = vcmask 130048
      %v899 = vsel %vm898, %v897, %v891
      %vm900 = vcmask 195584
      %v901 = vsel %vm900, %v899, %v895
      %v902 = vld [vmem:[%s4] sm:$0xf]
      %v903 = vld [vmem:[%s4 + $0x4] sm:$0xf]
      %v904 = vld [vmem:[%s4 + $0x8] sm:$0xf]
      %v905 = vld [vmem:[%s4 + $0xc] sm:$0xf]
      %v906 = vpack.c.bf16 %v901, %v901
      %v907 = vld [vmem:[%s5] sm:$0x1]
      %v909 = vlaneseq
      %v910 = vshrl.u32 %v909, 7
      %v911 = vsub.s32 0, %v910
      %v912 = vrot.slane %v907, %v911
      %v918 = vunpack.c.l.b16 %v902
      %v919 = vunpack.c.l.b16 %v903
      %v920 = vunpack.c.l.b16 %v904
      %v921 = vunpack.c.l.b16 %v905
      %v922 = vpack.c.b16 %v919, %v918
      %v923 = vpack.c.b16 %v921, %v920
      %v927 = vsel %vm345, %v906, 0
      %929 = vmatprep.subr.bf16.mxu0 0
      %930 = vmatpush1.bf16.msra.mxu0 0
      %931 = vmatprep.subr.bf16.mxu0 0
      %932 = vmatpush1.bf16.msra.mxu0 0
      %933 = vmatprep.subr.bf16.mxu0 0
      %934 = vmatpush1.bf16.msra.mxu0 0
      %935 = vmatprep.subr.bf16.mxu0 0
      %936 = vmatpush1.bf16.msra.mxu0 0
      %937 = vmatprep.subr.bf16.mxu0 0
      %938 = vmatpush1.bf16.msra.mxu0 0
      %939 = vmatprep.subr.bf16.mxu0 0
      %940 = vmatpush1.bf16.msra.mxu0 0
      %941 = vmatprep.subr.bf16.mxu0 0
      %942 = vmatpush1.bf16.msra.mxu0 %v923
      %943 = vmatprep.subr.bf16.mxu0 0
      %944 = vmatpush1.bf16.msra.mxu0 %v922
      %945 = vmatprep.subr.bf16.mxu0 0
      %946 = vmatpush2.bf16.msra.mxu0 0
      %947 = vmatprep.subr.bf16.mxu0 0
      %948 = vmatpush2.bf16.msra.mxu0 0
      %949 = vmatprep.subr.bf16.mxu0 0
      %950 = vmatpush2.bf16.msra.mxu0 0
      %951 = vmatprep.subr.bf16.mxu0 0
      %952 = vmatpush2.bf16.msra.mxu0 0
      %953 = vmatprep.subr.bf16.mxu0 0
      %954 = vmatpush2.bf16.msra.mxu0 0
      %955 = vmatprep.subr.bf16.mxu0 0
      %956 = vmatpush2.bf16.msra.mxu0 0
      %957 = vmatprep.subr.bf16.mxu0 0
      %958 = vmatpush2.bf16.msra.mxu0 0
      %959 = vmatprep.subr.bf16.mxu0 0
      %960 = vmatpush2.bf16.msra.mxu0 0
      %961 = vmatprep.mubr.bf16.mxu0 0
      %962 = vmatmul.mubr.bf16.gmra.mxu0 %v927
      %v963 = vpop.f32.mrf.mxu0
      %v964 = vadd.f32 %v912, %v963
      %v965 = vpop.f32.mrf.mxu0
      %v966 = vpop.f32.mrf.mxu0
      %v967 = vpop.f32.mrf.mxu0
      %968 = vdwg.mxu0
      %v969 = vadd.f32 %v319, %v964
      %v970 = vld [vmem:[%s6] sm:$0x1]
      %v971 = vld [vmem:[%s7] sm:$0x1]
      %v972 = vsel %vm345, %v969, 0.0
      %973 = vadd.xlane.f32.xlu0 %v972
      %v974 = vpop.xlane.xlu0 %973
      %v975 = vrcp.pop 32.0
      %v976 = vmul.f32 %v974, %v975
      %v977 = vsub.f32 %v969, %v976
      %v978 = vmul.f32 %v977, %v977
      %v979 = vsel %vm345, %v978, 0.0
      %980 = vadd.xlane.f32.xlu0 %v979
      %v981 = vpop.xlane.xlu0 %980
      %v982 = vmul.f32 %v981, %v975
      %v983 = vadd.f32 %v982, 1e-05
      %v984 = vrsqrt.pop %v983
      %v985 = vmul.f32 %v977, %v984
      %v987 = vlaneseq
      %v988 = vshrl.u32 %v987, 7
      %v989 = vsub.s32 0, %v988
      %v990 = vrot.slane %v970, %v989
      %v992 = vmul.f32 %v985, %v990
      %v994 = vlaneseq
      %v995 = vshrl.u32 %v994, 7
      %v996 = vsub.s32 0, %v995
      %v997 = vrot.slane %v971, %v996
      %v999 = vadd.f32 %v992, %v997
      %1000 = vst.msk [vmem:[%s317] sm:$0xff] %vm345, %v999
      %p1001 = scmp.lt.s32.totalorder %s19, 1
      %s1002 = scalar_select %p1001, %s19, 1
      %s1003 = smul.addr %s1002, 8
      %s1004 = scalar_lea.vmem %s8, %s1003
      // Predicated region
      $region53: #{decoder_layer.4} parent=51 // pred_check
        %p1005 = pneg %p215
      $region54: #{decoder_layer.4} parent=51 // pred_check_branch
        %1007 = sbr.rel (%p1005) target = $region56
      $region55: #{decoder_layer.4} parent=51 // pred_region
        _
      $region56: #{decoder_layer.4} parent=51 // pred_fallthru
        _
    $region52: #{decoder_layer.4} parent=5 // pred_fallthru
      _
    %p1008 = scmp.le.s32.totalorder 2, %s14
    // Predicated region
    $region57: #{decoder_layer.4} parent=5 // pred_check
      %p1009 = pneg %p1008
    $region58: #{decoder_layer.4} parent=5 // pred_check_branch
      %1011 = sbr.rel (%p1009) target = $region60
    $region59: #{decoder_layer.4} parent=5 // pred_region
      %s1012 = ssub.s32 %s14, 2
      // Predicated region
      $region61: #{decoder_layer.4} parent=59 // pred_check
        %p1013 = pneg %p221
      $region62: #{decoder_layer.4} parent=59 // pred_check_branch
        %1015 = sbr.rel (%p1013) target = $region64
      $region63: #{decoder_layer.4} parent=59 // pred_region
        %p1016 = scmp.lt.s32.totalorder %s20, 1
        %s1017 = scalar_select %p1016, %s20, 1
        %s1018 = smul.addr %s1017, 8
        %s1019 = scalar_lea.vmem %s8, %s1018
      $region64: #{decoder_layer.4} parent=59 // pred_fallthru
        _
    $region60: #{decoder_layer.4} parent=5 // pred_fallthru
      _
  $region6: #{decoder_layer.4} parent=0 // loop_footer
    %s18 = sadd.s32 1, %s14
  $region7: #{decoder_layer.4} parent=0 // loop_footer_branch
    %13 = sbr.rel target = $region3
  $region8: #{decoder_layer.4} parent=0 // loop_exit
    _

</llo_original>
